<compile_context>
chip_gen: v6e
topology: v6e:2x2x1
jax: 0.10.0
libtpu: 0.0.40
codegen_flags: <defaults>
</compile_context>

<pallas_src>
import jax
import jax.numpy as jnp
from jax import lax
from jax.experimental import pallas as pl
from jax.experimental.pallas import tpu as pltpu

MXU_DTYPE = jnp.bfloat16            # MXU operand dtype (accumulation is f32).


def _round_up(x, m):
    return (x + m - 1) // m * m


def _vmem_capacity_bytes():
    try:
        return int(pltpu.get_tpu_info().vmem_capacity_bytes)
    except Exception:
        return 64 * 1024 * 1024      # conservative fallback (v7x per-TC VMEM)


# Generation-aware scoped-VMEM budget and tile caps.
_VMEM_LIMIT = min(_vmem_capacity_bytes() * 3 // 4, 100 * 1024 * 1024)
_TN_CAP = 4096 if _VMEM_LIMIT >= 80 * 1024 * 1024 else 2048
_TK_CAP = 1024
_TM_CAP = 256


def _pad2d(x, rows, cols, dtype):
    x = x.astype(dtype)
    r, c = x.shape
    if r == rows and c == cols:
        return x
    return jnp.pad(x, ((0, rows - r), (0, cols - c)))


def _pick_tile(dim, cap, pad_gran, tile_gran):
    """Pick (tile, padded_dim) without ballooning the padded size.

    The dim is first rounded to its layout granularity (16 sublanes for bf16 on
    M/K, 128 lanes on N).  If that fits under `cap` it becomes a single block
    (tile == padded dim, always legal).  Otherwise the tile is a multiple of
    `tile_gran` (128 so last-dim blocks stay lane-aligned) chosen to minimize
    total padding, preferring the largest such tile.
    """
    dp = _round_up(dim, pad_gran)
    if dp <= cap:
        return dp, dp
    best_t, best_p = tile_gran, _round_up(dp, tile_gran)
    for t in range(tile_gran, cap + 1, tile_gran):
        p = _round_up(dp, t)
        if p < best_p or (p == best_p and t > best_t):
            best_t, best_p = t, p
    return best_t, best_p


# ----------------------------------------------------------------------------
# Kernel 1: tiled (M,K)@(K,N) matmul with fused PReLU + residual epilogue
# ----------------------------------------------------------------------------

def _make_mm_kernel(alpha_mode, has_residual):
    """alpha_mode in {"none", "scalar", "rows"}; optional fused residual add."""

    def kernel(*refs):
        it = iter(refs)
        a_ref = next(it)
        b_ref = next(it)
        alpha_ref = next(it) if alpha_mode != "none" else None
        res_ref = next(it) if has_residual else None
        o_ref = next(it)
        acc_ref = next(it)

        @pl.when(pl.program_id(2) == 0)
        def _():
            acc_ref[...] = jnp.zeros_like(acc_ref)

        acc_ref[...] += jnp.dot(a_ref[...], b_ref[...],
                                preferred_element_type=jnp.float32)

        @pl.when(pl.program_id(2) == pl.num_programs(2) - 1)
        def _():
            r = acc_ref[...]
            if alpha_mode == "scalar":          # single learned slope from SMEM
                a = alpha_ref[0]
                r = jnp.where(r >= 0.0, r, a * r)
            elif alpha_mode == "rows":          # per-output-row slopes (VMEM col)
                r = jnp.where(r >= 0.0, r, alpha_ref[...] * r)
            if has_residual:                    # fused skip connection
                r = r + res_ref[...].astype(jnp.float32)
            o_ref[...] = r.astype(o_ref.dtype)

    return kernel


def fused_matmul_prelu(w_flat, patches, *, alpha=None, alpha_rows=None,
                       residual=None, out_dtype=jnp.float32):
    """out = PReLU(w_flat @ patches) (+ residual), tiled over (M, N, K).

    MXU operands are MXU_DTYPE, accumulation is f32 in VMEM scratch.  The
    reduction axis is last ("arbitrary"); M/N are "parallel" for megacore.
    """
    M, K = w_flat.shape
    Kb, N = patches.shape
    assert K == Kb
    assert alpha is None or alpha_rows is None

    tm, Mp = _pick_tile(M, _TM_CAP, 16, 16)
    tk, Kp = _pick_tile(K, _TK_CAP, 16, 128)
    tn, Np = _pick_tile(N, _TN_CAP, 128, 128)
    # v7x megacore: guarantee >= 2 independent (i, j) blocks so the second
    # TensorCore has work; one extra grid step elsewhere is negligible.
    if Mp == tm and Np == tn and Np >= 256:
        for cand in range((Np // 2) // 128 * 128, 127, -128):
            if Np % cand == 0:
                tn = cand
                break

    a = _pad2d(w_flat, Mp, Kp, MXU_DTYPE)
    b = _pad2d(patches, Kp, Np, MXU_DTYPE)     # no-op when already bf16 & padded

    inputs = [a, b]
    in_specs = [pl.BlockSpec((tm, tk), lambda i, j, k: (i, k)),
                pl.BlockSpec((tk, tn), lambda i, j, k: (k, j))]

    alpha_mode = "none"
    if alpha_rows is not None:
        alpha_mode = "rows"
        inputs.append(_pad2d(jnp.asarray(alpha_rows, jnp.float32).reshape(-1, 1),
                             Mp, 1, jnp.float32))
        in_specs.append(pl.BlockSpec((tm, 1), lambda i, j, k: (i, 0)))
    elif alpha is not None:
        alpha_mode = "scalar"
        inputs.append(jnp.asarray(alpha, jnp.float32).reshape(1))
        in_specs.append(pl.BlockSpec(memory_space=pltpu.MemorySpace.SMEM))

    has_res = residual is not None
    if has_res:
        r2d = residual.reshape(M, N)
        inputs.append(_pad2d(r2d, Mp, Np, r2d.dtype))
        in_specs.append(pl.BlockSpec((tm, tn), lambda i, j, k: (i, j)))

    out = pl.pallas_call(
        _make_mm_kernel(alpha_mode, has_res),
        grid=(Mp // tm, Np // tn, Kp // tk),
        out_shape=jax.ShapeDtypeStruct((Mp, Np), out_dtype),
        in_specs=in_specs,
        out_specs=pl.BlockSpec((tm, tn), lambda i, j, k: (i, j)),
        scratch_shapes=[pltpu.VMEM((tm, tn), jnp.float32)],
        compiler_params=pltpu.CompilerParams(
            dimension_semantics=("parallel", "parallel", "arbitrary"),
            vmem_limit_bytes=_VMEM_LIMIT),
    )(*inputs)
    return out[:M, :N]


# ----------------------------------------------------------------------------
# Kernels 2/3: LRED cross-feature correlation, batch-parallel and hw-blocked
# ----------------------------------------------------------------------------

def _corr_m_kernel(x0_ref, x1_ref, x2_ref, m1_ref, m2_ref):
    # M1 = x0 @ x1^T, M2 = x1 @ x2^T, accumulated over hw tiles (f32 acc).
    @pl.when(pl.program_id(1) == 0)
    def _():
        m1_ref[...] = jnp.zeros_like(m1_ref)
        m2_ref[...] = jnp.zeros_like(m2_ref)

    nt = (((1,), (1,)), ((), ()))                 # contract the hw axis of both
    x0 = x0_ref[...]
    x1 = x1_ref[...]
    x2 = x2_ref[...]
    m1_ref[0] += lax.dot_general(x0, x1, nt, preferred_element_type=jnp.float32)
    m2_ref[0] += lax.dot_general(x1, x2, nt, preferred_element_type=jnp.float32)


def _corr_g_kernel(m1_ref, m2_ref, x1_ref, x2_ref, g1_ref, g2_ref):
    # g1 = F10^T = M1 @ x1,  g2 = F21^T = M2 @ x2  (lane-dense, per hw tile).
    m1 = m1_ref[0].astype(x1_ref.dtype)
    m2 = m2_ref[0].astype(x2_ref.dtype)
    g1_ref[...] = jnp.dot(m1, x1_ref[...], preferred_element_type=jnp.float32)
    g2_ref[...] = jnp.dot(m2, x2_ref[...], preferred_element_type=jnp.float32)


def _pick_hw_tile(hw, cap=2048):
    if hw <= cap:
        return hw
    t = cap // 128 * 128
    while t > 128 and hw % t != 0:
        t -= 128
    return t


def lred_correlation(x0, x1, x2, B, hw):
    """x0:(c,B*hw) x1:(c2,B*hw) x2:(c3,B*hw) -> (F10^T, F21^T) as (c,B*hw)/(c2,B*hw)."""
    c, c2, c3 = x0.shape[0], x1.shape[0], x2.shape[0]
    # TODO(synk): pad/mask spatial sizes that are not a multiple of 128.
    assert hw % 128 == 0, "blocked LRED correlation needs H*W % 128 == 0"
    t_hw = _pick_hw_tile(hw)
    n_hw = hw // t_hw

    def tile_spec(ch):
        return pl.BlockSpec((ch, t_hw), lambda b, t: (0, b * n_hw + t))

    def m_spec(r, cc):
        return pl.BlockSpec((1, r, cc), lambda b, t: (b, 0, 0))

    m1, m2 = pl.pallas_call(
        _corr_m_kernel,
        grid=(B, n_hw),
        out_shape=(jax.ShapeDtypeStruct((B, c, c2), jnp.float32),
                   jax.ShapeDtypeStruct((B, c2, c3), jnp.float32)),
        in_specs=[tile_spec(c), tile_spec(c2), tile_spec(c3)],
        out_specs=(m_spec(c, c2), m_spec(c2, c3)),
        compiler_params=pltpu.CompilerParams(
            dimension_semantics=("parallel", "arbitrary"),
            vmem_limit_bytes=_VMEM_LIMIT),
    )(x0, x1, x2)

    g1, g2 = pl.pallas_call(
        _corr_g_kernel,
        grid=(B, n_hw),
        out_shape=(jax.ShapeDtypeStruct((c, B * hw), jnp.float32),
                   jax.ShapeDtypeStruct((c2, B * hw), jnp.float32)),
        in_specs=[m_spec(c, c2), m_spec(c2, c3), tile_spec(c2), tile_spec(c3)],
        out_specs=(tile_spec(c), tile_spec(c2)),
        compiler_params=pltpu.CompilerParams(
            dimension_semantics=("parallel", "parallel"),
            vmem_limit_bytes=_VMEM_LIMIT),
    )(m1, m2, x1, x2)
    return g1, g2


# ----------------------------------------------------------------------------
# Convolution plumbing (channel-major layout) and weight composition helpers
# ----------------------------------------------------------------------------

def _im2col_3x3_reflect(x_cbhw):
    """(C, B, H, W) -> patches (C*9, B*H*W) in MXU_DTYPE; row = cin*9 + ki*3+kj.

    Input is already channel-major so no transpose is needed and the 9x slab is
    materialized directly in the MXU operand dtype (bf16), in (K, N) order.
    """
    C, B, H, W = x_cbhw.shape
    xp = jnp.pad(x_cbhw.astype(MXU_DTYPE), ((0, 0), (0, 0), (1, 1), (1, 1)),
                 mode="reflect")
    cols = [xp[:, :, i:i + H, j:j + W] for i in range(3) for j in range(3)]
    return jnp.stack(cols, axis=1).reshape(C * 9, B * H * W)


def conv3x3_reflect(x_cbhw, w_flat, *, alpha=None, alpha_rows=None,
                    residual=None, out_dtype=jnp.float32):
    """Reflect-padded 3x3 conv via im2col + fused Pallas matmul; CBHW in/out.

    w_flat (Cout, Cin*9) may already be a composition / row-stack / block-diag
    of several convs.  Optional PReLU slope(s) and residual are fused epilogues.
    """
    C, B, H, W = x_cbhw.shape
    Cout = w_flat.shape[0]
    patches = _im2col_3x3_reflect(x_cbhw)
    out = fused_matmul_prelu(w_flat, patches, alpha=alpha, alpha_rows=alpha_rows,
                             residual=residual, out_dtype=out_dtype)
    return out.reshape(Cout, B, H, W)


def _flat3x3(w):                                   # (Cout,Cin,3,3) -> (Cout,Cin*9)
    return w.reshape(w.shape[0], -1).astype(jnp.float32)


def _compose_1x1_after_3x3(w1x1, w3x3):
    """conv1x1(conv3x3(x)) == conv3x3 with weight (W1 @ W3_flat): exact fusion."""
    w1 = w1x1.reshape(w1x1.shape[0], w1x1.shape[1]).astype(jnp.float32)
    return w1 @ _flat3x3(w3x3)


def _block_diag(mats):
    rows = sum(m.shape[0] for m in mats)
    cols = sum(m.shape[1] for m in mats)
    out = jnp.zeros((rows, cols), jnp.float32)
    r = c = 0
    for m in mats:
        out = out.at[r:r + m.shape[0], c:c + m.shape[1]].set(m)
        r += m.shape[0]
        c += m.shape[1]
    return out


def _prelu_rows(a, n):
    # nn.PReLU() default is a single learned scalar slope broadcast to n rows.
    return jnp.broadcast_to(jnp.asarray(a, jnp.float32).reshape(-1), (n,))


def _rawview_to_cbhw(g2d, ch, B, H, W):
    """Reproduce torch's raw F.view(b, ch, h, w) on a contiguous (b, hw, ch)
    tensor (g2d holds F^T per batch), returning the CBHW-layout result."""
    hw = H * W
    f_bchw = g2d.reshape(ch, B, hw).transpose(1, 2, 0).reshape(B, ch, H, W)
    return f_bchw.transpose(1, 0, 2, 3)


# ----------------------------------------------------------------------------
# Module forward passes (channel-major internally; semantics match PyTorch)
# ----------------------------------------------------------------------------

def reshape_block_apply(pr, x, residual=None, out_dtype=jnp.float32):
    y = conv3x3_reflect(x, _flat3x3(pr["c1_w"]), alpha=pr["a"],
                        out_dtype=MXU_DTYPE)            # conv->conv intermediate
    return conv3x3_reflect(y, _flat3x3(pr["c2_w"]), residual=residual,
                           out_dtype=out_dtype)


def conv3_1_apply(pr, x, residual=None, out_dtype=jnp.float32):
    y = conv3x3_reflect(x, _flat3x3(pr["c31_w"]), alpha=pr["a"],
                        out_dtype=MXU_DTYPE)
    w_eff = _compose_1x1_after_3x3(pr["c1_w"], pr["c32_w"])  # conv32->conv1 fused
    return conv3x3_reflect(y, w_eff, residual=residual, out_dtype=out_dtype)


def lred_apply(pr, x, residual):
    """LRED forward (CBHW).  `residual` is added in the final conv's epilogue;
    the caller folds its own skip terms into it so the whole sum is fused."""
    c, B, H, W = x.shape
    c2, c3 = c // 2, c // 3
    hw = H * W

    # Stage A: the three branch heads read the same input -> one row-stacked
    # matmul with per-row PReLU slopes (1 launch).
    w_a = jnp.concatenate([_flat3x3(pr["down"]["c31_w"]),
                           _flat3x3(pr["mid"]["c31_w"]),
                           _flat3x3(pr["up"]["c31_w"])], axis=0)
    alpha_a = jnp.concatenate([_prelu_rows(pr["down"]["a"], c),
                               _prelu_rows(pr["mid"]["a"], c2),
                               _prelu_rows(pr["up"]["a"], c3)], axis=0)
    y_a = conv3x3_reflect(x, w_a, alpha_rows=alpha_a, out_dtype=MXU_DTYPE)

    # Stage B: each branch's (conv32 -> conv1x1) tail, composed and laid out
    # block-diagonally over the channel-concatenated intermediate (1 launch).
    w_b = _block_diag([
        _compose_1x1_after_3x3(pr["down"]["c1_w"], pr["down"]["c32_w"]),
        _compose_1x1_after_3x3(pr["mid"]["c1_w"], pr["mid"]["c32_w"]),
        _compose_1x1_after_3x3(pr["up"]["c1_w"], pr["up"]["c32_w"]),
    ])
    y_b = conv3x3_reflect(y_a, w_b, out_dtype=MXU_DTYPE)     # (c+c2+c3, B, H, W)
    y_b2d = y_b.reshape(c + c2 + c3, B * hw)
    x0_2d = y_b2d[:c]
    x1_2d = y_b2d[c:c + c2]
    x2_2d = y_b2d[c + c2:]

    # Fused cross-feature correlation (bf16 MXU operands, f32 accumulate).
    g1, g2 = lred_correlation(x0_2d, x1_2d, x2_2d, B, hw)

    # torch does F.view(b, c, h, w) on a contiguous (b, hw, c) tensor — a raw
    # reinterpretation; reproduce it host-side (c is small, a kernel-side
    # (hw, c) store would be lane-sparse) and add the branch residuals.
    f10 = _rawview_to_cbhw(g1, c, B, H, W) + \
        x0_2d.reshape(c, B, H, W).astype(jnp.float32)
    f21 = _rawview_to_cbhw(g2, c2, B, H, W) + \
        x1_2d.reshape(c2, B, H, W).astype(jnp.float32)
    f_all = jnp.concatenate([f10, f21], axis=0)

    return reshape_block_apply(pr["reshape"], f_all, residual=residual)


def lcab_apply(pr, x_bchw):
    # Keep everything in channel-major layout internally; convert exactly once
    # on entry and once on exit.
    x = jnp.transpose(x_bchw, (1, 0, 2, 3)).astype(jnp.float32)
    h = reshape_block_apply(pr["conv31"], x)                 # torch: out
    out_1x = conv3_1_apply(pr["conv32"], h, residual=x)      # out_1 + x (fused)
    # out_1 + out_2 + x == reshape(F_all) + (h + out_1x): the whole sum lands in
    # LRED's final conv epilogue; only one small XLA add (h + out_1x) remains.
    out = lred_apply(pr["lred"], h, residual=h + out_1x)
    out = reshape_block_apply(pr["conv33"], out, residual=x)  # conv33(..) + x
    return jnp.transpose(out, (1, 0, 2, 3))


# ----------------------------------------------------------------------------
# Pure-JAX f32 reference (direct transcription of the PyTorch module)
# ----------------------------------------------------------------------------

def _ref_conv3x3(x, w):
    xp = jnp.pad(x, ((0, 0), (0, 0), (1, 1), (1, 1)), mode="reflect")
    return lax.conv_general_dilated(xp, w, (1, 1), "VALID",
                                    dimension_numbers=("NCHW", "OIHW", "NCHW"))


def _ref_conv1x1(x, w):
    return lax.conv_general_dilated(x, w, (1, 1), "VALID",
                                    dimension_numbers=("NCHW", "OIHW", "NCHW"))


def _ref_prelu(x, a):
    return jnp.where(x >= 0, x, a * x)


def _ref_reshape_block(pr, x):
    y = _ref_prelu(_ref_conv3x3(x, pr["c1_w"]), pr["a"])
    return _ref_conv3x3(y, pr["c2_w"])


def _ref_conv3_1(pr, x):
    y = _ref_prelu(_ref_conv3x3(x, pr["c31_w"]), pr["a"])
    y = _ref_conv3x3(y, pr["c32_w"])
    return _ref_conv1x1(y, pr["c1_w"])


def _ref_lred(pr, x):
    b, c, h, w = x.shape
    x0 = _ref_conv3_1(pr["down"], x)
    x1 = _ref_conv3_1(pr["mid"], x)
    x2 = _ref_conv3_1(pr["up"], x)
    x00 = x0.reshape(b, c, h * w)
    x10 = x1.reshape(b, c // 2, h * w)
    x11 = jnp.transpose(x10, (0, 2, 1))
    m1 = jnp.matmul(x00, x11)
    f10 = jnp.matmul(x11, jnp.transpose(m1, (0, 2, 1))).reshape(b, c, h, w) + x0
    x20 = x2.reshape(b, c // 3, h * w)
    x21 = jnp.transpose(x20, (0, 2, 1))
    m2 = jnp.matmul(x10, x21)
    f21 = jnp.matmul(x21, jnp.transpose(m2, (0, 2, 1))).reshape(b, c // 2, h, w) + x1
    f_all = jnp.concatenate([f10, f21], axis=1)
    return _ref_reshape_block(pr["reshape"], f_all) + x


def lcab_reference(pr, x):
    out = _ref_reshape_block(pr["conv31"], x)
    o1 = _ref_conv3_1(pr["conv32"], out)
    o2 = _ref_lred(pr["lred"], out)
    out = _ref_reshape_block(pr["conv33"], o1 + o2 + x)
    return out + x


# ----------------------------------------------------------------------------
# Deterministic synthetic parameters
# ----------------------------------------------------------------------------

class PInit:
    def __init__(self, seed=0):
        self.key = jax.random.PRNGKey(seed)
        self.cnt = 0

    def normal(self, shape, scale=0.15):
        self.cnt += 1
        k = jax.random.fold_in(self.key, self.cnt)
        return scale * jax.random.normal(k, shape, jnp.float32)


def init_reshape_block(p, cin, cout):
    return {"c1_w": p.normal((cout, cin, 3, 3)),
            "a": jnp.asarray(0.25, jnp.float32),            # nn.PReLU() default
            "c2_w": p.normal((cout, cout, 3, 3))}


def init_conv3_1(p, p3, p1):
    return {"c31_w": p.normal((p1, p3, 3, 3)),
            "a": jnp.asarray(0.25, jnp.float32),
            "c32_w": p.normal((p1, p1, 3, 3)),
            "c1_w": p.normal((p1, p1, 1, 1))}


def init_lred(p, c):
    # NOTE: LRED.conv1 exists in the PyTorch module but is never used in forward().
    return {"down": init_conv3_1(p, c, c),
            "mid": init_conv3_1(p, c, c // 2),
            "up": init_conv3_1(p, c, c // 3),
            "reshape": init_reshape_block(p, c * 3 // 2, c)}


def init_lcab(p, c):
    return {"conv31": init_reshape_block(p, c, c),
            "lred": init_lred(p, c),
            "conv32": init_conv3_1(p, c, c),
            "conv33": init_reshape_block(p, c, c)}


# ----------------------------------------------------------------------------

if __name__ == "__main__":
    B, C, H, W = 2, 6, 16, 16          # C divisible by 2 and 3 (LRED requirement)
    x = jax.random.normal(jax.random.PRNGKey(0), (B, C, H, W), jnp.float32)
    params = init_lcab(PInit(seed=0), C)

    fwd = jax.jit(lcab_apply)
    out = jax.block_until_ready(fwd(params, x))

    assert out.shape == (B, C, H, W)
    assert bool(jnp.all(jnp.isfinite(out)))

    # Tolerance check against a pure-JAX f32 reference (bf16 MXU operands are
    # the only intended deviation from the PyTorch module).
    ref = jax.block_until_ready(jax.jit(lcab_reference)(params, x))
    max_err = float(jnp.max(jnp.abs(out - ref)))
    tol = 1e-1 + 3e-2 * float(jnp.max(jnp.abs(ref)))
    assert max_err <= tol, f"mismatch vs f32 reference: {max_err} > {tol}"

    print("KERNEL_OK")
</pallas_src>

<mosaic_0001>
module attributes {stable_mosaic.version = 11 : i64} {
  func.func @kernel(%arg0: i32, %arg1: i32, %arg2: i32, %arg3: memref<16x64xbf16, #tpu.memory_space<vmem>>, %arg4: memref<64x256xbf16, #tpu.memory_space<vmem>>, %arg5: memref<1xf32, #tpu.memory_space<smem>>, %arg6: memref<16x256xbf16, #tpu.memory_space<vmem>>, %arg7: memref<16x256xf32, #tpu.memory_space<vmem>>) attributes {dimension_semantics = [#tpu.dimension_semantics<parallel>, #tpu.dimension_semantics<parallel>, #tpu.dimension_semantics<arbitrary>], iteration_bounds = array<i64: 1, 2, 1>, scalar_prefetch = 0 : i64, scratch_operands = 1 : i64, tpu.core_type = #tpu.core_type<tc>, window_params = [{transform_indices = @transform_0, window_bounds = array<i64: 16, 64>}, {transform_indices = @transform_1, window_bounds = array<i64: 64, 256>}, {transform_indices = @transform_2, window_bounds = array<i64: 1>}, {transform_indices = @transform_3, window_bounds = array<i64: 16, 256>}]} {
    %c0_i32 = arith.constant 0 : i32
    %0 = arith.cmpi eq, %arg2, %c0_i32 : i32
    %1 = arith.extui %0 : i1 to i32
    %c0_i32_0 = arith.constant 0 : i32
    %2 = arith.cmpi ne, %1, %c0_i32_0 : i32
    scf.if %2 {
      %cst_10 = arith.constant 0.000000e+00 : f32
      %12 = vector.broadcast %cst_10 : f32 to vector<16x256xf32>
      %c0_11 = arith.constant 0 : index
      %c0_12 = arith.constant 0 : index
      %13 = vector.load %arg7[%c0_11, %c0_12] : memref<16x256xf32, #tpu.memory_space<vmem>>, vector<16x256xf32>
      tpu.vector_store %arg7[%c0_11, %c0_12], %12 {strides = array<i32>} : memref<16x256xf32, #tpu.memory_space<vmem>>, vector<16x256xf32>,
    } else {
    }
    %c0 = arith.constant 0 : index
    %c0_1 = arith.constant 0 : index
    %3 = vector.load %arg7[%c0, %c0_1] : memref<16x256xf32, #tpu.memory_space<vmem>>, vector<16x256xf32>
    %c0_2 = arith.constant 0 : index
    %c0_3 = arith.constant 0 : index
    %4 = vector.load %arg3[%c0_2, %c0_3] : memref<16x64xbf16, #tpu.memory_space<vmem>>, vector<16x64xbf16>
    %c0_4 = arith.constant 0 : index
    %c0_5 = arith.constant 0 : index
    %5 = vector.load %arg4[%c0_4, %c0_5] : memref<64x256xbf16, #tpu.memory_space<vmem>>, vector<64x256xbf16>
    %cst = arith.constant dense<0.000000e+00> : vector<16x256xf32>
    %6 = tpu.matmul %4, %5, %cst {dimension_numbers = #tpu.dot_dimension_numbers<[1], [0], [0], [1], [0, 0, 1, 1], [], []>} : vector<16x64xbf16>, vector<64x256xbf16>, vector<16x256xf32> -> vector<16x256xf32>
    %7 = arith.addf %3, %6 : vector<16x256xf32>
    %c0_6 = arith.constant 0 : index
    %c0_7 = arith.constant 0 : index
    %8 = vector.load %arg7[%c0_6, %c0_7] : memref<16x256xf32, #tpu.memory_space<vmem>>, vector<16x256xf32>
    tpu.vector_store %arg7[%c0_6, %c0_7], %7 {strides = array<i32>} : memref<16x256xf32, #tpu.memory_space<vmem>>, vector<16x256xf32>,
    %c0_i32_8 = arith.constant 0 : i32
    %9 = arith.cmpi eq, %arg2, %c0_i32_8 : i32
    %10 = arith.extui %9 : i1 to i32
    %c0_i32_9 = arith.constant 0 : i32
    %11 = arith.cmpi ne, %10, %c0_i32_9 : i32
    scf.if %11 {
      %c0_10 = arith.constant 0 : index
      %c0_11 = arith.constant 0 : index
      %12 = vector.load %arg7[%c0_10, %c0_11] : memref<16x256xf32, #tpu.memory_space<vmem>>, vector<16x256xf32>
      %c0_12 = arith.constant 0 : index
      %13 = memref.load %arg5[%c0_12] : memref<1xf32, #tpu.memory_space<smem>>
      %cst_13 = arith.constant 0.000000e+00 : f32
      %14 = vector.broadcast %cst_13 : f32 to vector<16x256xf32>
      %15 = arith.cmpf oge, %12, %14 : vector<16x256xf32>
      %16 = vector.broadcast %13 : f32 to vector<16x256xf32>
      %17 = arith.mulf %16, %12 : vector<16x256xf32>
      %18 = arith.select %15, %12, %17 : vector<16x256xi1>, vector<16x256xf32>
      %19 = arith.truncf %18 : vector<16x256xf32> to vector<16x256xbf16>
      %c0_14 = arith.constant 0 : index
      %c0_15 = arith.constant 0 : index
      %20 = vector.load %arg6[%c0_14, %c0_15] : memref<16x256xbf16, #tpu.memory_space<vmem>>, vector<16x256xbf16>
      tpu.vector_store %arg6[%c0_14, %c0_15], %19 {strides = array<i32>} : memref<16x256xbf16, #tpu.memory_space<vmem>>, vector<16x256xbf16>,
    } else {
    }
    return
  }
  func.func @transform_0(%arg0: i32, %arg1: i32, %arg2: i32) -> (i32, i32) {
    %c0_i32 = arith.constant 0 : i32
    return %arg0, %arg2 : i32, i32
  }
  func.func @transform_1(%arg0: i32, %arg1: i32, %arg2: i32) -> (i32, i32) {
    %c0_i32 = arith.constant 0 : i32
    return %arg2, %arg1 : i32, i32
  }
  func.func @transform_2(%arg0: i32, %arg1: i32, %arg2: i32) -> i32 {
    %c0_i32 = arith.constant 0 : i32
    %c0_i32_0 = arith.constant 0 : i32
    return %c0_i32 : i32
  }
  func.func @transform_3(%arg0: i32, %arg1: i32, %arg2: i32) -> (i32, i32) {
    %c0_i32 = arith.constant 0 : i32
    return %arg0, %arg1 : i32, i32
  }
}

module attributes {stable_mosaic.version = 11 : i64} {
  func.func @kernel(%arg0: i32, %arg1: i32, %arg2: i32, %arg3: memref<16x64xbf16, #tpu.memory_space<vmem>>, %arg4: memref<64x256xbf16, #tpu.memory_space<vmem>>, %arg5: memref<16x256xf32, #tpu.memory_space<vmem>>, %arg6: memref<16x256xf32, #tpu.memory_space<vmem>>) attributes {dimension_semantics = [#tpu.dimension_semantics<parallel>, #tpu.dimension_semantics<parallel>, #tpu.dimension_semantics<arbitrary>], iteration_bounds = array<i64: 1, 2, 1>, scalar_prefetch = 0 : i64, scratch_operands = 1 : i64, tpu.core_type = #tpu.core_type<tc>, window_params = [{transform_indices = @transform_0, window_bounds = array<i64: 16, 64>}, {transform_indices = @transform_1, window_bounds = array<i64: 64, 256>}, {transform_indices = @transform_2, window_bounds = array<i64: 16, 256>}]} {
    %c0_i32 = arith.constant 0 : i32
    %0 = arith.cmpi eq, %arg2, %c0_i32 : i32
    %1 = arith.extui %0 : i1 to i32
    %c0_i32_0 = arith.constant 0 : i32
    %2 = arith.cmpi ne, %1, %c0_i32_0 : i32
    scf.if %2 {
      %cst_10 = arith.constant 0.000000e+00 : f32
      %12 = vector.broadcast %cst_10 : f32 to vector<16x256xf32>
      %c0_11 = arith.constant 0 : index
      %c0_12 = arith.constant 0 : index
      %13 = vector.load %arg6[%c0_11, %c0_12] : memref<16x256xf32, #tpu.memory_space<vmem>>, vector<16x256xf32>
      tpu.vector_store %arg6[%c0_11, %c0_12], %12 {strides = array<i32>} : memref<16x256xf32, #tpu.memory_space<vmem>>, vector<16x256xf32>,
    } else {
    }
    %c0 = arith.constant 0 : index
    %c0_1 = arith.constant 0 : index
    %3 = vector.load %arg6[%c0, %c0_1] : memref<16x256xf32, #tpu.memory_space<vmem>>, vector<16x256xf32>
    %c0_2 = arith.constant 0 : index
    %c0_3 = arith.constant 0 : index
    %4 = vector.load %arg3[%c0_2, %c0_3] : memref<16x64xbf16, #tpu.memory_space<vmem>>, vector<16x64xbf16>
    %c0_4 = arith.constant 0 : index
    %c0_5 = arith.constant 0 : index
    %5 = vector.load %arg4[%c0_4, %c0_5] : memref<64x256xbf16, #tpu.memory_space<vmem>>, vector<64x256xbf16>
    %cst = arith.constant dense<0.000000e+00> : vector<16x256xf32>
    %6 = tpu.matmul %4, %5, %cst {dimension_numbers = #tpu.dot_dimension_numbers<[1], [0], [0], [1], [0, 0, 1, 1], [], []>} : vector<16x64xbf16>, vector<64x256xbf16>, vector<16x256xf32> -> vector<16x256xf32>
    %7 = arith.addf %3, %6 : vector<16x256xf32>
    %c0_6 = arith.constant 0 : index
    %c0_7 = arith.constant 0 : index
    %8 = vector.load %arg6[%c0_6, %c0_7] : memref<16x256xf32, #tpu.memory_space<vmem>>, vector<16x256xf32>
    tpu.vector_store %arg6[%c0_6, %c0_7], %7 {strides = array<i32>} : memref<16x256xf32, #tpu.memory_space<vmem>>, vector<16x256xf32>,
    %c0_i32_8 = arith.constant 0 : i32
    %9 = arith.cmpi eq, %arg2, %c0_i32_8 : i32
    %10 = arith.extui %9 : i1 to i32
    %c0_i32_9 = arith.constant 0 : i32
    %11 = arith.cmpi ne, %10, %c0_i32_9 : i32
    scf.if %11 {
      %c0_10 = arith.constant 0 : index
      %c0_11 = arith.constant 0 : index
      %12 = vector.load %arg6[%c0_10, %c0_11] : memref<16x256xf32, #tpu.memory_space<vmem>>, vector<16x256xf32>
      %c0_12 = arith.constant 0 : index
      %c0_13 = arith.constant 0 : index
      %13 = vector.load %arg5[%c0_12, %c0_13] : memref<16x256xf32, #tpu.memory_space<vmem>>, vector<16x256xf32>
      tpu.vector_store %arg5[%c0_12, %c0_13], %12 {strides = array<i32>} : memref<16x256xf32, #tpu.memory_space<vmem>>, vector<16x256xf32>,
    } else {
    }
    return
  }
  func.func @transform_0(%arg0: i32, %arg1: i32, %arg2: i32) -> (i32, i32) {
    %c0_i32 = arith.constant 0 : i32
    return %arg0, %arg2 : i32, i32
  }
  func.func @transform_1(%arg0: i32, %arg1: i32, %arg2: i32) -> (i32, i32) {
    %c0_i32 = arith.constant 0 : i32
    return %arg2, %arg1 : i32, i32
  }
  func.func @transform_2(%arg0: i32, %arg1: i32, %arg2: i32) -> (i32, i32) {
    %c0_i32 = arith.constant 0 : i32
    return %arg0, %arg1 : i32, i32
  }
}

module attributes {stable_mosaic.version = 11 : i64} {
  func.func @kernel(%arg0: i32, %arg1: i32, %arg2: i32, %arg3: memref<16x64xbf16, #tpu.memory_space<vmem>>, %arg4: memref<64x256xbf16, #tpu.memory_space<vmem>>, %arg5: memref<16x256xf32, #tpu.memory_space<vmem>>, %arg6: memref<16x256xf32, #tpu.memory_space<vmem>>, %arg7: memref<16x256xf32, #tpu.memory_space<vmem>>) attributes {dimension_semantics = [#tpu.dimension_semantics<parallel>, #tpu.dimension_semantics<parallel>, #tpu.dimension_semantics<arbitrary>], iteration_bounds = array<i64: 1, 2, 1>, scalar_prefetch = 0 : i64, scratch_operands = 1 : i64, tpu.core_type = #tpu.core_type<tc>, window_params = [{transform_indices = @transform_0, window_bounds = array<i64: 16, 64>}, {transform_indices = @transform_1, window_bounds = array<i64: 64, 256>}, {transform_indices = @transform_2, window_bounds = array<i64: 16, 256>}, {transform_indices = @transform_3, window_bounds = array<i64: 16, 256>}]} {
    %c0_i32 = arith.constant 0 : i32
    %0 = arith.cmpi eq, %arg2, %c0_i32 : i32
    %1 = arith.extui %0 : i1 to i32
    %c0_i32_0 = arith.constant 0 : i32
    %2 = arith.cmpi ne, %1, %c0_i32_0 : i32
    scf.if %2 {
      %cst_10 = arith.constant 0.000000e+00 : f32
      %12 = vector.broadcast %cst_10 : f32 to vector<16x256xf32>
      %c0_11 = arith.constant 0 : index
      %c0_12 = arith.constant 0 : index
      %13 = vector.load %arg7[%c0_11, %c0_12] : memref<16x256xf32, #tpu.memory_space<vmem>>, vector<16x256xf32>
      tpu.vector_store %arg7[%c0_11, %c0_12], %12 {strides = array<i32>} : memref<16x256xf32, #tpu.memory_space<vmem>>, vector<16x256xf32>,
    } else {
    }
    %c0 = arith.constant 0 : index
    %c0_1 = arith.constant 0 : index
    %3 = vector.load %arg7[%c0, %c0_1] : memref<16x256xf32, #tpu.memory_space<vmem>>, vector<16x256xf32>
    %c0_2 = arith.constant 0 : index
    %c0_3 = arith.constant 0 : index
    %4 = vector.load %arg3[%c0_2, %c0_3] : memref<16x64xbf16, #tpu.memory_space<vmem>>, vector<16x64xbf16>
    %c0_4 = arith.constant 0 : index
    %c0_5 = arith.constant 0 : index
    %5 = vector.load %arg4[%c0_4, %c0_5] : memref<64x256xbf16, #tpu.memory_space<vmem>>, vector<64x256xbf16>
    %cst = arith.constant dense<0.000000e+00> : vector<16x256xf32>
    %6 = tpu.matmul %4, %5, %cst {dimension_numbers = #tpu.dot_dimension_numbers<[1], [0], [0], [1], [0, 0, 1, 1], [], []>} : vector<16x64xbf16>, vector<64x256xbf16>, vector<16x256xf32> -> vector<16x256xf32>
    %7 = arith.addf %3, %6 : vector<16x256xf32>
    %c0_6 = arith.constant 0 : index
    %c0_7 = arith.constant 0 : index
    %8 = vector.load %arg7[%c0_6, %c0_7] : memref<16x256xf32, #tpu.memory_space<vmem>>, vector<16x256xf32>
    tpu.vector_store %arg7[%c0_6, %c0_7], %7 {strides = array<i32>} : memref<16x256xf32, #tpu.memory_space<vmem>>, vector<16x256xf32>,
    %c0_i32_8 = arith.constant 0 : i32
    %9 = arith.cmpi eq, %arg2, %c0_i32_8 : i32
    %10 = arith.extui %9 : i1 to i32
    %c0_i32_9 = arith.constant 0 : i32
    %11 = arith.cmpi ne, %10, %c0_i32_9 : i32
    scf.if %11 {
      %c0_10 = arith.constant 0 : index
      %c0_11 = arith.constant 0 : index
      %12 = vector.load %arg7[%c0_10, %c0_11] : memref<16x256xf32, #tpu.memory_space<vmem>>, vector<16x256xf32>
      %c0_12 = arith.constant 0 : index
      %c0_13 = arith.constant 0 : index
      %13 = vector.load %arg5[%c0_12, %c0_13] : memref<16x256xf32, #tpu.memory_space<vmem>>, vector<16x256xf32>
      %14 = arith.addf %12, %13 : vector<16x256xf32>
      %c0_14 = arith.constant 0 : index
      %c0_15 = arith.constant 0 : index
      %15 = vector.load %arg6[%c0_14, %c0_15] : memref<16x256xf32, #tpu.memory_space<vmem>>, vector<16x256xf32>
      tpu.vector_store %arg6[%c0_14, %c0_15], %14 {strides = array<i32>} : memref<16x256xf32, #tpu.memory_space<vmem>>, vector<16x256xf32>,
    } else {
    }
    return
  }
  func.func @transform_0(%arg0: i32, %arg1: i32, %arg2: i32) -> (i32, i32) {
    %c0_i32 = arith.constant 0 : i32
    return %arg0, %arg2 : i32, i32
  }
  func.func @transform_1(%arg0: i32, %arg1: i32, %arg2: i32) -> (i32, i32) {
    %c0_i32 = arith.constant 0 : i32
    return %arg2, %arg1 : i32, i32
  }
  func.func @transform_2(%arg0: i32, %arg1: i32, %arg2: i32) -> (i32, i32) {
    %c0_i32 = arith.constant 0 : i32
    return %arg0, %arg1 : i32, i32
  }
  func.func @transform_3(%arg0: i32, %arg1: i32, %arg2: i32) -> (i32, i32) {
    %c0_i32 = arith.constant 0 : i32
    return %arg0, %arg1 : i32, i32
  }
}

module attributes {stable_mosaic.version = 11 : i64} {
  func.func @kernel(%arg0: i32, %arg1: i32, %arg2: i32, %arg3: memref<16x64xbf16, #tpu.memory_space<vmem>>, %arg4: memref<64x256xbf16, #tpu.memory_space<vmem>>, %arg5: memref<16x1xf32, #tpu.memory_space<vmem>>, %arg6: memref<16x256xbf16, #tpu.memory_space<vmem>>, %arg7: memref<16x256xf32, #tpu.memory_space<vmem>>) attributes {dimension_semantics = [#tpu.dimension_semantics<parallel>, #tpu.dimension_semantics<parallel>, #tpu.dimension_semantics<arbitrary>], iteration_bounds = array<i64: 1, 2, 1>, scalar_prefetch = 0 : i64, scratch_operands = 1 : i64, tpu.core_type = #tpu.core_type<tc>, window_params = [{transform_indices = @transform_0, window_bounds = array<i64: 16, 64>}, {transform_indices = @transform_1, window_bounds = array<i64: 64, 256>}, {transform_indices = @transform_2, window_bounds = array<i64: 16, 1>}, {transform_indices = @transform_3, window_bounds = array<i64: 16, 256>}]} {
    %c0_i32 = arith.constant 0 : i32
    %0 = arith.cmpi eq, %arg2, %c0_i32 : i32
    %1 = arith.extui %0 : i1 to i32
    %c0_i32_0 = arith.constant 0 : i32
    %2 = arith.cmpi ne, %1, %c0_i32_0 : i32
    scf.if %2 {
      %cst_10 = arith.constant 0.000000e+00 : f32
      %12 = vector.broadcast %cst_10 : f32 to vector<16x256xf32>
      %c0_11 = arith.constant 0 : index
      %c0_12 = arith.constant 0 : index
      %13 = vector.load %arg7[%c0_11, %c0_12] : memref<16x256xf32, #tpu.memory_space<vmem>>, vector<16x256xf32>
      tpu.vector_store %arg7[%c0_11, %c0_12], %12 {strides = array<i32>} : memref<16x256xf32, #tpu.memory_space<vmem>>, vector<16x256xf32>,
    } else {
    }
    %c0 = arith.constant 0 : index
    %c0_1 = arith.constant 0 : index
    %3 = vector.load %arg7[%c0, %c0_1] : memref<16x256xf32, #tpu.memory_space<vmem>>, vector<16x256xf32>
    %c0_2 = arith.constant 0 : index
    %c0_3 = arith.constant 0 : index
    %4 = vector.load %arg3[%c0_2, %c0_3] : memref<16x64xbf16, #tpu.memory_space<vmem>>, vector<16x64xbf16>
    %c0_4 = arith.constant 0 : index
    %c0_5 = arith.constant 0 : index
    %5 = vector.load %arg4[%c0_4, %c0_5] : memref<64x256xbf16, #tpu.memory_space<vmem>>, vector<64x256xbf16>
    %cst = arith.constant dense<0.000000e+00> : vector<16x256xf32>
    %6 = tpu.matmul %4, %5, %cst {dimension_numbers = #tpu.dot_dimension_numbers<[1], [0], [0], [1], [0, 0, 1, 1], [], []>} : vector<16x64xbf16>, vector<64x256xbf16>, vector<16x256xf32> -> vector<16x256xf32>
    %7 = arith.addf %3, %6 : vector<16x256xf32>
    %c0_6 = arith.constant 0 : index
    %c0_7 = arith.constant 0 : index
    %8 = vector.load %arg7[%c0_6, %c0_7] : memref<16x256xf32, #tpu.memory_space<vmem>>, vector<16x256xf32>
    tpu.vector_store %arg7[%c0_6, %c0_7], %7 {strides = array<i32>} : memref<16x256xf32, #tpu.memory_space<vmem>>, vector<16x256xf32>,
    %c0_i32_8 = arith.constant 0 : i32
    %9 = arith.cmpi eq, %arg2, %c0_i32_8 : i32
    %10 = arith.extui %9 : i1 to i32
    %c0_i32_9 = arith.constant 0 : i32
    %11 = arith.cmpi ne, %10, %c0_i32_9 : i32
    scf.if %11 {
      %c0_10 = arith.constant 0 : index
      %c0_11 = arith.constant 0 : index
      %12 = vector.load %arg7[%c0_10, %c0_11] : memref<16x256xf32, #tpu.memory_space<vmem>>, vector<16x256xf32>
      %cst_12 = arith.constant 0.000000e+00 : f32
      %13 = vector.broadcast %cst_12 : f32 to vector<16x256xf32>
      %14 = arith.cmpf oge, %12, %13 : vector<16x256xf32>
      %c0_13 = arith.constant 0 : index
      %c0_14 = arith.constant 0 : index
      %15 = vector.load %arg5[%c0_13, %c0_14] : memref<16x1xf32, #tpu.memory_space<vmem>>, vector<16x1xf32>
      %16 = vector.broadcast %15 : vector<16x1xf32> to vector<16x256xf32>
      %17 = arith.mulf %16, %12 : vector<16x256xf32>
      %18 = arith.select %14, %12, %17 : vector<16x256xi1>, vector<16x256xf32>
      %19 = arith.truncf %18 : vector<16x256xf32> to vector<16x256xbf16>
      %c0_15 = arith.constant 0 : index
      %c0_16 = arith.constant 0 : index
      %20 = vector.load %arg6[%c0_15, %c0_16] : memref<16x256xbf16, #tpu.memory_space<vmem>>, vector<16x256xbf16>
      tpu.vector_store %arg6[%c0_15, %c0_16], %19 {strides = array<i32>} : memref<16x256xbf16, #tpu.memory_space<vmem>>, vector<16x256xbf16>,
    } else {
    }
    return
  }
  func.func @transform_0(%arg0: i32, %arg1: i32, %arg2: i32) -> (i32, i32) {
    %c0_i32 = arith.constant 0 : i32
    return %arg0, %arg2 : i32, i32
  }
  func.func @transform_1(%arg0: i32, %arg1: i32, %arg2: i32) -> (i32, i32) {
    %c0_i32 = arith.constant 0 : i32
    return %arg2, %arg1 : i32, i32
  }
  func.func @transform_2(%arg0: i32, %arg1: i32, %arg2: i32) -> (i32, i32) {
    %c0_i32 = arith.constant 0 : i32
    %c0_i32_0 = arith.constant 0 : i32
    return %arg0, %c0_i32 : i32, i32
  }
  func.func @transform_3(%arg0: i32, %arg1: i32, %arg2: i32) -> (i32, i32) {
    %c0_i32 = arith.constant 0 : i32
    return %arg0, %arg1 : i32, i32
  }
}

module attributes {stable_mosaic.version = 11 : i64} {
  func.func @_corr_g_kernel(%arg0: i32, %arg1: i32, %arg2: memref<1x6x3xf32, #tpu.memory_space<vmem>>, %arg3: memref<1x3x2xf32, #tpu.memory_space<vmem>>, %arg4: memref<3x256xbf16, #tpu.memory_space<vmem>>, %arg5: memref<2x256xbf16, #tpu.memory_space<vmem>>, %arg6: memref<6x256xf32, #tpu.memory_space<vmem>>, %arg7: memref<3x256xf32, #tpu.memory_space<vmem>>) attributes {dimension_semantics = [#tpu.dimension_semantics<parallel>, #tpu.dimension_semantics<parallel>], iteration_bounds = array<i64: 2, 1>, scalar_prefetch = 0 : i64, scratch_operands = 0 : i64, tpu.core_type = #tpu.core_type<tc>, window_params = [{transform_indices = @transform_0, window_bounds = array<i64: 1, 6, 3>}, {transform_indices = @transform_1, window_bounds = array<i64: 1, 3, 2>}, {transform_indices = @transform_2, window_bounds = array<i64: 3, 256>}, {transform_indices = @transform_3, window_bounds = array<i64: 2, 256>}, {transform_indices = @transform_4, window_bounds = array<i64: 6, 256>}, {transform_indices = @transform_5, window_bounds = array<i64: 3, 256>}]} {
    %c0 = arith.constant 0 : index
    %c0_0 = arith.constant 0 : index
    %c0_1 = arith.constant 0 : index
    %0 = vector.load %arg2[%c0, %c0_0, %c0_1] : memref<1x6x3xf32, #tpu.memory_space<vmem>>, vector<1x6x3xf32>
    %1 = vector.shape_cast %0 : vector<1x6x3xf32> to vector<6x3xf32>
    %2 = arith.truncf %1 : vector<6x3xf32> to vector<6x3xbf16>
    %c0_2 = arith.constant 0 : index
    %c0_3 = arith.constant 0 : index
    %c0_4 = arith.constant 0 : index
    %3 = vector.load %arg3[%c0_2, %c0_3, %c0_4] : memref<1x3x2xf32, #tpu.memory_space<vmem>>, vector<1x3x2xf32>
    %4 = vector.shape_cast %3 : vector<1x3x2xf32> to vector<3x2xf32>
    %5 = arith.truncf %4 : vector<3x2xf32> to vector<3x2xbf16>
    %c0_5 = arith.constant 0 : index
    %c0_6 = arith.constant 0 : index
    %6 = vector.load %arg4[%c0_5, %c0_6] : memref<3x256xbf16, #tpu.memory_space<vmem>>, vector<3x256xbf16>
    %cst = arith.constant dense<0.000000e+00> : vector<6x256xf32>
    %7 = tpu.matmul %2, %6, %cst {dimension_numbers = #tpu.dot_dimension_numbers<[1], [0], [0], [1], [0, 0, 1, 1], [], []>} : vector<6x3xbf16>, vector<3x256xbf16>, vector<6x256xf32> -> vector<6x256xf32>
    %c0_7 = arith.constant 0 : index
    %c0_8 = arith.constant 0 : index
    %8 = vector.load %arg6[%c0_7, %c0_8] : memref<6x256xf32, #tpu.memory_space<vmem>>, vector<6x256xf32>
    tpu.vector_store %arg6[%c0_7, %c0_8], %7 {strides = array<i32>} : memref<6x256xf32, #tpu.memory_space<vmem>>, vector<6x256xf32>,
    %c0_9 = arith.constant 0 : index
    %c0_10 = arith.constant 0 : index
    %9 = vector.load %arg5[%c0_9, %c0_10] : memref<2x256xbf16, #tpu.memory_space<vmem>>, vector<2x256xbf16>
    %cst_11 = arith.constant dense<0.000000e+00> : vector<3x256xf32>
    %10 = tpu.matmul %5, %9, %cst_11 {dimension_numbers = #tpu.dot_dimension_numbers<[1], [0], [0], [1], [0, 0, 1, 1], [], []>} : vector<3x2xbf16>, vector<2x256xbf16>, vector<3x256xf32> -> vector<3x256xf32>
    %c0_12 = arith.constant 0 : index
    %c0_13 = arith.constant 0 : index
    %11 = vector.load %arg7[%c0_12, %c0_13] : memref<3x256xf32, #tpu.memory_space<vmem>>, vector<3x256xf32>
    tpu.vector_store %arg7[%c0_12, %c0_13], %10 {strides = array<i32>} : memref<3x256xf32, #tpu.memory_space<vmem>>, vector<3x256xf32>,
    return
  }
  func.func @transform_0(%arg0: i32, %arg1: i32) -> (i32, i32, i32) {
    %c0_i32 = arith.constant 0 : i32
    %c0_i32_0 = arith.constant 0 : i32
    %c0_i32_1 = arith.constant 0 : i32
    return %arg0, %c0_i32, %c0_i32_0 : i32, i32, i32
  }
  func.func @transform_1(%arg0: i32, %arg1: i32) -> (i32, i32, i32) {
    %c0_i32 = arith.constant 0 : i32
    %c0_i32_0 = arith.constant 0 : i32
    %c0_i32_1 = arith.constant 0 : i32
    return %arg0, %c0_i32, %c0_i32_0 : i32, i32, i32
  }
  func.func @transform_2(%arg0: i32, %arg1: i32) -> (i32, i32) {
    %c1_i32 = arith.constant 1 : i32
    %0 = arith.muli %arg0, %c1_i32 : i32
    %1 = arith.addi %0, %arg1 : i32
    %c0_i32 = arith.constant 0 : i32
    %c0_i32_0 = arith.constant 0 : i32
    return %c0_i32, %1 : i32, i32
  }
  func.func @transform_3(%arg0: i32, %arg1: i32) -> (i32, i32) {
    %c1_i32 = arith.constant 1 : i32
    %0 = arith.muli %arg0, %c1_i32 : i32
    %1 = arith.addi %0, %arg1 : i32
    %c0_i32 = arith.constant 0 : i32
    %c0_i32_0 = arith.constant 0 : i32
    return %c0_i32, %1 : i32, i32
  }
  func.func @transform_4(%arg0: i32, %arg1: i32) -> (i32, i32) {
    %c1_i32 = arith.constant 1 : i32
    %0 = arith.muli %arg0, %c1_i32 : i32
    %1 = arith.addi %0, %arg1 : i32
    %c0_i32 = arith.constant 0 : i32
    %c0_i32_0 = arith.constant 0 : i32
    return %c0_i32, %1 : i32, i32
  }
  func.func @transform_5(%arg0: i32, %arg1: i32) -> (i32, i32) {
    %c1_i32 = arith.constant 1 : i32
    %0 = arith.muli %arg0, %c1_i32 : i32
    %1 = arith.addi %0, %arg1 : i32
    %c0_i32 = arith.constant 0 : i32
    %c0_i32_0 = arith.constant 0 : i32
    return %c0_i32, %1 : i32, i32
  }
}

module attributes {stable_mosaic.version = 11 : i64} {
  func.func @_corr_m_kernel(%arg0: i32, %arg1: i32, %arg2: memref<6x256xbf16, #tpu.memory_space<vmem>>, %arg3: memref<3x256xbf16, #tpu.memory_space<vmem>>, %arg4: memref<2x256xbf16, #tpu.memory_space<vmem>>, %arg5: memref<1x6x3xf32, #tpu.memory_space<vmem>>, %arg6: memref<1x3x2xf32, #tpu.memory_space<vmem>>) attributes {dimension_semantics = [#tpu.dimension_semantics<parallel>, #tpu.dimension_semantics<arbitrary>], iteration_bounds = array<i64: 2, 1>, scalar_prefetch = 0 : i64, scratch_operands = 0 : i64, tpu.core_type = #tpu.core_type<tc>, window_params = [{transform_indices = @transform_0, window_bounds = array<i64: 6, 256>}, {transform_indices = @transform_1, window_bounds = array<i64: 3, 256>}, {transform_indices = @transform_2, window_bounds = array<i64: 2, 256>}, {transform_indices = @transform_3, window_bounds = array<i64: 1, 6, 3>}, {transform_indices = @transform_4, window_bounds = array<i64: 1, 3, 2>}]} {
    %c0_i32 = arith.constant 0 : i32
    %0 = arith.cmpi eq, %arg1, %c0_i32 : i32
    %1 = arith.extui %0 : i1 to i32
    %c0_i32_0 = arith.constant 0 : i32
    %2 = arith.cmpi ne, %1, %c0_i32_0 : i32
    scf.if %2 {
      %cst_19 = arith.constant 0.000000e+00 : f32
      %20 = vector.broadcast %cst_19 : f32 to vector<1x6x3xf32>
      %c0_20 = arith.constant 0 : index
      %c0_21 = arith.constant 0 : index
      %c0_22 = arith.constant 0 : index
      %21 = vector.load %arg5[%c0_20, %c0_21, %c0_22] : memref<1x6x3xf32, #tpu.memory_space<vmem>>, vector<1x6x3xf32>
      tpu.vector_store %arg5[%c0_20, %c0_21, %c0_22], %20 {strides = array<i32>} : memref<1x6x3xf32, #tpu.memory_space<vmem>>, vector<1x6x3xf32>,
      %cst_23 = arith.constant 0.000000e+00 : f32
      %22 = vector.broadcast %cst_23 : f32 to vector<1x3x2xf32>
      %c0_24 = arith.constant 0 : index
      %c0_25 = arith.constant 0 : index
      %c0_26 = arith.constant 0 : index
      %23 = vector.load %arg6[%c0_24, %c0_25, %c0_26] : memref<1x3x2xf32, #tpu.memory_space<vmem>>, vector<1x3x2xf32>
      tpu.vector_store %arg6[%c0_24, %c0_25, %c0_26], %22 {strides = array<i32>} : memref<1x3x2xf32, #tpu.memory_space<vmem>>, vector<1x3x2xf32>,
    } else {
    }
    %c0 = arith.constant 0 : index
    %c0_1 = arith.constant 0 : index
    %3 = vector.load %arg2[%c0, %c0_1] : memref<6x256xbf16, #tpu.memory_space<vmem>>, vector<6x256xbf16>
    %c0_2 = arith.constant 0 : index
    %c0_3 = arith.constant 0 : index
    %4 = vector.load %arg3[%c0_2, %c0_3] : memref<3x256xbf16, #tpu.memory_space<vmem>>, vector<3x256xbf16>
    %c0_4 = arith.constant 0 : index
    %c0_5 = arith.constant 0 : index
    %5 = vector.load %arg4[%c0_4, %c0_5] : memref<2x256xbf16, #tpu.memory_space<vmem>>, vector<2x256xbf16>
    %c0_6 = arith.constant 0 : index
    %c0_7 = arith.constant 0 : index
    %c0_8 = arith.constant 0 : index
    %6 = vector.load %arg5[%c0_6, %c0_7, %c0_8] : memref<1x6x3xf32, #tpu.memory_space<vmem>>, vector<1x6x3xf32>
    %7 = vector.shape_cast %6 : vector<1x6x3xf32> to vector<6x3xf32>
    %cst = arith.constant dense<0.000000e+00> : vector<6x3xf32>
    %8 = tpu.matmul %3, %4, %cst {dimension_numbers = #tpu.dot_dimension_numbers<[1], [1], [0], [0], [0, 0, 1, 0], [], []>} : vector<6x256xbf16>, vector<3x256xbf16>, vector<6x3xf32> -> vector<6x3xf32>
    %9 = arith.addf %7, %8 : vector<6x3xf32>
    %c0_9 = arith.constant 0 : index
    %c0_10 = arith.constant 0 : index
    %c0_11 = arith.constant 0 : index
    %10 = vector.load %arg5[%c0_9, %c0_10, %c0_11] : memref<1x6x3xf32, #tpu.memory_space<vmem>>, vector<1x6x3xf32>
    %11 = vector.shape_cast %10 : vector<1x6x3xf32> to vector<6x3xf32>
    %12 = vector.shape_cast %9 : vector<6x3xf32> to vector<1x6x3xf32>
    tpu.vector_store %arg5[%c0_9, %c0_10, %c0_11], %12 {strides = array<i32>} : memref<1x6x3xf32, #tpu.memory_space<vmem>>, vector<1x6x3xf32>,
    %c0_12 = arith.constant 0 : index
    %c0_13 = arith.constant 0 : index
    %c0_14 = arith.constant 0 : index
    %13 = vector.load %arg6[%c0_12, %c0_13, %c0_14] : memref<1x3x2xf32, #tpu.memory_space<vmem>>, vector<1x3x2xf32>
    %14 = vector.shape_cast %13 : vector<1x3x2xf32> to vector<3x2xf32>
    %cst_15 = arith.constant dense<0.000000e+00> : vector<3x2xf32>
    %15 = tpu.matmul %4, %5, %cst_15 {dimension_numbers = #tpu.dot_dimension_numbers<[1], [1], [0], [0], [0, 0, 1, 0], [], []>} : vector<3x256xbf16>, vector<2x256xbf16>, vector<3x2xf32> -> vector<3x2xf32>
    %16 = arith.addf %14, %15 : vector<3x2xf32>
    %c0_16 = arith.constant 0 : index
    %c0_17 = arith.constant 0 : index
    %c0_18 = arith.constant 0 : index
    %17 = vector.load %arg6[%c0_16, %c0_17, %c0_18] : memref<1x3x2xf32, #tpu.memory_space<vmem>>, vector<1x3x2xf32>
    %18 = vector.shape_cast %17 : vector<1x3x2xf32> to vector<3x2xf32>
    %19 = vector.shape_cast %16 : vector<3x2xf32> to vector<1x3x2xf32>
    tpu.vector_store %arg6[%c0_16, %c0_17, %c0_18], %19 {strides = array<i32>} : memref<1x3x2xf32, #tpu.memory_space<vmem>>, vector<1x3x2xf32>,
    return
  }
  func.func @transform_0(%arg0: i32, %arg1: i32) -> (i32, i32) {
    %c1_i32 = arith.constant 1 : i32
    %0 = arith.muli %arg0, %c1_i32 : i32
    %1 = arith.addi %0, %arg1 : i32
    %c0_i32 = arith.constant 0 : i32
    %c0_i32_0 = arith.constant 0 : i32
    return %c0_i32, %1 : i32, i32
  }
  func.func @transform_1(%arg0: i32, %arg1: i32) -> (i32, i32) {
    %c1_i32 = arith.constant 1 : i32
    %0 = arith.muli %arg0, %c1_i32 : i32
    %1 = arith.addi %0, %arg1 : i32
    %c0_i32 = arith.constant 0 : i32
    %c0_i32_0 = arith.constant 0 : i32
    return %c0_i32, %1 : i32, i32
  }
  func.func @transform_2(%arg0: i32, %arg1: i32) -> (i32, i32) {
    %c1_i32 = arith.constant 1 : i32
    %0 = arith.muli %arg0, %c1_i32 : i32
    %1 = arith.addi %0, %arg1 : i32
    %c0_i32 = arith.constant 0 : i32
    %c0_i32_0 = arith.constant 0 : i32
    return %c0_i32, %1 : i32, i32
  }
  func.func @transform_3(%arg0: i32, %arg1: i32) -> (i32, i32, i32) {
    %c0_i32 = arith.constant 0 : i32
    %c0_i32_0 = arith.constant 0 : i32
    %c0_i32_1 = arith.constant 0 : i32
    return %arg0, %c0_i32, %c0_i32_0 : i32, i32, i32
  }
  func.func @transform_4(%arg0: i32, %arg1: i32) -> (i32, i32, i32) {
    %c0_i32 = arith.constant 0 : i32
    %c0_i32_0 = arith.constant 0 : i32
    %c0_i32_1 = arith.constant 0 : i32
    return %arg0, %c0_i32, %c0_i32_0 : i32, i32, i32
  }
}

module attributes {stable_mosaic.version = 11 : i64} {
  func.func @kernel(%arg0: i32, %arg1: i32, %arg2: i32, %arg3: memref<16x112xbf16, #tpu.memory_space<vmem>>, %arg4: memref<112x256xbf16, #tpu.memory_space<vmem>>, %arg5: memref<16x256xbf16, #tpu.memory_space<vmem>>, %arg6: memref<16x256xf32, #tpu.memory_space<vmem>>) attributes {dimension_semantics = [#tpu.dimension_semantics<parallel>, #tpu.dimension_semantics<parallel>, #tpu.dimension_semantics<arbitrary>], iteration_bounds = array<i64: 1, 2, 1>, scalar_prefetch = 0 : i64, scratch_operands = 1 : i64, tpu.core_type = #tpu.core_type<tc>, window_params = [{transform_indices = @transform_0, window_bounds = array<i64: 16, 112>}, {transform_indices = @transform_1, window_bounds = array<i64: 112, 256>}, {transform_indices = @transform_2, window_bounds = array<i64: 16, 256>}]} {
    %c0_i32 = arith.constant 0 : i32
    %0 = arith.cmpi eq, %arg2, %c0_i32 : i32
    %1 = arith.extui %0 : i1 to i32
    %c0_i32_0 = arith.constant 0 : i32
    %2 = arith.cmpi ne, %1, %c0_i32_0 : i32
    scf.if %2 {
      %cst_10 = arith.constant 0.000000e+00 : f32
      %12 = vector.broadcast %cst_10 : f32 to vector<16x256xf32>
      %c0_11 = arith.constant 0 : index
      %c0_12 = arith.constant 0 : index
      %13 = vector.load %arg6[%c0_11, %c0_12] : memref<16x256xf32, #tpu.memory_space<vmem>>, vector<16x256xf32>
      tpu.vector_store %arg6[%c0_11, %c0_12], %12 {strides = array<i32>} : memref<16x256xf32, #tpu.memory_space<vmem>>, vector<16x256xf32>,
    } else {
    }
    %c0 = arith.constant 0 : index
    %c0_1 = arith.constant 0 : index
    %3 = vector.load %arg6[%c0, %c0_1] : memref<16x256xf32, #tpu.memory_space<vmem>>, vector<16x256xf32>
    %c0_2 = arith.constant 0 : index
    %c0_3 = arith.constant 0 : index
    %4 = vector.load %arg3[%c0_2, %c0_3] : memref<16x112xbf16, #tpu.memory_space<vmem>>, vector<16x112xbf16>
    %c0_4 = arith.constant 0 : index
    %c0_5 = arith.constant 0 : index
    %5 = vector.load %arg4[%c0_4, %c0_5] : memref<112x256xbf16, #tpu.memory_space<vmem>>, vector<112x256xbf16>
    %cst = arith.constant dense<0.000000e+00> : vector<16x256xf32>
    %6 = tpu.matmul %4, %5, %cst {dimension_numbers = #tpu.dot_dimension_numbers<[1], [0], [0], [1], [0, 0, 1, 1], [], []>} : vector<16x112xbf16>, vector<112x256xbf16>, vector<16x256xf32> -> vector<16x256xf32>
    %7 = arith.addf %3, %6 : vector<16x256xf32>
    %c0_6 = arith.constant 0 : index
    %c0_7 = arith.constant 0 : index
    %8 = vector.load %arg6[%c0_6, %c0_7] : memref<16x256xf32, #tpu.memory_space<vmem>>, vector<16x256xf32>
    tpu.vector_store %arg6[%c0_6, %c0_7], %7 {strides = array<i32>} : memref<16x256xf32, #tpu.memory_space<vmem>>, vector<16x256xf32>,
    %c0_i32_8 = arith.constant 0 : i32
    %9 = arith.cmpi eq, %arg2, %c0_i32_8 : i32
    %10 = arith.extui %9 : i1 to i32
    %c0_i32_9 = arith.constant 0 : i32
    %11 = arith.cmpi ne, %10, %c0_i32_9 : i32
    scf.if %11 {
      %c0_10 = arith.constant 0 : index
      %c0_11 = arith.constant 0 : index
      %12 = vector.load %arg6[%c0_10, %c0_11] : memref<16x256xf32, #tpu.memory_space<vmem>>, vector<16x256xf32>
      %13 = arith.truncf %12 : vector<16x256xf32> to vector<16x256xbf16>
      %c0_12 = arith.constant 0 : index
      %c0_13 = arith.constant 0 : index
      %14 = vector.load %arg5[%c0_12, %c0_13] : memref<16x256xbf16, #tpu.memory_space<vmem>>, vector<16x256xbf16>
      tpu.vector_store %arg5[%c0_12, %c0_13], %13 {strides = array<i32>} : memref<16x256xbf16, #tpu.memory_space<vmem>>, vector<16x256xbf16>,
    } else {
    }
    return
  }
  func.func @transform_0(%arg0: i32, %arg1: i32, %arg2: i32) -> (i32, i32) {
    %c0_i32 = arith.constant 0 : i32
    return %arg0, %arg2 : i32, i32
  }
  func.func @transform_1(%arg0: i32, %arg1: i32, %arg2: i32) -> (i32, i32) {
    %c0_i32 = arith.constant 0 : i32
    return %arg2, %arg1 : i32, i32
  }
  func.func @transform_2(%arg0: i32, %arg1: i32, %arg2: i32) -> (i32, i32) {
    %c0_i32 = arith.constant 0 : i32
    return %arg0, %arg1 : i32, i32
  }
}

module attributes {stable_mosaic.version = 11 : i64} {
  func.func @kernel(%arg0: i32, %arg1: i32, %arg2: i32, %arg3: memref<16x96xbf16, #tpu.memory_space<vmem>>, %arg4: memref<96x256xbf16, #tpu.memory_space<vmem>>, %arg5: memref<1xf32, #tpu.memory_space<smem>>, %arg6: memref<16x256xbf16, #tpu.memory_space<vmem>>, %arg7: memref<16x256xf32, #tpu.memory_space<vmem>>) attributes {dimension_semantics = [#tpu.dimension_semantics<parallel>, #tpu.dimension_semantics<parallel>, #tpu.dimension_semantics<arbitrary>], iteration_bounds = array<i64: 1, 2, 1>, scalar_prefetch = 0 : i64, scratch_operands = 1 : i64, tpu.core_type = #tpu.core_type<tc>, window_params = [{transform_indices = @transform_0, window_bounds = array<i64: 16, 96>}, {transform_indices = @transform_1, window_bounds = array<i64: 96, 256>}, {transform_indices = @transform_2, window_bounds = array<i64: 1>}, {transform_indices = @transform_3, window_bounds = array<i64: 16, 256>}]} {
    %c0_i32 = arith.constant 0 : i32
    %0 = arith.cmpi eq, %arg2, %c0_i32 : i32
    %1 = arith.extui %0 : i1 to i32
    %c0_i32_0 = arith.constant 0 : i32
    %2 = arith.cmpi ne, %1, %c0_i32_0 : i32
    scf.if %2 {
      %cst_10 = arith.constant 0.000000e+00 : f32
      %12 = vector.broadcast %cst_10 : f32 to vector<16x256xf32>
      %c0_11 = arith.constant 0 : index
      %c0_12 = arith.constant 0 : index
      %13 = vector.load %arg7[%c0_11, %c0_12] : memref<16x256xf32, #tpu.memory_space<vmem>>, vector<16x256xf32>
      tpu.vector_store %arg7[%c0_11, %c0_12], %12 {strides = array<i32>} : memref<16x256xf32, #tpu.memory_space<vmem>>, vector<16x256xf32>,
    } else {
    }
    %c0 = arith.constant 0 : index
    %c0_1 = arith.constant 0 : index
    %3 = vector.load %arg7[%c0, %c0_1] : memref<16x256xf32, #tpu.memory_space<vmem>>, vector<16x256xf32>
    %c0_2 = arith.constant 0 : index
    %c0_3 = arith.constant 0 : index
    %4 = vector.load %arg3[%c0_2, %c0_3] : memref<16x96xbf16, #tpu.memory_space<vmem>>, vector<16x96xbf16>
    %c0_4 = arith.constant 0 : index
    %c0_5 = arith.constant 0 : index
    %5 = vector.load %arg4[%c0_4, %c0_5] : memref<96x256xbf16, #tpu.memory_space<vmem>>, vector<96x256xbf16>
    %cst = arith.constant dense<0.000000e+00> : vector<16x256xf32>
    %6 = tpu.matmul %4, %5, %cst {dimension_numbers = #tpu.dot_dimension_numbers<[1], [0], [0], [1], [0, 0, 1, 1], [], []>} : vector<16x96xbf16>, vector<96x256xbf16>, vector<16x256xf32> -> vector<16x256xf32>
    %7 = arith.addf %3, %6 : vector<16x256xf32>
    %c0_6 = arith.constant 0 : index
    %c0_7 = arith.constant 0 : index
    %8 = vector.load %arg7[%c0_6, %c0_7] : memref<16x256xf32, #tpu.memory_space<vmem>>, vector<16x256xf32>
    tpu.vector_store %arg7[%c0_6, %c0_7], %7 {strides = array<i32>} : memref<16x256xf32, #tpu.memory_space<vmem>>, vector<16x256xf32>,
    %c0_i32_8 = arith.constant 0 : i32
    %9 = arith.cmpi eq, %arg2, %c0_i32_8 : i32
    %10 = arith.extui %9 : i1 to i32
    %c0_i32_9 = arith.constant 0 : i32
    %11 = arith.cmpi ne, %10, %c0_i32_9 : i32
    scf.if %11 {
      %c0_10 = arith.constant 0 : index
      %c0_11 = arith.constant 0 : index
      %12 = vector.load %arg7[%c0_10, %c0_11] : memref<16x256xf32, #tpu.memory_space<vmem>>, vector<16x256xf32>
      %c0_12 = arith.constant 0 : index
      %13 = memref.load %arg5[%c0_12] : memref<1xf32, #tpu.memory_space<smem>>
      %cst_13 = arith.constant 0.000000e+00 : f32
      %14 = vector.broadcast %cst_13 : f32 to vector<16x256xf32>
      %15 = arith.cmpf oge, %12, %14 : vector<16x256xf32>
      %16 = vector.broadcast %13 : f32 to vector<16x256xf32>
      %17 = arith.mulf %16, %12 : vector<16x256xf32>
      %18 = arith.select %15, %12, %17 : vector<16x256xi1>, vector<16x256xf32>
      %19 = arith.truncf %18 : vector<16x256xf32> to vector<16x256xbf16>
      %c0_14 = arith.constant 0 : index
      %c0_15 = arith.constant 0 : index
      %20 = vector.load %arg6[%c0_14, %c0_15] : memref<16x256xbf16, #tpu.memory_space<vmem>>, vector<16x256xbf16>
      tpu.vector_store %arg6[%c0_14, %c0_15], %19 {strides = array<i32>} : memref<16x256xbf16, #tpu.memory_space<vmem>>, vector<16x256xbf16>,
    } else {
    }
    return
  }
  func.func @transform_0(%arg0: i32, %arg1: i32, %arg2: i32) -> (i32, i32) {
    %c0_i32 = arith.constant 0 : i32
    return %arg0, %arg2 : i32, i32
  }
  func.func @transform_1(%arg0: i32, %arg1: i32, %arg2: i32) -> (i32, i32) {
    %c0_i32 = arith.constant 0 : i32
    return %arg2, %arg1 : i32, i32
  }
  func.func @transform_2(%arg0: i32, %arg1: i32, %arg2: i32) -> i32 {
    %c0_i32 = arith.constant 0 : i32
    %c0_i32_0 = arith.constant 0 : i32
    return %c0_i32 : i32
  }
  func.func @transform_3(%arg0: i32, %arg1: i32, %arg2: i32) -> (i32, i32) {
    %c0_i32 = arith.constant 0 : i32
    return %arg0, %arg1 : i32, i32
  }
}

</mosaic_0001>

<llo_original>
// kernel: lcab_apply.12
$region0: #{lcab_apply.12}
  #allocation0 [shape = 'u32[]', space=smem, size = 0x4, offset = 0x4, fixed_abs, tag = 'smem constant byte address 0x4 - core index']
  #allocation1 [shape = 'u32[144,128]{1,0:T(1,128)}', space=vmem, size = 0x12000, scoped, tag = 'internal scratch']
  #allocation2 [shape = 'f32[16,256]{1,0:T(8,128)}', space=vmem, size = 0x4000, scoped, tag = 'scratch operand']
  #allocation3 [shape = 'f32[1]{0:T(128)S(6)}', space=smem, size = 0x200, scoped, tag = 'scoped memory for lcab_apply.12']
  %s0 = inlined_call_operand.vmem [shape: bf16[16,64], index: 0, kind: input, shape index: {}]
  %s1 = inlined_call_operand.vmem [shape: bf16[64,512], index: 1, kind: input, shape index: {}]
  %s2 = inlined_call_operand.<no memory space> [shape: f32[1], index: 2, kind: input, shape index: {}]
  %s3 = inlined_call_operand.vmem [shape: bf16[16,512], index: 3, kind: output, shape index: {}]
  %s4 = sld [smem:[#allocation0]]
  $region125: #{lcab_apply.12} parent=0
    _
  %s6 = ssub.s32 1, %s4
  %s7 = scalar_select 0, %s6, %s4
  %8 = sst [smem:[#allocation3]] %s2
  $region1: #{lcab_apply.12} parent=0
    #allocation4 [shape = 'u8[65536]{0}', space=vmem, size = 0x10000, scoped, tag = 'input window, operand 1']
    #allocation5 [shape = 'u8[16384]{0}', space=vmem, size = 0x4000, scoped, tag = 'output window, operand 0']
    loop: start=0, step=1, limit=4
    $region2: #{lcab_apply.12} parent=1 // loop_pre_header
      _
    $region3: #{lcab_apply.12} parent=1 // loop_header
      %s10 = sphi 0, %s14
      %p11 = scmp.ge.s32.totalorder %s10, 4
      %s17 = sphi 0, %s36
      %s18 = sphi 0, %s32
      %s19 = sphi 0, %s28
      %s20 = sphi 0, %s17
      %s21 = sphi 0, %s18
      %s22 = sphi 0, %s19
      %s23 = sphi 0, %s20
      %s24 = sphi 0, %s21
      %s25 = sphi 0, %s22
      %s41 = sphi 0, %s43
      %s44 = sphi 0, %s41
      %s45 = sphi 0, %s44
      %s61 = sphi 0, %s45
      %s69 = sphi 0, %s71
      %s72 = sphi 0, %s69
      %s73 = sphi 0, %s72
      %s89 = sphi 0, %s73
      %s93 = sphi 0, %s93
      %s95 = sphi 0, %s93
      %s96 = sphi 0, %s95
      %s110 = sphi 0, %s96
      %s118 = sphi 0, %s120
      %s121 = sphi 0, %s118
      %s122 = sphi 0, %s121
      %s138 = sphi 0, %s122
    $region4: #{lcab_apply.12} parent=1 // loop_header_branch
      %13 = sbr.rel (%p11) target = $region8
    $region5: #{lcab_apply.12} parent=1 // loop_body
      %s15 = ssub.s32 %s10, 1
      %s16 = ssub.s32 %s10, 2
      %s26 = sadd.s32 1, %s19
      %p27 = scmp.ge.s32.totalorder %s26, 1
      %s28 = scalar_select %p27, 0, %s26
      %s29 = sadd.s32 1, %s18
      %s30 = scalar_select %p27, %s29, %s18
      %p31 = scmp.ge.s32.totalorder %s30, 2
      %s32 = scalar_select %p31, 0, %s30
      %s33 = sadd.s32 1, %s17
      %s34 = scalar_select %p31, %s33, %s17
      %p35 = scmp.ge.s32.totalorder %s34, 1
      %s36 = scalar_select %p35, 0, %s34
      %s37 = ssub.s32 %s17, %s36
      %s38 = ssub.s32 %s19, %s28
      %s39 = sor.u32 %s37, %s38
      %p40 = scmp.eq.s32.totalorder %s39, 0
      %s42 = sadd.s32 %s41, 1
      %s43 = scalar_select %p40, %s41, %s42
      %p46 = pneg %p40
      %p47 = scmp.eq.s32.totalorder %s10, 1
      %p48 = por %p46, %p47
      %p49 = scmp.ne.s32.totalorder %s41, %s44
      %p50 = scmp.eq.s32.totalorder %s10, 0
      %p51 = por %p49, %p50
      %p52 = scmp.ne.s32.totalorder %s41, %s44
      %p53 = scmp.eq.s32.totalorder %s15, 1
      %p54 = por %p52, %p53
      %p55 = scmp.ne.s32.totalorder %s44, %s45
      %p56 = scmp.eq.s32.totalorder %s15, 0
      %p57 = por %p55, %p56
      %p58 = scmp.ne.s32.totalorder %s44, %s45
      %p59 = scmp.eq.s32.totalorder %s16, 1
      %p60 = por %p58, %p59
      %p62 = scmp.ne.s32.totalorder %s45, %s61
      %p63 = scmp.eq.s32.totalorder %s16, 0
      %p64 = por %p62, %p63
      %s65 = ssub.s32 %s19, %s28
      %s66 = ssub.s32 %s18, %s32
      %s67 = sor.u32 %s65, %s66
      %p68 = scmp.eq.s32.totalorder %s67, 0
      %s70 = sadd.s32 %s69, 1
      %s71 = scalar_select %p68, %s69, %s70
      %p74 = pneg %p68
      %p75 = scmp.eq.s32.totalorder %s10, 1
      %p76 = por %p74, %p75
      %p77 = scmp.ne.s32.totalorder %s69, %s72
      %p78 = scmp.eq.s32.totalorder %s10, 0
      %p79 = por %p77, %p78
      %p80 = scmp.ne.s32.totalorder %s69, %s72
      %p81 = scmp.eq.s32.totalorder %s15, 1
      %p82 = por %p80, %p81
      %p83 = scmp.ne.s32.totalorder %s72, %s73
      %p84 = scmp.eq.s32.totalorder %s15, 0
      %p85 = por %p83, %p84
      %p86 = scmp.ne.s32.totalorder %s72, %s73
      %p87 = scmp.eq.s32.totalorder %s16, 1
      %p88 = por %p86, %p87
      %p90 = scmp.ne.s32.totalorder %s73, %s89
      %p91 = scmp.eq.s32.totalorder %s16, 0
      %p92 = por %p90, %p91
      %s94 = sadd.s32 %s93, 1
      %p97 = scmp.eq.s32.totalorder %s10, 1
      %p98 = scmp.ne.s32.totalorder %s93, %s95
      %p99 = scmp.eq.s32.totalorder %s10, 0
      %p100 = por %p98, %p99
      %p101 = scmp.ne.s32.totalorder %s93, %s95
      %p102 = scmp.eq.s32.totalorder %s15, 1
      %p103 = por %p101, %p102
      %p104 = scmp.ne.s32.totalorder %s95, %s96
      %p105 = scmp.eq.s32.totalorder %s15, 0
      %p106 = por %p104, %p105
      %p107 = scmp.ne.s32.totalorder %s95, %s96
      %p108 = scmp.eq.s32.totalorder %s16, 1
      %p109 = por %p107, %p108
      %p111 = scmp.ne.s32.totalorder %s96, %s110
      %p112 = scmp.eq.s32.totalorder %s16, 0
      %p113 = por %p111, %p112
      %s114 = ssub.s32 %s17, %s36
      %s115 = ssub.s32 %s18, %s32
      %s116 = sor.u32 %s114, %s115
      %p117 = scmp.eq.s32.totalorder %s116, 0
      %s119 = sadd.s32 %s118, 1
      %s120 = scalar_select %p117, %s118, %s119
      %p123 = pneg %p117
      %p124 = scmp.eq.s32.totalorder %s10, 1
      %p125 = por %p123, %p124
      %p126 = scmp.ne.s32.totalorder %s118, %s121
      %p127 = scmp.eq.s32.totalorder %s10, 0
      %p128 = por %p126, %p127
      %p129 = scmp.ne.s32.totalorder %s118, %s121
      %p130 = scmp.eq.s32.totalorder %s15, 1
      %p131 = por %p129, %p130
      %p132 = scmp.ne.s32.totalorder %s121, %s122
      %p133 = scmp.eq.s32.totalorder %s15, 0
      %p134 = por %p132, %p133
      %p135 = scmp.ne.s32.totalorder %s121, %s122
      %p136 = scmp.eq.s32.totalorder %s16, 1
      %p137 = por %p135, %p136
      %p139 = scmp.ne.s32.totalorder %s122, %s138
      %p140 = scmp.eq.s32.totalorder %s16, 0
      %p141 = por %p139, %p140
      %p142 = scmp.le.s32.totalorder 1, %s10
      %p143 = scmp.lt.s32.totalorder %s10, 3
      %p144 = pnand %p142, %p143
      %p145 = pneg %p144
      // Predicated region
      $region9: #{lcab_apply.12} parent=5 // pred_check
        _
      $region10: #{lcab_apply.12} parent=5 // pred_check_branch
        %147 = sbr.rel (%p144) target = $region12
      $region11: #{lcab_apply.12} parent=5 // pred_region
        %s148 = ssub.s32 %s10, 1
        // Predicated region
        $region13: #{lcab_apply.12} parent=11 // pred_check
          %p149 = pneg %p57
        $region14: #{lcab_apply.12} parent=11 // pred_check_branch
          %151 = sbr.rel (%p149) target = $region16
        $region15: #{lcab_apply.12} parent=11 // pred_region
          %s152 = smul.u32 2, %s20
          %p153 = scmp.lt.s32.totalorder %s152, 1
          %s154 = scalar_select %p153, %s152, 1
          %p155 = scmp.lt.s32.totalorder %s22, 0
          %s156 = scalar_select %p155, %s22, 0
          %s157 = sadd.s32 %s156, %s154
          %s158 = smul.addr %s157, 4
          %s159 = scalar_lea.vmem %s0, %s158
          %s160 = smul.u32 2, %s20
        $region16: #{lcab_apply.12} parent=11 // pred_fallthru
          _
        // Predicated region
        $region17: #{lcab_apply.12} parent=11 // pred_check
          %p161 = pneg %p106
        $region18: #{lcab_apply.12} parent=11 // pred_check_branch
          %163 = sbr.rel (%p161) target = $region20
        $region19: #{lcab_apply.12} parent=11 // pred_region
          _
        $region20: #{lcab_apply.12} parent=11 // pred_fallthru
          _
      $region12: #{lcab_apply.12} parent=5 // pred_fallthru
        _
      %p164 = scmp.lt.s32.totalorder %s10, 2
      // Predicated region
      $region21: #{lcab_apply.12} parent=5 // pred_check
        %p165 = pneg %p164
      $region22: #{lcab_apply.12} parent=5 // pred_check_branch
        %167 = sbr.rel (%p165) target = $region24
      $region23: #{lcab_apply.12} parent=5 // pred_region
        // Predicated region
        $region25: #{lcab_apply.12} parent=23 // pred_check
          %p168 = pneg %p79
        $region26: #{lcab_apply.12} parent=23 // pred_check_branch
          %170 = sbr.rel (%p168) target = $region28
        $region27: #{lcab_apply.12} parent=23 // pred_region
          %s171 = sand.u32 %s69, 1
          %s172 = sand.u32 %s69, 1
          %s173 = smul.addr %s172, 64
          %s174 = scalar_lea.vmem [#allocation4], %s173
          %s175 = smul.u32 8, %s19
          %s176 = smul.u32 2, %s18
          %s177 = smul.addr %s175, 4
          %s178 = sadd.s32 %s176, %s177
          %s179 = smul.addr %s178, 4
          %s180 = scalar_lea.vmem %s1, %s179
          // Predicated region
          $region29: #{lcab_apply.12} parent=27 // pred_check
            _
          $region30: #{lcab_apply.12} parent=27 // pred_check_branch
            %182 = sbr.rel (0) target = $region32
          $region31: #{lcab_apply.12} parent=27 // pred_region
            // Predicated region
            $region33: #{lcab_apply.12} parent=31 // pred_check
              _
            $region34: #{lcab_apply.12} parent=31 // pred_check_branch
              %184 = sbr.rel (0) target = $region36
            $region35: #{lcab_apply.12} parent=31 // pred_region
              // Predicated region
              $region48: #{lcab_apply.12} parent=35 // pred_check
                _
              $region49: #{lcab_apply.12} parent=35 // pred_check_branch
                %214 = sbr.rel (0) target = $region51
              $region50: #{lcab_apply.12} parent=35 // pred_region
                loop: start=0, step=1, limit=1
                $region52: #{lcab_apply.12} parent=50 // loop_pre_header
                  _
                $region53: #{lcab_apply.12} parent=50 // loop_header
                  %s216 = sphi 0, %s220
                  %p217 = scmp.ge.s32.totalorder %s216, 1
                  %s221 = sphi %s180, %s180
                  %s222 = sphi %s174, %s174
                $region54: #{lcab_apply.12} parent=50 // loop_header_branch
                  %219 = sbr.rel (%p217) target = $region58
                $region55: #{lcab_apply.12} parent=50 // loop_body
                  %v223 = vld [vmem:[%s221] sm:$0xff]
                  %224 = vst [vmem:[%s222] sm:$0xff] %v223
                  %v225 = vld [vmem:[%s221 + $0x10] sm:$0xff]
                  %226 = vst [vmem:[%s222 + $0x8] sm:$0xff] %v225
                  %v227 = vld [vmem:[%s221 + $0x20] sm:$0xff]
                  %228 = vst [vmem:[%s222 + $0x10] sm:$0xff] %v227
                  %v229 = vld [vmem:[%s221 + $0x30] sm:$0xff]
                  %230 = vst [vmem:[%s222 + $0x18] sm:$0xff] %v229
                  %v231 = vld [vmem:[%s221 + $0x40] sm:$0xff]
                  %232 = vst [vmem:[%s222 + $0x20] sm:$0xff] %v231
                  %v233 = vld [vmem:[%s221 + $0x50] sm:$0xff]
                  %234 = vst [vmem:[%s222 + $0x28] sm:$0xff] %v233
                  %v235 = vld [vmem:[%s221 + $0x60] sm:$0xff]
                  %236 = vst [vmem:[%s222 + $0x30] sm:$0xff] %v235
                  %v237 = vld [vmem:[%s221 + $0x70] sm:$0xff]
                  %238 = vst [vmem:[%s222 + $0x38] sm:$0xff] %v237
                $region56: #{lcab_apply.12} parent=50 // loop_footer
                  %s220 = sadd.s32 1, %s216
                $region57: #{lcab_apply.12} parent=50 // loop_footer_branch
                  %215 = sbr.rel target = $region53
                $region58: #{lcab_apply.12} parent=50 // loop_exit
                  _
              $region51: #{lcab_apply.12} parent=35 // pred_fallthru
                _
              // Predicated region
              $region59: #{lcab_apply.12} parent=35 // pred_check
                _
              $region60: #{lcab_apply.12} parent=35 // pred_check_branch
                %240 = sbr.rel target = $region62
              $region61: #{lcab_apply.12} parent=35 // pred_region
                _
              $region62: #{lcab_apply.12} parent=35 // pred_fallthru
                _
            $region36: #{lcab_apply.12} parent=31 // pred_fallthru
              _
            // Predicated region
            $region37: #{lcab_apply.12} parent=31 // pred_check
              _
            $region38: #{lcab_apply.12} parent=31 // pred_check_branch
              %186 = sbr.rel target = $region40
            $region39: #{lcab_apply.12} parent=31 // pred_region
              %s188 = ssub.s32 256, 1
              loop: start=0, step=1, limit=1
              $region41: #{lcab_apply.12} parent=39 // loop_pre_header
                _
              $region42: #{lcab_apply.12} parent=39 // loop_header
                %s190 = sphi 0, %s194
                %p191 = scmp.ge.s32.totalorder %s190, 1
                %s195 = sphi %s180, %s180
                %s196 = sphi %s174, %s174
              $region43: #{lcab_apply.12} parent=39 // loop_header_branch
                %193 = sbr.rel (%p191) target = $region47
              $region44: #{lcab_apply.12} parent=39 // loop_body
                %v197 = vld [vmem:[%s195] sm:%s188]
                %198 = vst [vmem:[%s196] sm:%s188] %v197
                %v199 = vld [vmem:[%s195 + $0x10] sm:%s188]
                %200 = vst [vmem:[%s196 + $0x8] sm:%s188] %v199
                %v201 = vld [vmem:[%s195 + $0x20] sm:%s188]
                %202 = vst [vmem:[%s196 + $0x10] sm:%s188] %v201
                %v203 = vld [vmem:[%s195 + $0x30] sm:%s188]
                %204 = vst [vmem:[%s196 + $0x18] sm:%s188] %v203
                %v205 = vld [vmem:[%s195 + $0x40] sm:%s188]
                %206 = vst [vmem:[%s196 + $0x20] sm:%s188] %v205
                %v207 = vld [vmem:[%s195 + $0x50] sm:%s188]
                %208 = vst [vmem:[%s196 + $0x28] sm:%s188] %v207
                %v209 = vld [vmem:[%s195 + $0x60] sm:%s188]
                %210 = vst [vmem:[%s196 + $0x30] sm:%s188] %v209
                %v211 = vld [vmem:[%s195 + $0x70] sm:%s188]
                %212 = vst [vmem:[%s196 + $0x38] sm:%s188] %v211
              $region45: #{lcab_apply.12} parent=39 // loop_footer
                %s194 = sadd.s32 1, %s190
              $region46: #{lcab_apply.12} parent=39 // loop_footer_branch
                %189 = sbr.rel target = $region42
              $region47: #{lcab_apply.12} parent=39 // loop_exit
                _
            $region40: #{lcab_apply.12} parent=31 // pred_fallthru
              _
          $region32: #{lcab_apply.12} parent=27 // pred_fallthru
            _
          %241 = vnop
        $region28: #{lcab_apply.12} parent=23 // pred_fallthru
          _
      $region24: #{lcab_apply.12} parent=5 // pred_fallthru
        _
      %p242 = scmp.le.s32.totalorder 1, %s10
      %p243 = scmp.lt.s32.totalorder %s10, 3
      %p244 = pnand %p242, %p243
      %p245 = pneg %p244
      // Predicated region
      $region63: #{lcab_apply.12} parent=5 // pred_check
        _
      $region64: #{lcab_apply.12} parent=5 // pred_check_branch
        %247 = sbr.rel (%p244) target = $region66
      $region65: #{lcab_apply.12} parent=5 // pred_region
        %s248 = ssub.s32 %s10, 1
        %s249 = sand.u32 %s72, 1
        %s250 = sand.u32 %s72, 1
        %s251 = smul.addr %s250, 64
        %s252 = scalar_lea.vmem [#allocation4], %s251
        // Predicated region
        $region67: #{lcab_apply.12} parent=65 // pred_check
          %p253 = pneg %p85
        $region68: #{lcab_apply.12} parent=65 // pred_check_branch
          %255 = sbr.rel (%p253) target = $region70
        $region69: #{lcab_apply.12} parent=65 // pred_region
          _
        $region70: #{lcab_apply.12} parent=65 // pred_fallthru
          _
        %s256 = smul.u32 2, %s20
        %p257 = scmp.lt.s32.totalorder %s256, 1
        %s258 = scalar_select %p257, %s256, 1
        %p259 = scmp.lt.s32.totalorder %s22, 0
        %s260 = scalar_select %p259, %s22, 0
        %s261 = sadd.s32 %s260, %s258
        %s262 = smul.addr %s261, 4
        %s263 = scalar_lea.vmem %s0, %s262
        %p264 = pneg %p57
        %p265 = pneg %p54
        %s266 = sand.u32 %s72, 1
        %s267 = sand.u32 %s72, 1
        %s268 = smul.addr %s267, 64
        %s269 = scalar_lea.vmem [#allocation4], %s268
        %p270 = pneg %p85
        %p271 = pneg %p82
        %p272 = pneg %p106
        %p273 = pneg %p103
        %p274 = pneg %p134
        %p275 = pneg %p131
        %s276 = sand.u32 %s121, 1
        %s277 = sand.u32 %s121, 1
        %s278 = smul.addr %s277, 16
        %s279 = scalar_lea.vmem [#allocation5], %s278
        %s280 = smul.u32 2, %s20
        %p281 = scmp.lt.s32.totalorder %s280, 1
        %s282 = scalar_select %p281, %s280, 1
        %p283 = scmp.lt.s32.totalorder %s22, 0
        %s284 = scalar_select %p283, %s22, 0
        %s285 = sadd.s32 %s284, %s282
        %s286 = smul.addr %s285, 4
        %s287 = scalar_lea.vmem %s0, %s286
        %s288 = smul.u32 2, %s20
        %s289 = smul.u32 8, %s22
        %s290 = smul.u32 2, %s21
        %s291 = smul.u32 2, %s20
        %s292 = smul.u32 2, %s21
        %p294 = scmp.eq.s32.totalorder %s22, 0
        // Predicated region
        $region71: #{lcab_apply.12} parent=65 // pred_check
          %p295 = pneg %p294
        $region72: #{lcab_apply.12} parent=65 // pred_check_branch
          %297 = sbr.rel (%p295) target = $region74
        $region73: #{lcab_apply.12} parent=65 // pred_region
          %298 = vst [vmem:[#allocation2] sm:$0xff] 0.0
          %299 = vst [vmem:[#allocation2 + $0x8] sm:$0xff] 0.0
          %300 = vst [vmem:[#allocation2 + $0x10] sm:$0xff] 0.0
          %301 = vst [vmem:[#allocation2 + $0x18] sm:$0xff] 0.0
        $region74: #{lcab_apply.12} parent=65 // pred_fallthru
          _
        %v302 = vld [vmem:[#allocation2] sm:$0xff]
        %v303 = vld [vmem:[#allocation2 + $0x8] sm:$0xff]
        %v304 = vld [vmem:[#allocation2 + $0x10] sm:$0xff]
        %v305 = vld [vmem:[#allocation2 + $0x18] sm:$0xff]
        %v306 = vld [vmem:[%s287] sm:$0xf]
        %v307 = vld [vmem:[%s287 + $0x4] sm:$0xf]
        %v308 = vld [vmem:[%s252] sm:$0xff]
        %v309 = vld [vmem:[%s252 + $0x8] sm:$0xff]
        %v310 = vld [vmem:[%s252 + $0x10] sm:$0xff]
        %v311 = vld [vmem:[%s252 + $0x18] sm:$0xff]
        %v312 = vld [vmem:[%s252 + $0x20] sm:$0xff]
        %v313 = vld [vmem:[%s252 + $0x28] sm:$0xff]
        %v314 = vld [vmem:[%s252 + $0x30] sm:$0xff]
        %v315 = vld [vmem:[%s252 + $0x38] sm:$0xff]
        %v318 = vunpack.c.l.b16 %v306
        %v319 = vunpack.c.l.b16 %v307
        %v320 = vpack.c.b16 %v319, %v318
        %v329 = vunpack.c.l.b16 %v308
        %v330 = vunpack.c.h.b16 %v308
        %v331 = vunpack.c.l.b16 %v309
        %v332 = vunpack.c.h.b16 %v309
        %v333 = vunpack.c.l.b16 %v310
        %v334 = vunpack.c.h.b16 %v310
        %v335 = vunpack.c.l.b16 %v311
        %v336 = vunpack.c.h.b16 %v311
        %v337 = vunpack.c.l.b16 %v312
        %v338 = vunpack.c.h.b16 %v312
        %v339 = vunpack.c.l.b16 %v313
        %v340 = vunpack.c.h.b16 %v313
        %v341 = vunpack.c.l.b16 %v314
        %v342 = vunpack.c.h.b16 %v314
        %v343 = vunpack.c.l.b16 %v315
        %v344 = vunpack.c.h.b16 %v315
        %v345 = vpack.c.b16 %v331, %v329
        %v346 = vpack.c.b16 %v332, %v330
        %v347 = vpack.c.b16 %v335, %v333
        %v348 = vpack.c.b16 %v336, %v334
        %v349 = vpack.c.b16 %v339, %v337
        %v350 = vpack.c.b16 %v340, %v338
        %v351 = vpack.c.b16 %v343, %v341
        %v352 = vpack.c.b16 %v344, %v342
        %vm361 = vcmask 523264
        %v363 = vsel %vm361, %v320, 0
        %365 = vmatprep.subr.bf16.mxu0 0
        %366 = vmatpush1.bf16.msra.mxu0 0
        %367 = vmatprep.subr.bf16.mxu0 0
        %368 = vmatpush1.bf16.msra.mxu0 0
        %369 = vmatprep.subr.bf16.mxu0 0
        %370 = vmatpush1.bf16.msra.mxu0 0
        %371 = vmatprep.subr.bf16.mxu0 0
        %372 = vmatpush1.bf16.msra.mxu0 0
        %373 = vmatprep.subr.bf16.mxu0 %v352
        %374 = vmatpush1.bf16.msra.mxu0 %v351
        %375 = vmatprep.subr.bf16.mxu0 %v350
        %376 = vmatpush1.bf16.msra.mxu0 %v349
        %377 = vmatprep.subr.bf16.mxu0 %v348
        %378 = vmatpush1.bf16.msra.mxu0 %v347
        %379 = vmatprep.subr.bf16.mxu0 %v346
        %380 = vmatpush1.bf16.msra.mxu0 %v345
        %381 = vmatprep.subr.bf16.mxu0 0
        %382 = vmatpush2.bf16.msra.mxu0 0
        %383 = vmatprep.subr.bf16.mxu0 0
        %384 = vmatpush2.bf16.msra.mxu0 0
        %385 = vmatprep.subr.bf16.mxu0 0
        %386 = vmatpush2.bf16.msra.mxu0 0
        %387 = vmatprep.subr.bf16.mxu0 0
        %388 = vmatpush2.bf16.msra.mxu0 0
        %389 = vmatprep.subr.bf16.mxu0 0
        %390 = vmatpush2.bf16.msra.mxu0 0
        %391 = vmatprep.subr.bf16.mxu0 0
        %392 = vmatpush2.bf16.msra.mxu0 0
        %393 = vmatprep.subr.bf16.mxu0 0
        %394 = vmatpush2.bf16.msra.mxu0 0
        %395 = vmatprep.subr.bf16.mxu0 0
        %396 = vmatpush2.bf16.msra.mxu0 0
        %397 = vmatprep.mubr.bf16.mxu0 0
        %398 = vmatmul.mubr.bf16.gmra.mxu0 %v363
        %v399 = vpop.f32.mrf.mxu0
        %v400 = vadd.f32 0.0, %v399
        %v401 = vpop.f32.mrf.mxu0
        %v402 = vadd.f32 0.0, %v401
        %v403 = vpop.f32.mrf.mxu0
        %v404 = vadd.f32 0.0, %v403
        %v405 = vpop.f32.mrf.mxu0
        %v406 = vadd.f32 0.0, %v405
        %407 = vdwg.mxu0
        %v408 = vadd.f32 %v302, %v400
        %v409 = vadd.f32 %v303, %v402
        %v410 = vadd.f32 %v304, %v404
        %v411 = vadd.f32 %v305, %v406
        %412 = vst [vmem:[#allocation2] sm:$0xff] %v408
        %413 = vst [vmem:[#allocation2 + $0x8] sm:$0xff] %v409
        %414 = vst [vmem:[#allocation2 + $0x10] sm:$0xff] %v410
        %415 = vst [vmem:[#allocation2 + $0x18] sm:$0xff] %v411
        // Predicated region
        $region75: #{lcab_apply.12} parent=65 // pred_check
          %p416 = pneg %p294
        $region76: #{lcab_apply.12} parent=65 // pred_check_branch
          %418 = sbr.rel (%p416) target = $region78
        $region77: #{lcab_apply.12} parent=65 // pred_region
          %v419 = vld [vmem:[#allocation2] sm:$0xff]
          %v420 = vld [vmem:[#allocation2 + $0x8] sm:$0xff]
          %v421 = vld [vmem:[#allocation2 + $0x10] sm:$0xff]
          %v422 = vld [vmem:[#allocation2 + $0x18] sm:$0xff]
          %s423 = sld [smem:[#allocation3]]
          %vm424 = vcmp.ge.f32.partialorder %v419, 0.0
          %vm425 = vcmp.ge.f32.partialorder %v420, 0.0
          %vm426 = vcmp.ge.f32.partialorder %v421, 0.0
          %vm427 = vcmp.ge.f32.partialorder %v422, 0.0
          %v428 = vstv %s423
          %v429 = vmul.f32 %v428, %v419
          %v430 = vmul.f32 %v428, %v420
          %v431 = vmul.f32 %v428, %v421
          %v432 = vmul.f32 %v428, %v422
          %v433 = vsel %vm424, %v419, %v429
          %v434 = vsel %vm425, %v420, %v430
          %v435 = vsel %vm426, %v421, %v431
          %v436 = vsel %vm427, %v422, %v432
          %v437 = vpack.c.bf16 %v435, %v433
          %v438 = vpack.c.bf16 %v436, %v434
          %v441 = vunpack.c.l.b16 %v437
          %v442 = vunpack.c.l.b16 %v438
          %v443 = vunpack.c.h.b16 %v437
          %v444 = vunpack.c.h.b16 %v438
          %v445 = vpack.c.b16 %v442, %v441
          %v446 = vpack.c.b16 %v444, %v443
          %449 = vst [vmem:[%s279] sm:$0xff] %v445
          %450 = vst [vmem:[%s279 + $0x8] sm:$0xff] %v446
        $region78: #{lcab_apply.12} parent=65 // pred_fallthru
          _
        %s451 = sand.u32 %s121, 1
        %s452 = sand.u32 %s121, 1
        %s453 = smul.addr %s452, 16
        %s454 = scalar_lea.vmem [#allocation5], %s453
        // Predicated region
        $region79: #{lcab_apply.12} parent=65 // pred_check
          %p455 = pneg %p131
        $region80: #{lcab_apply.12} parent=65 // pred_check_branch
          %457 = sbr.rel (%p455) target = $region82
        $region81: #{lcab_apply.12} parent=65 // pred_region
          %s458 = smul.u32 2, %s20
          %s459 = smul.u32 2, %s21
          %s460 = smul.addr %s458, 4
          %s461 = sadd.s32 %s459, %s460
          %s462 = smul.addr %s461, 4
          %s463 = scalar_lea.vmem %s3, %s462
          // Predicated region
          $region83: #{lcab_apply.12} parent=81 // pred_check
            _
          $region84: #{lcab_apply.12} parent=81 // pred_check_branch
            %465 = sbr.rel (0) target = $region86
          $region85: #{lcab_apply.12} parent=81 // pred_region
            // Predicated region
            $region87: #{lcab_apply.12} parent=85 // pred_check
              _
            $region88: #{lcab_apply.12} parent=85 // pred_check_branch
              %467 = sbr.rel (0) target = $region90
            $region89: #{lcab_apply.12} parent=85 // pred_region
              // Predicated region
              $region102: #{lcab_apply.12} parent=89 // pred_check
                _
              $region103: #{lcab_apply.12} parent=89 // pred_check_branch
                %485 = sbr.rel (0) target = $region105
              $region104: #{lcab_apply.12} parent=89 // pred_region
                loop: start=0, step=1, limit=1
                $region106: #{lcab_apply.12} parent=104 // loop_pre_header
                  _
                $region107: #{lcab_apply.12} parent=104 // loop_header
                  %s487 = sphi 0, %s491
                  %p488 = scmp.ge.s32.totalorder %s487, 1
                  %s492 = sphi %s454, %s454
                  %s493 = sphi %s463, %s463
                $region108: #{lcab_apply.12} parent=104 // loop_header_branch
                  %490 = sbr.rel (%p488) target = $region112
                $region109: #{lcab_apply.12} parent=104 // loop_body
                  %v494 = vld [vmem:[%s492] sm:$0xff]
                  %495 = vst [vmem:[%s493] sm:$0xff] %v494
                  %v496 = vld [vmem:[%s492 + $0x8] sm:$0xff]
                  %497 = vst [vmem:[%s493 + $0x10] sm:$0xff] %v496
                $region110: #{lcab_apply.12} parent=104 // loop_footer
                  %s491 = sadd.s32 1, %s487
                $region111: #{lcab_apply.12} parent=104 // loop_footer_branch
                  %486 = sbr.rel target = $region107
                $region112: #{lcab_apply.12} parent=104 // loop_exit
                  _
              $region105: #{lcab_apply.12} parent=89 // pred_fallthru
                _
              // Predicated region
              $region113: #{lcab_apply.12} parent=89 // pred_check
                _
              $region114: #{lcab_apply.12} parent=89 // pred_check_branch
                %499 = sbr.rel target = $region116
              $region115: #{lcab_apply.12} parent=89 // pred_region
                _
              $region116: #{lcab_apply.12} parent=89 // pred_fallthru
                _
            $region90: #{lcab_apply.12} parent=85 // pred_fallthru
              _
            // Predicated region
            $region91: #{lcab_apply.12} parent=85 // pred_check
              _
            $region92: #{lcab_apply.12} parent=85 // pred_check_branch
              %469 = sbr.rel target = $region94
            $region93: #{lcab_apply.12} parent=85 // pred_region
              %s471 = ssub.s32 256, 1
              loop: start=0, step=1, limit=1
              $region95: #{lcab_apply.12} parent=93 // loop_pre_header
                _
              $region96: #{lcab_apply.12} parent=93 // loop_header
                %s473 = sphi 0, %s477
                %p474 = scmp.ge.s32.totalorder %s473, 1
                %s478 = sphi %s454, %s454
                %s479 = sphi %s463, %s463
              $region97: #{lcab_apply.12} parent=93 // loop_header_branch
                %476 = sbr.rel (%p474) target = $region101
              $region98: #{lcab_apply.12} parent=93 // loop_body
                %v480 = vld [vmem:[%s478] sm:%s471]
                %481 = vst [vmem:[%s479] sm:%s471] %v480
                %v482 = vld [vmem:[%s478 + $0x8] sm:%s471]
                %483 = vst [vmem:[%s479 + $0x10] sm:%s471] %v482
              $region99: #{lcab_apply.12} parent=93 // loop_footer
                %s477 = sadd.s32 1, %s473
              $region100: #{lcab_apply.12} parent=93 // loop_footer_branch
                %472 = sbr.rel target = $region96
              $region101: #{lcab_apply.12} parent=93 // loop_exit
                _
            $region94: #{lcab_apply.12} parent=85 // pred_fallthru
              _
          $region86: #{lcab_apply.12} parent=81 // pred_fallthru
            _
          %500 = vnop
        $region82: #{lcab_apply.12} parent=65 // pred_fallthru
          _
      $region66: #{lcab_apply.12} parent=5 // pred_fallthru
        _
      %p501 = scmp.le.s32.totalorder 2, %s10
      // Predicated region
      $region117: #{lcab_apply.12} parent=5 // pred_check
        %p502 = pneg %p501
      $region118: #{lcab_apply.12} parent=5 // pred_check_branch
        %504 = sbr.rel (%p502) target = $region120
      $region119: #{lcab_apply.12} parent=5 // pred_region
        %s505 = ssub.s32 %s10, 2
        // Predicated region
        $region121: #{lcab_apply.12} parent=119 // pred_check
          %p506 = pneg %p137
        $region122: #{lcab_apply.12} parent=119 // pred_check_branch
          %508 = sbr.rel (%p506) target = $region124
        $region123: #{lcab_apply.12} parent=119 // pred_region
          %s509 = sand.u32 %s122, 1
          %s510 = sand.u32 %s122, 1
          %s511 = smul.addr %s510, 16
          %s512 = scalar_lea.vmem [#allocation5], %s511
        $region124: #{lcab_apply.12} parent=119 // pred_fallthru
          _
      $region120: #{lcab_apply.12} parent=5 // pred_fallthru
        _
    $region6: #{lcab_apply.12} parent=1 // loop_footer
      %s14 = sadd.s32 1, %s10
    $region7: #{lcab_apply.12} parent=1 // loop_footer_branch
      %9 = sbr.rel target = $region3
    $region8: #{lcab_apply.12} parent=1 // loop_exit
      _

// kernel: lcab_apply.13
$region0: #{lcab_apply.13}
  #allocation0 [shape = 'u32[]', space=smem, size = 0x4, offset = 0x4, fixed_abs, tag = 'smem constant byte address 0x4 - core index']
  #allocation1 [shape = 'u32[144,128]{1,0:T(1,128)}', space=vmem, size = 0x12000, scoped, tag = 'internal scratch']
  #allocation2 [shape = 'f32[16,256]{1,0:T(8,128)}', space=vmem, size = 0x4000, scoped, tag = 'scratch operand']
  %s0 = inlined_call_operand.vmem [shape: bf16[16,64], index: 0, kind: input, shape index: {}]
  %s1 = inlined_call_operand.vmem [shape: bf16[64,512], index: 1, kind: input, shape index: {}]
  %s2 = inlined_call_operand.vmem [shape: f32[16,512], index: 2, kind: output, shape index: {}]
  %s3 = sld [smem:[#allocation0]]
  $region106: #{lcab_apply.13} parent=0
    _
  %s5 = ssub.s32 1, %s3
  %s6 = scalar_select 0, %s5, %s3
  $region1: #{lcab_apply.13} parent=0
    #allocation3 [shape = 'u8[65536]{0}', space=vmem, size = 0x10000, scoped, tag = 'input window, operand 1']
    #allocation4 [shape = 'u8[32768]{0}', space=vmem, size = 0x8000, scoped, tag = 'output window, operand 0']
    loop: start=0, step=1, limit=4
    $region2: #{lcab_apply.13} parent=1 // loop_pre_header
      _
    $region3: #{lcab_apply.13} parent=1 // loop_header
      %s8 = sphi 0, %s12
      %p9 = scmp.ge.s32.totalorder %s8, 4
      %s15 = sphi 0, %s34
      %s16 = sphi 0, %s30
      %s17 = sphi 0, %s26
      %s18 = sphi 0, %s15
      %s19 = sphi 0, %s16
      %s20 = sphi 0, %s17
      %s21 = sphi 0, %s18
      %s22 = sphi 0, %s19
      %s23 = sphi 0, %s20
      %s39 = sphi 0, %s41
      %s42 = sphi 0, %s39
      %s43 = sphi 0, %s42
      %s59 = sphi 0, %s43
      %s67 = sphi 0, %s69
      %s70 = sphi 0, %s67
      %s71 = sphi 0, %s70
      %s87 = sphi 0, %s71
      %s95 = sphi 0, %s97
      %s98 = sphi 0, %s95
      %s99 = sphi 0, %s98
      %s115 = sphi 0, %s99
    $region4: #{lcab_apply.13} parent=1 // loop_header_branch
      %11 = sbr.rel (%p9) target = $region8
    $region5: #{lcab_apply.13} parent=1 // loop_body
      %s13 = ssub.s32 %s8, 1
      %s14 = ssub.s32 %s8, 2
      %s24 = sadd.s32 1, %s17
      %p25 = scmp.ge.s32.totalorder %s24, 1
      %s26 = scalar_select %p25, 0, %s24
      %s27 = sadd.s32 1, %s16
      %s28 = scalar_select %p25, %s27, %s16
      %p29 = scmp.ge.s32.totalorder %s28, 2
      %s30 = scalar_select %p29, 0, %s28
      %s31 = sadd.s32 1, %s15
      %s32 = scalar_select %p29, %s31, %s15
      %p33 = scmp.ge.s32.totalorder %s32, 1
      %s34 = scalar_select %p33, 0, %s32
      %s35 = ssub.s32 %s15, %s34
      %s36 = ssub.s32 %s17, %s26
      %s37 = sor.u32 %s35, %s36
      %p38 = scmp.eq.s32.totalorder %s37, 0
      %s40 = sadd.s32 %s39, 1
      %s41 = scalar_select %p38, %s39, %s40
      %p44 = pneg %p38
      %p45 = scmp.eq.s32.totalorder %s8, 1
      %p46 = por %p44, %p45
      %p47 = scmp.ne.s32.totalorder %s39, %s42
      %p48 = scmp.eq.s32.totalorder %s8, 0
      %p49 = por %p47, %p48
      %p50 = scmp.ne.s32.totalorder %s39, %s42
      %p51 = scmp.eq.s32.totalorder %s13, 1
      %p52 = por %p50, %p51
      %p53 = scmp.ne.s32.totalorder %s42, %s43
      %p54 = scmp.eq.s32.totalorder %s13, 0
      %p55 = por %p53, %p54
      %p56 = scmp.ne.s32.totalorder %s42, %s43
      %p57 = scmp.eq.s32.totalorder %s14, 1
      %p58 = por %p56, %p57
      %p60 = scmp.ne.s32.totalorder %s43, %s59
      %p61 = scmp.eq.s32.totalorder %s14, 0
      %p62 = por %p60, %p61
      %s63 = ssub.s32 %s17, %s26
      %s64 = ssub.s32 %s16, %s30
      %s65 = sor.u32 %s63, %s64
      %p66 = scmp.eq.s32.totalorder %s65, 0
      %s68 = sadd.s32 %s67, 1
      %s69 = scalar_select %p66, %s67, %s68
      %p72 = pneg %p66
      %p73 = scmp.eq.s32.totalorder %s8, 1
      %p74 = por %p72, %p73
      %p75 = scmp.ne.s32.totalorder %s67, %s70
      %p76 = scmp.eq.s32.totalorder %s8, 0
      %p77 = por %p75, %p76
      %p78 = scmp.ne.s32.totalorder %s67, %s70
      %p79 = scmp.eq.s32.totalorder %s13, 1
      %p80 = por %p78, %p79
      %p81 = scmp.ne.s32.totalorder %s70, %s71
      %p82 = scmp.eq.s32.totalorder %s13, 0
      %p83 = por %p81, %p82
      %p84 = scmp.ne.s32.totalorder %s70, %s71
      %p85 = scmp.eq.s32.totalorder %s14, 1
      %p86 = por %p84, %p85
      %p88 = scmp.ne.s32.totalorder %s71, %s87
      %p89 = scmp.eq.s32.totalorder %s14, 0
      %p90 = por %p88, %p89
      %s91 = ssub.s32 %s15, %s34
      %s92 = ssub.s32 %s16, %s30
      %s93 = sor.u32 %s91, %s92
      %p94 = scmp.eq.s32.totalorder %s93, 0
      %s96 = sadd.s32 %s95, 1
      %s97 = scalar_select %p94, %s95, %s96
      %p100 = pneg %p94
      %p101 = scmp.eq.s32.totalorder %s8, 1
      %p102 = por %p100, %p101
      %p103 = scmp.ne.s32.totalorder %s95, %s98
      %p104 = scmp.eq.s32.totalorder %s8, 0
      %p105 = por %p103, %p104
      %p106 = scmp.ne.s32.totalorder %s95, %s98
      %p107 = scmp.eq.s32.totalorder %s13, 1
      %p108 = por %p106, %p107
      %p109 = scmp.ne.s32.totalorder %s98, %s99
      %p110 = scmp.eq.s32.totalorder %s13, 0
      %p111 = por %p109, %p110
      %p112 = scmp.ne.s32.totalorder %s98, %s99
      %p113 = scmp.eq.s32.totalorder %s14, 1
      %p114 = por %p112, %p113
      %p116 = scmp.ne.s32.totalorder %s99, %s115
      %p117 = scmp.eq.s32.totalorder %s14, 0
      %p118 = por %p116, %p117
      %p119 = scmp.le.s32.totalorder 1, %s8
      %p120 = scmp.lt.s32.totalorder %s8, 3
      %p121 = pnand %p119, %p120
      %p122 = pneg %p121
      // Predicated region
      $region9: #{lcab_apply.13} parent=5 // pred_check
        _
      $region10: #{lcab_apply.13} parent=5 // pred_check_branch
        %124 = sbr.rel (%p121) target = $region12
      $region11: #{lcab_apply.13} parent=5 // pred_region
        %s125 = ssub.s32 %s8, 1
        // Predicated region
        $region13: #{lcab_apply.13} parent=11 // pred_check
          %p126 = pneg %p55
        $region14: #{lcab_apply.13} parent=11 // pred_check_branch
          %128 = sbr.rel (%p126) target = $region16
        $region15: #{lcab_apply.13} parent=11 // pred_region
          %s129 = smul.u32 2, %s18
          %p130 = scmp.lt.s32.totalorder %s129, 1
          %s131 = scalar_select %p130, %s129, 1
          %p132 = scmp.lt.s32.totalorder %s20, 0
          %s133 = scalar_select %p132, %s20, 0
          %s134 = sadd.s32 %s133, %s131
          %s135 = smul.addr %s134, 4
          %s136 = scalar_lea.vmem %s0, %s135
          %s137 = smul.u32 2, %s18
        $region16: #{lcab_apply.13} parent=11 // pred_fallthru
          _
      $region12: #{lcab_apply.13} parent=5 // pred_fallthru
        _
      %p138 = scmp.lt.s32.totalorder %s8, 2
      // Predicated region
      $region17: #{lcab_apply.13} parent=5 // pred_check
        %p139 = pneg %p138
      $region18: #{lcab_apply.13} parent=5 // pred_check_branch
        %141 = sbr.rel (%p139) target = $region20
      $region19: #{lcab_apply.13} parent=5 // pred_region
        // Predicated region
        $region21: #{lcab_apply.13} parent=19 // pred_check
          %p142 = pneg %p77
        $region22: #{lcab_apply.13} parent=19 // pred_check_branch
          %144 = sbr.rel (%p142) target = $region24
        $region23: #{lcab_apply.13} parent=19 // pred_region
          %s145 = sand.u32 %s67, 1
          %s146 = sand.u32 %s67, 1
          %s147 = smul.addr %s146, 64
          %s148 = scalar_lea.vmem [#allocation3], %s147
          %s149 = smul.u32 8, %s17
          %s150 = smul.u32 2, %s16
          %s151 = smul.addr %s149, 4
          %s152 = sadd.s32 %s150, %s151
          %s153 = smul.addr %s152, 4
          %s154 = scalar_lea.vmem %s1, %s153
          // Predicated region
          $region25: #{lcab_apply.13} parent=23 // pred_check
            _
          $region26: #{lcab_apply.13} parent=23 // pred_check_branch
            %156 = sbr.rel (0) target = $region28
          $region27: #{lcab_apply.13} parent=23 // pred_region
            // Predicated region
            $region29: #{lcab_apply.13} parent=27 // pred_check
              _
            $region30: #{lcab_apply.13} parent=27 // pred_check_branch
              %158 = sbr.rel (0) target = $region32
            $region31: #{lcab_apply.13} parent=27 // pred_region
              // Predicated region
              $region44: #{lcab_apply.13} parent=31 // pred_check
                _
              $region45: #{lcab_apply.13} parent=31 // pred_check_branch
                %188 = sbr.rel (0) target = $region47
              $region46: #{lcab_apply.13} parent=31 // pred_region
                loop: start=0, step=1, limit=1
                $region48: #{lcab_apply.13} parent=46 // loop_pre_header
                  _
                $region49: #{lcab_apply.13} parent=46 // loop_header
                  %s190 = sphi 0, %s194
                  %p191 = scmp.ge.s32.totalorder %s190, 1
                  %s195 = sphi %s154, %s154
                  %s196 = sphi %s148, %s148
                $region50: #{lcab_apply.13} parent=46 // loop_header_branch
                  %193 = sbr.rel (%p191) target = $region54
                $region51: #{lcab_apply.13} parent=46 // loop_body
                  %v197 = vld [vmem:[%s195] sm:$0xff]
                  %198 = vst [vmem:[%s196] sm:$0xff] %v197
                  %v199 = vld [vmem:[%s195 + $0x10] sm:$0xff]
                  %200 = vst [vmem:[%s196 + $0x8] sm:$0xff] %v199
                  %v201 = vld [vmem:[%s195 + $0x20] sm:$0xff]
                  %202 = vst [vmem:[%s196 + $0x10] sm:$0xff] %v201
                  %v203 = vld [vmem:[%s195 + $0x30] sm:$0xff]
                  %204 = vst [vmem:[%s196 + $0x18] sm:$0xff] %v203
                  %v205 = vld [vmem:[%s195 + $0x40] sm:$0xff]
                  %206 = vst [vmem:[%s196 + $0x20] sm:$0xff] %v205
                  %v207 = vld [vmem:[%s195 + $0x50] sm:$0xff]
                  %208 = vst [vmem:[%s196 + $0x28] sm:$0xff] %v207
                  %v209 = vld [vmem:[%s195 + $0x60] sm:$0xff]
                  %210 = vst [vmem:[%s196 + $0x30] sm:$0xff] %v209
                  %v211 = vld [vmem:[%s195 + $0x70] sm:$0xff]
                  %212 = vst [vmem:[%s196 + $0x38] sm:$0xff] %v211
                $region52: #{lcab_apply.13} parent=46 // loop_footer
                  %s194 = sadd.s32 1, %s190
                $region53: #{lcab_apply.13} parent=46 // loop_footer_branch
                  %189 = sbr.rel target = $region49
                $region54: #{lcab_apply.13} parent=46 // loop_exit
                  _
              $region47: #{lcab_apply.13} parent=31 // pred_fallthru
                _
              // Predicated region
              $region55: #{lcab_apply.13} parent=31 // pred_check
                _
              $region56: #{lcab_apply.13} parent=31 // pred_check_branch
                %214 = sbr.rel target = $region58
              $region57: #{lcab_apply.13} parent=31 // pred_region
                _
              $region58: #{lcab_apply.13} parent=31 // pred_fallthru
                _
            $region32: #{lcab_apply.13} parent=27 // pred_fallthru
              _
            // Predicated region
            $region33: #{lcab_apply.13} parent=27 // pred_check
              _
            $region34: #{lcab_apply.13} parent=27 // pred_check_branch
              %160 = sbr.rel target = $region36
            $region35: #{lcab_apply.13} parent=27 // pred_region
              %s162 = ssub.s32 256, 1
              loop: start=0, step=1, limit=1
              $region37: #{lcab_apply.13} parent=35 // loop_pre_header
                _
              $region38: #{lcab_apply.13} parent=35 // loop_header
                %s164 = sphi 0, %s168
                %p165 = scmp.ge.s32.totalorder %s164, 1
                %s169 = sphi %s154, %s154
                %s170 = sphi %s148, %s148
              $region39: #{lcab_apply.13} parent=35 // loop_header_branch
                %167 = sbr.rel (%p165) target = $region43
              $region40: #{lcab_apply.13} parent=35 // loop_body
                %v171 = vld [vmem:[%s169] sm:%s162]
                %172 = vst [vmem:[%s170] sm:%s162] %v171
                %v173 = vld [vmem:[%s169 + $0x10] sm:%s162]
                %174 = vst [vmem:[%s170 + $0x8] sm:%s162] %v173
                %v175 = vld [vmem:[%s169 + $0x20] sm:%s162]
                %176 = vst [vmem:[%s170 + $0x10] sm:%s162] %v175
                %v177 = vld [vmem:[%s169 + $0x30] sm:%s162]
                %178 = vst [vmem:[%s170 + $0x18] sm:%s162] %v177
                %v179 = vld [vmem:[%s169 + $0x40] sm:%s162]
                %180 = vst [vmem:[%s170 + $0x20] sm:%s162] %v179
                %v181 = vld [vmem:[%s169 + $0x50] sm:%s162]
                %182 = vst [vmem:[%s170 + $0x28] sm:%s162] %v181
                %v183 = vld [vmem:[%s169 + $0x60] sm:%s162]
                %184 = vst [vmem:[%s170 + $0x30] sm:%s162] %v183
                %v185 = vld [vmem:[%s169 + $0x70] sm:%s162]
                %186 = vst [vmem:[%s170 + $0x38] sm:%s162] %v185
              $region41: #{lcab_apply.13} parent=35 // loop_footer
                %s168 = sadd.s32 1, %s164
              $region42: #{lcab_apply.13} parent=35 // loop_footer_branch
                %163 = sbr.rel target = $region38
              $region43: #{lcab_apply.13} parent=35 // loop_exit
                _
            $region36: #{lcab_apply.13} parent=27 // pred_fallthru
              _
          $region28: #{lcab_apply.13} parent=23 // pred_fallthru
            _
          %215 = vnop
        $region24: #{lcab_apply.13} parent=19 // pred_fallthru
          _
      $region20: #{lcab_apply.13} parent=5 // pred_fallthru
        _
      %p216 = scmp.le.s32.totalorder 1, %s8
      %p217 = scmp.lt.s32.totalorder %s8, 3
      %p218 = pnand %p216, %p217
      %p219 = pneg %p218
      // Predicated region
      $region59: #{lcab_apply.13} parent=5 // pred_check
        _
      $region60: #{lcab_apply.13} parent=5 // pred_check_branch
        %221 = sbr.rel (%p218) target = $region62
      $region61: #{lcab_apply.13} parent=5 // pred_region
        %s222 = ssub.s32 %s8, 1
        %s223 = sand.u32 %s70, 1
        %s224 = sand.u32 %s70, 1
        %s225 = smul.addr %s224, 64
        %s226 = scalar_lea.vmem [#allocation3], %s225
        // Predicated region
        $region63: #{lcab_apply.13} parent=61 // pred_check
          %p227 = pneg %p83
        $region64: #{lcab_apply.13} parent=61 // pred_check_branch
          %229 = sbr.rel (%p227) target = $region66
        $region65: #{lcab_apply.13} parent=61 // pred_region
          _
        $region66: #{lcab_apply.13} parent=61 // pred_fallthru
          _
        %s230 = smul.u32 2, %s18
        %p231 = scmp.lt.s32.totalorder %s230, 1
        %s232 = scalar_select %p231, %s230, 1
        %p233 = scmp.lt.s32.totalorder %s20, 0
        %s234 = scalar_select %p233, %s20, 0
        %s235 = sadd.s32 %s234, %s232
        %s236 = smul.addr %s235, 4
        %s237 = scalar_lea.vmem %s0, %s236
        %p238 = pneg %p55
        %p239 = pneg %p52
        %s240 = sand.u32 %s70, 1
        %s241 = sand.u32 %s70, 1
        %s242 = smul.addr %s241, 64
        %s243 = scalar_lea.vmem [#allocation3], %s242
        %p244 = pneg %p83
        %p245 = pneg %p80
        %p246 = pneg %p111
        %p247 = pneg %p108
        %s248 = sand.u32 %s98, 1
        %s249 = sand.u32 %s98, 1
        %s250 = smul.addr %s249, 32
        %s251 = scalar_lea.vmem [#allocation4], %s250
        %s252 = smul.u32 2, %s18
        %p253 = scmp.lt.s32.totalorder %s252, 1
        %s254 = scalar_select %p253, %s252, 1
        %p255 = scmp.lt.s32.totalorder %s20, 0
        %s256 = scalar_select %p255, %s20, 0
        %s257 = sadd.s32 %s256, %s254
        %s258 = smul.addr %s257, 4
        %s259 = scalar_lea.vmem %s0, %s258
        %s260 = smul.u32 2, %s18
        %s261 = smul.u32 8, %s20
        %s262 = smul.u32 2, %s19
        %s263 = smul.u32 2, %s18
        %s264 = smul.u32 2, %s19
        %p266 = scmp.eq.s32.totalorder %s20, 0
        // Predicated region
        $region67: #{lcab_apply.13} parent=61 // pred_check
          %p267 = pneg %p266
        $region68: #{lcab_apply.13} parent=61 // pred_check_branch
          %269 = sbr.rel (%p267) target = $region70
        $region69: #{lcab_apply.13} parent=61 // pred_region
          %270 = vst [vmem:[#allocation2] sm:$0xff] 0.0
          %271 = vst [vmem:[#allocation2 + $0x8] sm:$0xff] 0.0
          %272 = vst [vmem:[#allocation2 + $0x10] sm:$0xff] 0.0
          %273 = vst [vmem:[#allocation2 + $0x18] sm:$0xff] 0.0
        $region70: #{lcab_apply.13} parent=61 // pred_fallthru
          _
        %v274 = vld [vmem:[#allocation2] sm:$0xff]
        %v275 = vld [vmem:[#allocation2 + $0x8] sm:$0xff]
        %v276 = vld [vmem:[#allocation2 + $0x10] sm:$0xff]
        %v277 = vld [vmem:[#allocation2 + $0x18] sm:$0xff]
        %v278 = vld [vmem:[%s259] sm:$0xf]
        %v279 = vld [vmem:[%s259 + $0x4] sm:$0xf]
        %v280 = vld [vmem:[%s226] sm:$0xff]
        %v281 = vld [vmem:[%s226 + $0x8] sm:$0xff]
        %v282 = vld [vmem:[%s226 + $0x10] sm:$0xff]
        %v283 = vld [vmem:[%s226 + $0x18] sm:$0xff]
        %v284 = vld [vmem:[%s226 + $0x20] sm:$0xff]
        %v285 = vld [vmem:[%s226 + $0x28] sm:$0xff]
        %v286 = vld [vmem:[%s226 + $0x30] sm:$0xff]
        %v287 = vld [vmem:[%s226 + $0x38] sm:$0xff]
        %v290 = vunpack.c.l.b16 %v278
        %v291 = vunpack.c.l.b16 %v279
        %v292 = vpack.c.b16 %v291, %v290
        %v301 = vunpack.c.l.b16 %v280
        %v302 = vunpack.c.h.b16 %v280
        %v303 = vunpack.c.l.b16 %v281
        %v304 = vunpack.c.h.b16 %v281
        %v305 = vunpack.c.l.b16 %v282
        %v306 = vunpack.c.h.b16 %v282
        %v307 = vunpack.c.l.b16 %v283
        %v308 = vunpack.c.h.b16 %v283
        %v309 = vunpack.c.l.b16 %v284
        %v310 = vunpack.c.h.b16 %v284
        %v311 = vunpack.c.l.b16 %v285
        %v312 = vunpack.c.h.b16 %v285
        %v313 = vunpack.c.l.b16 %v286
        %v314 = vunpack.c.h.b16 %v286
        %v315 = vunpack.c.l.b16 %v287
        %v316 = vunpack.c.h.b16 %v287
        %v317 = vpack.c.b16 %v303, %v301
        %v318 = vpack.c.b16 %v304, %v302
        %v319 = vpack.c.b16 %v307, %v305
        %v320 = vpack.c.b16 %v308, %v306
        %v321 = vpack.c.b16 %v311, %v309
        %v322 = vpack.c.b16 %v312, %v310
        %v323 = vpack.c.b16 %v315, %v313
        %v324 = vpack.c.b16 %v316, %v314
        %vm333 = vcmask 523264
        %v335 = vsel %vm333, %v292, 0
        %337 = vmatprep.subr.bf16.mxu0 0
        %338 = vmatpush1.bf16.msra.mxu0 0
        %339 = vmatprep.subr.bf16.mxu0 0
        %340 = vmatpush1.bf16.msra.mxu0 0
        %341 = vmatprep.subr.bf16.mxu0 0
        %342 = vmatpush1.bf16.msra.mxu0 0
        %343 = vmatprep.subr.bf16.mxu0 0
        %344 = vmatpush1.bf16.msra.mxu0 0
        %345 = vmatprep.subr.bf16.mxu0 %v324
        %346 = vmatpush1.bf16.msra.mxu0 %v323
        %347 = vmatprep.subr.bf16.mxu0 %v322
        %348 = vmatpush1.bf16.msra.mxu0 %v321
        %349 = vmatprep.subr.bf16.mxu0 %v320
        %350 = vmatpush1.bf16.msra.mxu0 %v319
        %351 = vmatprep.subr.bf16.mxu0 %v318
        %352 = vmatpush1.bf16.msra.mxu0 %v317
        %353 = vmatprep.subr.bf16.mxu0 0
        %354 = vmatpush2.bf16.msra.mxu0 0
        %355 = vmatprep.subr.bf16.mxu0 0
        %356 = vmatpush2.bf16.msra.mxu0 0
        %357 = vmatprep.subr.bf16.mxu0 0
        %358 = vmatpush2.bf16.msra.mxu0 0
        %359 = vmatprep.subr.bf16.mxu0 0
        %360 = vmatpush2.bf16.msra.mxu0 0
        %361 = vmatprep.subr.bf16.mxu0 0
        %362 = vmatpush2.bf16.msra.mxu0 0
        %363 = vmatprep.subr.bf16.mxu0 0
        %364 = vmatpush2.bf16.msra.mxu0 0
        %365 = vmatprep.subr.bf16.mxu0 0
        %366 = vmatpush2.bf16.msra.mxu0 0
        %367 = vmatprep.subr.bf16.mxu0 0
        %368 = vmatpush2.bf16.msra.mxu0 0
        %369 = vmatprep.mubr.bf16.mxu0 0
        %370 = vmatmul.mubr.bf16.gmra.mxu0 %v335
        %v371 = vpop.f32.mrf.mxu0
        %v372 = vadd.f32 0.0, %v371
        %v373 = vpop.f32.mrf.mxu0
        %v374 = vadd.f32 0.0, %v373
        %v375 = vpop.f32.mrf.mxu0
        %v376 = vadd.f32 0.0, %v375
        %v377 = vpop.f32.mrf.mxu0
        %v378 = vadd.f32 0.0, %v377
        %379 = vdwg.mxu0
        %v380 = vadd.f32 %v274, %v372
        %v381 = vadd.f32 %v275, %v374
        %v382 = vadd.f32 %v276, %v376
        %v383 = vadd.f32 %v277, %v378
        %384 = vst [vmem:[#allocation2] sm:$0xff] %v380
        %385 = vst [vmem:[#allocation2 + $0x8] sm:$0xff] %v381
        %386 = vst [vmem:[#allocation2 + $0x10] sm:$0xff] %v382
        %387 = vst [vmem:[#allocation2 + $0x18] sm:$0xff] %v383
        // Predicated region
        $region71: #{lcab_apply.13} parent=61 // pred_check
          %p388 = pneg %p266
        $region72: #{lcab_apply.13} parent=61 // pred_check_branch
          %390 = sbr.rel (%p388) target = $region74
        $region73: #{lcab_apply.13} parent=61 // pred_region
          %v391 = vld [vmem:[#allocation2] sm:$0xff]
          %v392 = vld [vmem:[#allocation2 + $0x8] sm:$0xff]
          %v393 = vld [vmem:[#allocation2 + $0x10] sm:$0xff]
          %v394 = vld [vmem:[#allocation2 + $0x18] sm:$0xff]
          %395 = vst [vmem:[%s251] sm:$0xff] %v391
          %396 = vst [vmem:[%s251 + $0x8] sm:$0xff] %v392
          %397 = vst [vmem:[%s251 + $0x10] sm:$0xff] %v393
          %398 = vst [vmem:[%s251 + $0x18] sm:$0xff] %v394
        $region74: #{lcab_apply.13} parent=61 // pred_fallthru
          _
        %s399 = sand.u32 %s98, 1
        %s400 = sand.u32 %s98, 1
        %s401 = smul.addr %s400, 32
        %s402 = scalar_lea.vmem [#allocation4], %s401
        // Predicated region
        $region75: #{lcab_apply.13} parent=61 // pred_check
          %p403 = pneg %p108
        $region76: #{lcab_apply.13} parent=61 // pred_check_branch
          %405 = sbr.rel (%p403) target = $region78
        $region77: #{lcab_apply.13} parent=61 // pred_region
          %s406 = smul.u32 2, %s18
          %s407 = smul.u32 2, %s19
          %s408 = smul.addr %s406, 4
          %s409 = sadd.s32 %s407, %s408
          %s410 = smul.addr %s409, 8
          %s411 = scalar_lea.vmem %s2, %s410
          // Predicated region
          $region79: #{lcab_apply.13} parent=77 // pred_check
            _
          $region80: #{lcab_apply.13} parent=77 // pred_check_branch
            %413 = sbr.rel (0) target = $region82
          $region81: #{lcab_apply.13} parent=77 // pred_region
            // Predicated region
            $region83: #{lcab_apply.13} parent=81 // pred_check
              _
            $region84: #{lcab_apply.13} parent=81 // pred_check_branch
              %415 = sbr.rel (0) target = $region86
            $region85: #{lcab_apply.13} parent=81 // pred_region
              loop: start=0, step=1, limit=1
              $region87: #{lcab_apply.13} parent=85 // loop_pre_header
                _
              $region88: #{lcab_apply.13} parent=85 // loop_header
                %s417 = sphi 0, %s421
                %p418 = scmp.ge.s32.totalorder %s417, 1
                %s422 = sphi %s402, %s402
                %s423 = sphi %s411, %s411
              $region89: #{lcab_apply.13} parent=85 // loop_header_branch
                %420 = sbr.rel (%p418) target = $region93
              $region90: #{lcab_apply.13} parent=85 // loop_body
                %v424 = vld [vmem:[%s422] sm:$0xff]
                %425 = vst [vmem:[%s423] sm:$0xff] %v424
                %v426 = vld [vmem:[%s422 + $0x8] sm:$0xff]
                %427 = vst [vmem:[%s423 + $0x8] sm:$0xff] %v426
                %v428 = vld [vmem:[%s422 + $0x10] sm:$0xff]
                %429 = vst [vmem:[%s423 + $0x20] sm:$0xff] %v428
                %v430 = vld [vmem:[%s422 + $0x18] sm:$0xff]
                %431 = vst [vmem:[%s423 + $0x28] sm:$0xff] %v430
              $region91: #{lcab_apply.13} parent=85 // loop_footer
                %s421 = sadd.s32 1, %s417
              $region92: #{lcab_apply.13} parent=85 // loop_footer_branch
                %416 = sbr.rel target = $region88
              $region93: #{lcab_apply.13} parent=85 // loop_exit
                _
            $region86: #{lcab_apply.13} parent=81 // pred_fallthru
              _
            // Predicated region
            $region94: #{lcab_apply.13} parent=81 // pred_check
              _
            $region95: #{lcab_apply.13} parent=81 // pred_check_branch
              %433 = sbr.rel target = $region97
            $region96: #{lcab_apply.13} parent=81 // pred_region
              _
            $region97: #{lcab_apply.13} parent=81 // pred_fallthru
              _
          $region82: #{lcab_apply.13} parent=77 // pred_fallthru
            _
          %434 = vnop
        $region78: #{lcab_apply.13} parent=61 // pred_fallthru
          _
      $region62: #{lcab_apply.13} parent=5 // pred_fallthru
        _
      %p435 = scmp.le.s32.totalorder 2, %s8
      // Predicated region
      $region98: #{lcab_apply.13} parent=5 // pred_check
        %p436 = pneg %p435
      $region99: #{lcab_apply.13} parent=5 // pred_check_branch
        %438 = sbr.rel (%p436) target = $region101
      $region100: #{lcab_apply.13} parent=5 // pred_region
        %s439 = ssub.s32 %s8, 2
        // Predicated region
        $region102: #{lcab_apply.13} parent=100 // pred_check
          %p440 = pneg %p114
        $region103: #{lcab_apply.13} parent=100 // pred_check_branch
          %442 = sbr.rel (%p440) target = $region105
        $region104: #{lcab_apply.13} parent=100 // pred_region
          %s443 = sand.u32 %s99, 1
          %s444 = sand.u32 %s99, 1
          %s445 = smul.addr %s444, 32
          %s446 = scalar_lea.vmem [#allocation4], %s445
        $region105: #{lcab_apply.13} parent=100 // pred_fallthru
          _
      $region101: #{lcab_apply.13} parent=5 // pred_fallthru
        _
    $region6: #{lcab_apply.13} parent=1 // loop_footer
      %s12 = sadd.s32 1, %s8
    $region7: #{lcab_apply.13} parent=1 // loop_footer_branch
      %7 = sbr.rel target = $region3
    $region8: #{lcab_apply.13} parent=1 // loop_exit
      _

// kernel: lcab_apply.15
$region0: #{lcab_apply.15}
  #allocation0 [shape = 'u32[]', space=smem, size = 0x4, offset = 0x4, fixed_abs, tag = 'smem constant byte address 0x4 - core index']
  #allocation1 [shape = 'u32[144,128]{1,0:T(1,128)}', space=vmem, size = 0x12000, scoped, tag = 'internal scratch']
  #allocation2 [shape = 'f32[16,256]{1,0:T(8,128)}', space=vmem, size = 0x4000, scoped, tag = 'scratch operand']
  %s0 = inlined_call_operand.vmem [shape: bf16[16,64], index: 0, kind: input, shape index: {}]
  %s1 = inlined_call_operand.vmem [shape: bf16[64,512], index: 1, kind: input, shape index: {}]
  %s2 = inlined_call_operand.vmem [shape: f32[16,512], index: 2, kind: input, shape index: {}]
  %s3 = inlined_call_operand.vmem [shape: f32[16,512], index: 3, kind: output, shape index: {}]
  %s4 = sld [smem:[#allocation0]]
  $region133: #{lcab_apply.15} parent=0
    _
  %s6 = ssub.s32 1, %s4
  %s7 = scalar_select 0, %s6, %s4
  $region1: #{lcab_apply.15} parent=0
    #allocation3 [shape = 'u8[65536]{0}', space=vmem, size = 0x10000, scoped, tag = 'input window, operand 1']
    #allocation4 [shape = 'u8[32768]{0}', space=vmem, size = 0x8000, scoped, tag = 'input window, operand 2']
    #allocation5 [shape = 'u8[32768]{0}', space=vmem, size = 0x8000, scoped, tag = 'output window, operand 0']
    loop: start=0, step=1, limit=4
    $region2: #{lcab_apply.15} parent=1 // loop_pre_header
      _
    $region3: #{lcab_apply.15} parent=1 // loop_header
      %s9 = sphi 0, %s13
      %p10 = scmp.ge.s32.totalorder %s9, 4
      %s16 = sphi 0, %s35
      %s17 = sphi 0, %s31
      %s18 = sphi 0, %s27
      %s19 = sphi 0, %s16
      %s20 = sphi 0, %s17
      %s21 = sphi 0, %s18
      %s22 = sphi 0, %s19
      %s23 = sphi 0, %s20
      %s24 = sphi 0, %s21
      %s40 = sphi 0, %s42
      %s43 = sphi 0, %s40
      %s44 = sphi 0, %s43
      %s60 = sphi 0, %s44
      %s68 = sphi 0, %s70
      %s71 = sphi 0, %s68
      %s72 = sphi 0, %s71
      %s88 = sphi 0, %s72
      %s96 = sphi 0, %s98
      %s99 = sphi 0, %s96
      %s100 = sphi 0, %s99
      %s116 = sphi 0, %s100
      %s124 = sphi 0, %s126
      %s127 = sphi 0, %s124
      %s128 = sphi 0, %s127
      %s144 = sphi 0, %s128
    $region4: #{lcab_apply.15} parent=1 // loop_header_branch
      %12 = sbr.rel (%p10) target = $region8
    $region5: #{lcab_apply.15} parent=1 // loop_body
      %s14 = ssub.s32 %s9, 1
      %s15 = ssub.s32 %s9, 2
      %s25 = sadd.s32 1, %s18
      %p26 = scmp.ge.s32.totalorder %s25, 1
      %s27 = scalar_select %p26, 0, %s25
      %s28 = sadd.s32 1, %s17
      %s29 = scalar_select %p26, %s28, %s17
      %p30 = scmp.ge.s32.totalorder %s29, 2
      %s31 = scalar_select %p30, 0, %s29
      %s32 = sadd.s32 1, %s16
      %s33 = scalar_select %p30, %s32, %s16
      %p34 = scmp.ge.s32.totalorder %s33, 1
      %s35 = scalar_select %p34, 0, %s33
      %s36 = ssub.s32 %s16, %s35
      %s37 = ssub.s32 %s18, %s27
      %s38 = sor.u32 %s36, %s37
      %p39 = scmp.eq.s32.totalorder %s38, 0
      %s41 = sadd.s32 %s40, 1
      %s42 = scalar_select %p39, %s40, %s41
      %p45 = pneg %p39
      %p46 = scmp.eq.s32.totalorder %s9, 1
      %p47 = por %p45, %p46
      %p48 = scmp.ne.s32.totalorder %s40, %s43
      %p49 = scmp.eq.s32.totalorder %s9, 0
      %p50 = por %p48, %p49
      %p51 = scmp.ne.s32.totalorder %s40, %s43
      %p52 = scmp.eq.s32.totalorder %s14, 1
      %p53 = por %p51, %p52
      %p54 = scmp.ne.s32.totalorder %s43, %s44
      %p55 = scmp.eq.s32.totalorder %s14, 0
      %p56 = por %p54, %p55
      %p57 = scmp.ne.s32.totalorder %s43, %s44
      %p58 = scmp.eq.s32.totalorder %s15, 1
      %p59 = por %p57, %p58
      %p61 = scmp.ne.s32.totalorder %s44, %s60
      %p62 = scmp.eq.s32.totalorder %s15, 0
      %p63 = por %p61, %p62
      %s64 = ssub.s32 %s18, %s27
      %s65 = ssub.s32 %s17, %s31
      %s66 = sor.u32 %s64, %s65
      %p67 = scmp.eq.s32.totalorder %s66, 0
      %s69 = sadd.s32 %s68, 1
      %s70 = scalar_select %p67, %s68, %s69
      %p73 = pneg %p67
      %p74 = scmp.eq.s32.totalorder %s9, 1
      %p75 = por %p73, %p74
      %p76 = scmp.ne.s32.totalorder %s68, %s71
      %p77 = scmp.eq.s32.totalorder %s9, 0
      %p78 = por %p76, %p77
      %p79 = scmp.ne.s32.totalorder %s68, %s71
      %p80 = scmp.eq.s32.totalorder %s14, 1
      %p81 = por %p79, %p80
      %p82 = scmp.ne.s32.totalorder %s71, %s72
      %p83 = scmp.eq.s32.totalorder %s14, 0
      %p84 = por %p82, %p83
      %p85 = scmp.ne.s32.totalorder %s71, %s72
      %p86 = scmp.eq.s32.totalorder %s15, 1
      %p87 = por %p85, %p86
      %p89 = scmp.ne.s32.totalorder %s72, %s88
      %p90 = scmp.eq.s32.totalorder %s15, 0
      %p91 = por %p89, %p90
      %s92 = ssub.s32 %s16, %s35
      %s93 = ssub.s32 %s17, %s31
      %s94 = sor.u32 %s92, %s93
      %p95 = scmp.eq.s32.totalorder %s94, 0
      %s97 = sadd.s32 %s96, 1
      %s98 = scalar_select %p95, %s96, %s97
      %p101 = pneg %p95
      %p102 = scmp.eq.s32.totalorder %s9, 1
      %p103 = por %p101, %p102
      %p104 = scmp.ne.s32.totalorder %s96, %s99
      %p105 = scmp.eq.s32.totalorder %s9, 0
      %p106 = por %p104, %p105
      %p107 = scmp.ne.s32.totalorder %s96, %s99
      %p108 = scmp.eq.s32.totalorder %s14, 1
      %p109 = por %p107, %p108
      %p110 = scmp.ne.s32.totalorder %s99, %s100
      %p111 = scmp.eq.s32.totalorder %s14, 0
      %p112 = por %p110, %p111
      %p113 = scmp.ne.s32.totalorder %s99, %s100
      %p114 = scmp.eq.s32.totalorder %s15, 1
      %p115 = por %p113, %p114
      %p117 = scmp.ne.s32.totalorder %s100, %s116
      %p118 = scmp.eq.s32.totalorder %s15, 0
      %p119 = por %p117, %p118
      %s120 = ssub.s32 %s16, %s35
      %s121 = ssub.s32 %s17, %s31
      %s122 = sor.u32 %s120, %s121
      %p123 = scmp.eq.s32.totalorder %s122, 0
      %s125 = sadd.s32 %s124, 1
      %s126 = scalar_select %p123, %s124, %s125
      %p129 = pneg %p123
      %p130 = scmp.eq.s32.totalorder %s9, 1
      %p131 = por %p129, %p130
      %p132 = scmp.ne.s32.totalorder %s124, %s127
      %p133 = scmp.eq.s32.totalorder %s9, 0
      %p134 = por %p132, %p133
      %p135 = scmp.ne.s32.totalorder %s124, %s127
      %p136 = scmp.eq.s32.totalorder %s14, 1
      %p137 = por %p135, %p136
      %p138 = scmp.ne.s32.totalorder %s127, %s128
      %p139 = scmp.eq.s32.totalorder %s14, 0
      %p140 = por %p138, %p139
      %p141 = scmp.ne.s32.totalorder %s127, %s128
      %p142 = scmp.eq.s32.totalorder %s15, 1
      %p143 = por %p141, %p142
      %p145 = scmp.ne.s32.totalorder %s128, %s144
      %p146 = scmp.eq.s32.totalorder %s15, 0
      %p147 = por %p145, %p146
      %p148 = scmp.le.s32.totalorder 1, %s9
      %p149 = scmp.lt.s32.totalorder %s9, 3
      %p150 = pnand %p148, %p149
      %p151 = pneg %p150
      // Predicated region
      $region9: #{lcab_apply.15} parent=5 // pred_check
        _
      $region10: #{lcab_apply.15} parent=5 // pred_check_branch
        %153 = sbr.rel (%p150) target = $region12
      $region11: #{lcab_apply.15} parent=5 // pred_region
        %s154 = ssub.s32 %s9, 1
        // Predicated region
        $region13: #{lcab_apply.15} parent=11 // pred_check
          %p155 = pneg %p56
        $region14: #{lcab_apply.15} parent=11 // pred_check_branch
          %157 = sbr.rel (%p155) target = $region16
        $region15: #{lcab_apply.15} parent=11 // pred_region
          %s158 = smul.u32 2, %s19
          %p159 = scmp.lt.s32.totalorder %s158, 1
          %s160 = scalar_select %p159, %s158, 1
          %p161 = scmp.lt.s32.totalorder %s21, 0
          %s162 = scalar_select %p161, %s21, 0
          %s163 = sadd.s32 %s162, %s160
          %s164 = smul.addr %s163, 4
          %s165 = scalar_lea.vmem %s0, %s164
          %s166 = smul.u32 2, %s19
        $region16: #{lcab_apply.15} parent=11 // pred_fallthru
          _
      $region12: #{lcab_apply.15} parent=5 // pred_fallthru
        _
      %p167 = scmp.lt.s32.totalorder %s9, 2
      // Predicated region
      $region17: #{lcab_apply.15} parent=5 // pred_check
        %p168 = pneg %p167
      $region18: #{lcab_apply.15} parent=5 // pred_check_branch
        %170 = sbr.rel (%p168) target = $region20
      $region19: #{lcab_apply.15} parent=5 // pred_region
        // Predicated region
        $region21: #{lcab_apply.15} parent=19 // pred_check
          %p171 = pneg %p78
        $region22: #{lcab_apply.15} parent=19 // pred_check_branch
          %173 = sbr.rel (%p171) target = $region24
        $region23: #{lcab_apply.15} parent=19 // pred_region
          %s174 = sand.u32 %s68, 1
          %s175 = sand.u32 %s68, 1
          %s176 = smul.addr %s175, 64
          %s177 = scalar_lea.vmem [#allocation3], %s176
          %s178 = smul.u32 8, %s18
          %s179 = smul.u32 2, %s17
          %s180 = smul.addr %s178, 4
          %s181 = sadd.s32 %s179, %s180
          %s182 = smul.addr %s181, 4
          %s183 = scalar_lea.vmem %s1, %s182
          // Predicated region
          $region25: #{lcab_apply.15} parent=23 // pred_check
            _
          $region26: #{lcab_apply.15} parent=23 // pred_check_branch
            %185 = sbr.rel (0) target = $region28
          $region27: #{lcab_apply.15} parent=23 // pred_region
            // Predicated region
            $region29: #{lcab_apply.15} parent=27 // pred_check
              _
            $region30: #{lcab_apply.15} parent=27 // pred_check_branch
              %187 = sbr.rel (0) target = $region32
            $region31: #{lcab_apply.15} parent=27 // pred_region
              // Predicated region
              $region44: #{lcab_apply.15} parent=31 // pred_check
                _
              $region45: #{lcab_apply.15} parent=31 // pred_check_branch
                %217 = sbr.rel (0) target = $region47
              $region46: #{lcab_apply.15} parent=31 // pred_region
                loop: start=0, step=1, limit=1
                $region48: #{lcab_apply.15} parent=46 // loop_pre_header
                  _
                $region49: #{lcab_apply.15} parent=46 // loop_header
                  %s219 = sphi 0, %s223
                  %p220 = scmp.ge.s32.totalorder %s219, 1
                  %s224 = sphi %s183, %s183
                  %s225 = sphi %s177, %s177
                $region50: #{lcab_apply.15} parent=46 // loop_header_branch
                  %222 = sbr.rel (%p220) target = $region54
                $region51: #{lcab_apply.15} parent=46 // loop_body
                  %v226 = vld [vmem:[%s224] sm:$0xff]
                  %227 = vst [vmem:[%s225] sm:$0xff] %v226
                  %v228 = vld [vmem:[%s224 + $0x10] sm:$0xff]
                  %229 = vst [vmem:[%s225 + $0x8] sm:$0xff] %v228
                  %v230 = vld [vmem:[%s224 + $0x20] sm:$0xff]
                  %231 = vst [vmem:[%s225 + $0x10] sm:$0xff] %v230
                  %v232 = vld [vmem:[%s224 + $0x30] sm:$0xff]
                  %233 = vst [vmem:[%s225 + $0x18] sm:$0xff] %v232
                  %v234 = vld [vmem:[%s224 + $0x40] sm:$0xff]
                  %235 = vst [vmem:[%s225 + $0x20] sm:$0xff] %v234
                  %v236 = vld [vmem:[%s224 + $0x50] sm:$0xff]
                  %237 = vst [vmem:[%s225 + $0x28] sm:$0xff] %v236
                  %v238 = vld [vmem:[%s224 + $0x60] sm:$0xff]
                  %239 = vst [vmem:[%s225 + $0x30] sm:$0xff] %v238
                  %v240 = vld [vmem:[%s224 + $0x70] sm:$0xff]
                  %241 = vst [vmem:[%s225 + $0x38] sm:$0xff] %v240
                $region52: #{lcab_apply.15} parent=46 // loop_footer
                  %s223 = sadd.s32 1, %s219
                $region53: #{lcab_apply.15} parent=46 // loop_footer_branch
                  %218 = sbr.rel target = $region49
                $region54: #{lcab_apply.15} parent=46 // loop_exit
                  _
              $region47: #{lcab_apply.15} parent=31 // pred_fallthru
                _
              // Predicated region
              $region55: #{lcab_apply.15} parent=31 // pred_check
                _
              $region56: #{lcab_apply.15} parent=31 // pred_check_branch
                %243 = sbr.rel target = $region58
              $region57: #{lcab_apply.15} parent=31 // pred_region
                _
              $region58: #{lcab_apply.15} parent=31 // pred_fallthru
                _
            $region32: #{lcab_apply.15} parent=27 // pred_fallthru
              _
            // Predicated region
            $region33: #{lcab_apply.15} parent=27 // pred_check
              _
            $region34: #{lcab_apply.15} parent=27 // pred_check_branch
              %189 = sbr.rel target = $region36
            $region35: #{lcab_apply.15} parent=27 // pred_region
              %s191 = ssub.s32 256, 1
              loop: start=0, step=1, limit=1
              $region37: #{lcab_apply.15} parent=35 // loop_pre_header
                _
              $region38: #{lcab_apply.15} parent=35 // loop_header
                %s193 = sphi 0, %s197
                %p194 = scmp.ge.s32.totalorder %s193, 1
                %s198 = sphi %s183, %s183
                %s199 = sphi %s177, %s177
              $region39: #{lcab_apply.15} parent=35 // loop_header_branch
                %196 = sbr.rel (%p194) target = $region43
              $region40: #{lcab_apply.15} parent=35 // loop_body
                %v200 = vld [vmem:[%s198] sm:%s191]
                %201 = vst [vmem:[%s199] sm:%s191] %v200
                %v202 = vld [vmem:[%s198 + $0x10] sm:%s191]
                %203 = vst [vmem:[%s199 + $0x8] sm:%s191] %v202
                %v204 = vld [vmem:[%s198 + $0x20] sm:%s191]
                %205 = vst [vmem:[%s199 + $0x10] sm:%s191] %v204
                %v206 = vld [vmem:[%s198 + $0x30] sm:%s191]
                %207 = vst [vmem:[%s199 + $0x18] sm:%s191] %v206
                %v208 = vld [vmem:[%s198 + $0x40] sm:%s191]
                %209 = vst [vmem:[%s199 + $0x20] sm:%s191] %v208
                %v210 = vld [vmem:[%s198 + $0x50] sm:%s191]
                %211 = vst [vmem:[%s199 + $0x28] sm:%s191] %v210
                %v212 = vld [vmem:[%s198 + $0x60] sm:%s191]
                %213 = vst [vmem:[%s199 + $0x30] sm:%s191] %v212
                %v214 = vld [vmem:[%s198 + $0x70] sm:%s191]
                %215 = vst [vmem:[%s199 + $0x38] sm:%s191] %v214
              $region41: #{lcab_apply.15} parent=35 // loop_footer
                %s197 = sadd.s32 1, %s193
              $region42: #{lcab_apply.15} parent=35 // loop_footer_branch
                %192 = sbr.rel target = $region38
              $region43: #{lcab_apply.15} parent=35 // loop_exit
                _
            $region36: #{lcab_apply.15} parent=27 // pred_fallthru
              _
          $region28: #{lcab_apply.15} parent=23 // pred_fallthru
            _
          %244 = vnop
        $region24: #{lcab_apply.15} parent=19 // pred_fallthru
          _
        // Predicated region
        $region59: #{lcab_apply.15} parent=19 // pred_check
          %p245 = pneg %p106
        $region60: #{lcab_apply.15} parent=19 // pred_check_branch
          %247 = sbr.rel (%p245) target = $region62
        $region61: #{lcab_apply.15} parent=19 // pred_region
          %s248 = sand.u32 %s96, 1
          %s249 = sand.u32 %s96, 1
          %s250 = smul.addr %s249, 32
          %s251 = scalar_lea.vmem [#allocation4], %s250
          %s252 = smul.u32 2, %s16
          %s253 = smul.u32 2, %s17
          %s254 = smul.addr %s252, 4
          %s255 = sadd.s32 %s253, %s254
          %s256 = smul.addr %s255, 8
          %s257 = scalar_lea.vmem %s2, %s256
          // Predicated region
          $region63: #{lcab_apply.15} parent=61 // pred_check
            _
          $region64: #{lcab_apply.15} parent=61 // pred_check_branch
            %259 = sbr.rel (0) target = $region66
          $region65: #{lcab_apply.15} parent=61 // pred_region
            // Predicated region
            $region67: #{lcab_apply.15} parent=65 // pred_check
              _
            $region68: #{lcab_apply.15} parent=65 // pred_check_branch
              %261 = sbr.rel (0) target = $region70
            $region69: #{lcab_apply.15} parent=65 // pred_region
              loop: start=0, step=1, limit=1
              $region71: #{lcab_apply.15} parent=69 // loop_pre_header
                _
              $region72: #{lcab_apply.15} parent=69 // loop_header
                %s263 = sphi 0, %s267
                %p264 = scmp.ge.s32.totalorder %s263, 1
                %s268 = sphi %s257, %s257
                %s269 = sphi %s251, %s251
              $region73: #{lcab_apply.15} parent=69 // loop_header_branch
                %266 = sbr.rel (%p264) target = $region77
              $region74: #{lcab_apply.15} parent=69 // loop_body
                %v270 = vld [vmem:[%s268] sm:$0xff]
                %271 = vst [vmem:[%s269] sm:$0xff] %v270
                %v272 = vld [vmem:[%s268 + $0x8] sm:$0xff]
                %273 = vst [vmem:[%s269 + $0x8] sm:$0xff] %v272
                %v274 = vld [vmem:[%s268 + $0x20] sm:$0xff]
                %275 = vst [vmem:[%s269 + $0x10] sm:$0xff] %v274
                %v276 = vld [vmem:[%s268 + $0x28] sm:$0xff]
                %277 = vst [vmem:[%s269 + $0x18] sm:$0xff] %v276
              $region75: #{lcab_apply.15} parent=69 // loop_footer
                %s267 = sadd.s32 1, %s263
              $region76: #{lcab_apply.15} parent=69 // loop_footer_branch
                %262 = sbr.rel target = $region72
              $region77: #{lcab_apply.15} parent=69 // loop_exit
                _
            $region70: #{lcab_apply.15} parent=65 // pred_fallthru
              _
            // Predicated region
            $region78: #{lcab_apply.15} parent=65 // pred_check
              _
            $region79: #{lcab_apply.15} parent=65 // pred_check_branch
              %279 = sbr.rel target = $region81
            $region80: #{lcab_apply.15} parent=65 // pred_region
              _
            $region81: #{lcab_apply.15} parent=65 // pred_fallthru
              _
          $region66: #{lcab_apply.15} parent=61 // pred_fallthru
            _
          %280 = vnop
        $region62: #{lcab_apply.15} parent=19 // pred_fallthru
          _
      $region20: #{lcab_apply.15} parent=5 // pred_fallthru
        _
      %p281 = scmp.le.s32.totalorder 1, %s9
      %p282 = scmp.lt.s32.totalorder %s9, 3
      %p283 = pnand %p281, %p282
      %p284 = pneg %p283
      // Predicated region
      $region82: #{lcab_apply.15} parent=5 // pred_check
        _
      $region83: #{lcab_apply.15} parent=5 // pred_check_branch
        %286 = sbr.rel (%p283) target = $region85
      $region84: #{lcab_apply.15} parent=5 // pred_region
        %s287 = ssub.s32 %s9, 1
        %s288 = sand.u32 %s71, 1
        %s289 = sand.u32 %s71, 1
        %s290 = smul.addr %s289, 64
        %s291 = scalar_lea.vmem [#allocation3], %s290
        // Predicated region
        $region86: #{lcab_apply.15} parent=84 // pred_check
          %p292 = pneg %p84
        $region87: #{lcab_apply.15} parent=84 // pred_check_branch
          %294 = sbr.rel (%p292) target = $region89
        $region88: #{lcab_apply.15} parent=84 // pred_region
          _
        $region89: #{lcab_apply.15} parent=84 // pred_fallthru
          _
        %s295 = sand.u32 %s99, 1
        %s296 = sand.u32 %s99, 1
        %s297 = smul.addr %s296, 32
        %s298 = scalar_lea.vmem [#allocation4], %s297
        // Predicated region
        $region90: #{lcab_apply.15} parent=84 // pred_check
          %p299 = pneg %p112
        $region91: #{lcab_apply.15} parent=84 // pred_check_branch
          %301 = sbr.rel (%p299) target = $region93
        $region92: #{lcab_apply.15} parent=84 // pred_region
          _
        $region93: #{lcab_apply.15} parent=84 // pred_fallthru
          _
        %s302 = smul.u32 2, %s19
        %p303 = scmp.lt.s32.totalorder %s302, 1
        %s304 = scalar_select %p303, %s302, 1
        %p305 = scmp.lt.s32.totalorder %s21, 0
        %s306 = scalar_select %p305, %s21, 0
        %s307 = sadd.s32 %s306, %s304
        %s308 = smul.addr %s307, 4
        %s309 = scalar_lea.vmem %s0, %s308
        %p310 = pneg %p56
        %p311 = pneg %p53
        %s312 = sand.u32 %s71, 1
        %s313 = sand.u32 %s71, 1
        %s314 = smul.addr %s313, 64
        %s315 = scalar_lea.vmem [#allocation3], %s314
        %p316 = pneg %p84
        %p317 = pneg %p81
        %s318 = sand.u32 %s99, 1
        %s319 = sand.u32 %s99, 1
        %s320 = smul.addr %s319, 32
        %s321 = scalar_lea.vmem [#allocation4], %s320
        %p322 = pneg %p112
        %p323 = pneg %p109
        %p324 = pneg %p140
        %p325 = pneg %p137
        %s326 = sand.u32 %s127, 1
        %s327 = sand.u32 %s127, 1
        %s328 = smul.addr %s327, 32
        %s329 = scalar_lea.vmem [#allocation5], %s328
        %s330 = smul.u32 2, %s19
        %p331 = scmp.lt.s32.totalorder %s330, 1
        %s332 = scalar_select %p331, %s330, 1
        %p333 = scmp.lt.s32.totalorder %s21, 0
        %s334 = scalar_select %p333, %s21, 0
        %s335 = sadd.s32 %s334, %s332
        %s336 = smul.addr %s335, 4
        %s337 = scalar_lea.vmem %s0, %s336
        %s338 = smul.u32 2, %s19
        %s339 = smul.u32 8, %s21
        %s340 = smul.u32 2, %s20
        %s341 = smul.u32 2, %s19
        %s342 = smul.u32 2, %s20
        %s343 = smul.u32 2, %s19
        %s344 = smul.u32 2, %s20
        %p346 = scmp.eq.s32.totalorder %s21, 0
        // Predicated region
        $region94: #{lcab_apply.15} parent=84 // pred_check
          %p347 = pneg %p346
        $region95: #{lcab_apply.15} parent=84 // pred_check_branch
          %349 = sbr.rel (%p347) target = $region97
        $region96: #{lcab_apply.15} parent=84 // pred_region
          %350 = vst [vmem:[#allocation2] sm:$0xff] 0.0
          %351 = vst [vmem:[#allocation2 + $0x8] sm:$0xff] 0.0
          %352 = vst [vmem:[#allocation2 + $0x10] sm:$0xff] 0.0
          %353 = vst [vmem:[#allocation2 + $0x18] sm:$0xff] 0.0
        $region97: #{lcab_apply.15} parent=84 // pred_fallthru
          _
        %v354 = vld [vmem:[#allocation2] sm:$0xff]
        %v355 = vld [vmem:[#allocation2 + $0x8] sm:$0xff]
        %v356 = vld [vmem:[#allocation2 + $0x10] sm:$0xff]
        %v357 = vld [vmem:[#allocation2 + $0x18] sm:$0xff]
        %v358 = vld [vmem:[%s337] sm:$0xf]
        %v359 = vld [vmem:[%s337 + $0x4] sm:$0xf]
        %v360 = vld [vmem:[%s291] sm:$0xff]
        %v361 = vld [vmem:[%s291 + $0x8] sm:$0xff]
        %v362 = vld [vmem:[%s291 + $0x10] sm:$0xff]
        %v363 = vld [vmem:[%s291 + $0x18] sm:$0xff]
        %v364 = vld [vmem:[%s291 + $0x20] sm:$0xff]
        %v365 = vld [vmem:[%s291 + $0x28] sm:$0xff]
        %v366 = vld [vmem:[%s291 + $0x30] sm:$0xff]
        %v367 = vld [vmem:[%s291 + $0x38] sm:$0xff]
        %v370 = vunpack.c.l.b16 %v358
        %v371 = vunpack.c.l.b16 %v359
        %v372 = vpack.c.b16 %v371, %v370
        %v381 = vunpack.c.l.b16 %v360
        %v382 = vunpack.c.h.b16 %v360
        %v383 = vunpack.c.l.b16 %v361
        %v384 = vunpack.c.h.b16 %v361
        %v385 = vunpack.c.l.b16 %v362
        %v386 = vunpack.c.h.b16 %v362
        %v387 = vunpack.c.l.b16 %v363
        %v388 = vunpack.c.h.b16 %v363
        %v389 = vunpack.c.l.b16 %v364
        %v390 = vunpack.c.h.b16 %v364
        %v391 = vunpack.c.l.b16 %v365
        %v392 = vunpack.c.h.b16 %v365
        %v393 = vunpack.c.l.b16 %v366
        %v394 = vunpack.c.h.b16 %v366
        %v395 = vunpack.c.l.b16 %v367
        %v396 = vunpack.c.h.b16 %v367
        %v397 = vpack.c.b16 %v383, %v381
        %v398 = vpack.c.b16 %v384, %v382
        %v399 = vpack.c.b16 %v387, %v385
        %v400 = vpack.c.b16 %v388, %v386
        %v401 = vpack.c.b16 %v391, %v389
        %v402 = vpack.c.b16 %v392, %v390
        %v403 = vpack.c.b16 %v395, %v393
        %v404 = vpack.c.b16 %v396, %v394
        %vm413 = vcmask 523264
        %v415 = vsel %vm413, %v372, 0
        %417 = vmatprep.subr.bf16.mxu0 0
        %418 = vmatpush1.bf16.msra.mxu0 0
        %419 = vmatprep.subr.bf16.mxu0 0
        %420 = vmatpush1.bf16.msra.mxu0 0
        %421 = vmatprep.subr.bf16.mxu0 0
        %422 = vmatpush1.bf16.msra.mxu0 0
        %423 = vmatprep.subr.bf16.mxu0 0
        %424 = vmatpush1.bf16.msra.mxu0 0
        %425 = vmatprep.subr.bf16.mxu0 %v404
        %426 = vmatpush1.bf16.msra.mxu0 %v403
        %427 = vmatprep.subr.bf16.mxu0 %v402
        %428 = vmatpush1.bf16.msra.mxu0 %v401
        %429 = vmatprep.subr.bf16.mxu0 %v400
        %430 = vmatpush1.bf16.msra.mxu0 %v399
        %431 = vmatprep.subr.bf16.mxu0 %v398
        %432 = vmatpush1.bf16.msra.mxu0 %v397
        %433 = vmatprep.subr.bf16.mxu0 0
        %434 = vmatpush2.bf16.msra.mxu0 0
        %435 = vmatprep.subr.bf16.mxu0 0
        %436 = vmatpush2.bf16.msra.mxu0 0
        %437 = vmatprep.subr.bf16.mxu0 0
        %438 = vmatpush2.bf16.msra.mxu0 0
        %439 = vmatprep.subr.bf16.mxu0 0
        %440 = vmatpush2.bf16.msra.mxu0 0
        %441 = vmatprep.subr.bf16.mxu0 0
        %442 = vmatpush2.bf16.msra.mxu0 0
        %443 = vmatprep.subr.bf16.mxu0 0
        %444 = vmatpush2.bf16.msra.mxu0 0
        %445 = vmatprep.subr.bf16.mxu0 0
        %446 = vmatpush2.bf16.msra.mxu0 0
        %447 = vmatprep.subr.bf16.mxu0 0
        %448 = vmatpush2.bf16.msra.mxu0 0
        %449 = vmatprep.mubr.bf16.mxu0 0
        %450 = vmatmul.mubr.bf16.gmra.mxu0 %v415
        %v451 = vpop.f32.mrf.mxu0
        %v452 = vadd.f32 0.0, %v451
        %v453 = vpop.f32.mrf.mxu0
        %v454 = vadd.f32 0.0, %v453
        %v455 = vpop.f32.mrf.mxu0
        %v456 = vadd.f32 0.0, %v455
        %v457 = vpop.f32.mrf.mxu0
        %v458 = vadd.f32 0.0, %v457
        %459 = vdwg.mxu0
        %v460 = vadd.f32 %v354, %v452
        %v461 = vadd.f32 %v355, %v454
        %v462 = vadd.f32 %v356, %v456
        %v463 = vadd.f32 %v357, %v458
        %464 = vst [vmem:[#allocation2] sm:$0xff] %v460
        %465 = vst [vmem:[#allocation2 + $0x8] sm:$0xff] %v461
        %466 = vst [vmem:[#allocation2 + $0x10] sm:$0xff] %v462
        %467 = vst [vmem:[#allocation2 + $0x18] sm:$0xff] %v463
        // Predicated region
        $region98: #{lcab_apply.15} parent=84 // pred_check
          %p468 = pneg %p346
        $region99: #{lcab_apply.15} parent=84 // pred_check_branch
          %470 = sbr.rel (%p468) target = $region101
        $region100: #{lcab_apply.15} parent=84 // pred_region
          %v471 = vld [vmem:[#allocation2] sm:$0xff]
          %v472 = vld [vmem:[#allocation2 + $0x8] sm:$0xff]
          %v473 = vld [vmem:[#allocation2 + $0x10] sm:$0xff]
          %v474 = vld [vmem:[#allocation2 + $0x18] sm:$0xff]
          %v475 = vld [vmem:[%s298] sm:$0xff]
          %v476 = vld [vmem:[%s298 + $0x8] sm:$0xff]
          %v477 = vld [vmem:[%s298 + $0x10] sm:$0xff]
          %v478 = vld [vmem:[%s298 + $0x18] sm:$0xff]
          %v479 = vadd.f32 %v471, %v475
          %v480 = vadd.f32 %v472, %v476
          %v481 = vadd.f32 %v473, %v477
          %v482 = vadd.f32 %v474, %v478
          %483 = vst [vmem:[%s329] sm:$0xff] %v479
          %484 = vst [vmem:[%s329 + $0x8] sm:$0xff] %v480
          %485 = vst [vmem:[%s329 + $0x10] sm:$0xff] %v481
          %486 = vst [vmem:[%s329 + $0x18] sm:$0xff] %v482
        $region101: #{lcab_apply.15} parent=84 // pred_fallthru
          _
        %s487 = sand.u32 %s127, 1
        %s488 = sand.u32 %s127, 1
        %s489 = smul.addr %s488, 32
        %s490 = scalar_lea.vmem [#allocation5], %s489
        // Predicated region
        $region102: #{lcab_apply.15} parent=84 // pred_check
          %p491 = pneg %p137
        $region103: #{lcab_apply.15} parent=84 // pred_check_branch
          %493 = sbr.rel (%p491) target = $region105
        $region104: #{lcab_apply.15} parent=84 // pred_region
          %s494 = smul.u32 2, %s19
          %s495 = smul.u32 2, %s20
          %s496 = smul.addr %s494, 4
          %s497 = sadd.s32 %s495, %s496
          %s498 = smul.addr %s497, 8
          %s499 = scalar_lea.vmem %s3, %s498
          // Predicated region
          $region106: #{lcab_apply.15} parent=104 // pred_check
            _
          $region107: #{lcab_apply.15} parent=104 // pred_check_branch
            %501 = sbr.rel (0) target = $region109
          $region108: #{lcab_apply.15} parent=104 // pred_region
            // Predicated region
            $region110: #{lcab_apply.15} parent=108 // pred_check
              _
            $region111: #{lcab_apply.15} parent=108 // pred_check_branch
              %503 = sbr.rel (0) target = $region113
            $region112: #{lcab_apply.15} parent=108 // pred_region
              loop: start=0, step=1, limit=1
              $region114: #{lcab_apply.15} parent=112 // loop_pre_header
                _
              $region115: #{lcab_apply.15} parent=112 // loop_header
                %s505 = sphi 0, %s509
                %p506 = scmp.ge.s32.totalorder %s505, 1
                %s510 = sphi %s490, %s490
                %s511 = sphi %s499, %s499
              $region116: #{lcab_apply.15} parent=112 // loop_header_branch
                %508 = sbr.rel (%p506) target = $region120
              $region117: #{lcab_apply.15} parent=112 // loop_body
                %v512 = vld [vmem:[%s510] sm:$0xff]
                %513 = vst [vmem:[%s511] sm:$0xff] %v512
                %v514 = vld [vmem:[%s510 + $0x8] sm:$0xff]
                %515 = vst [vmem:[%s511 + $0x8] sm:$0xff] %v514
                %v516 = vld [vmem:[%s510 + $0x10] sm:$0xff]
                %517 = vst [vmem:[%s511 + $0x20] sm:$0xff] %v516
                %v518 = vld [vmem:[%s510 + $0x18] sm:$0xff]
                %519 = vst [vmem:[%s511 + $0x28] sm:$0xff] %v518
              $region118: #{lcab_apply.15} parent=112 // loop_footer
                %s509 = sadd.s32 1, %s505
              $region119: #{lcab_apply.15} parent=112 // loop_footer_branch
                %504 = sbr.rel target = $region115
              $region120: #{lcab_apply.15} parent=112 // loop_exit
                _
            $region113: #{lcab_apply.15} parent=108 // pred_fallthru
              _
            // Predicated region
            $region121: #{lcab_apply.15} parent=108 // pred_check
              _
            $region122: #{lcab_apply.15} parent=108 // pred_check_branch
              %521 = sbr.rel target = $region124
            $region123: #{lcab_apply.15} parent=108 // pred_region
              _
            $region124: #{lcab_apply.15} parent=108 // pred_fallthru
              _
          $region109: #{lcab_apply.15} parent=104 // pred_fallthru
            _
          %522 = vnop
        $region105: #{lcab_apply.15} parent=84 // pred_fallthru
          _
      $region85: #{lcab_apply.15} parent=5 // pred_fallthru
        _
      %p523 = scmp.le.s32.totalorder 2, %s9
      // Predicated region
      $region125: #{lcab_apply.15} parent=5 // pred_check
        %p524 = pneg %p523
      $region126: #{lcab_apply.15} parent=5 // pred_check_branch
        %526 = sbr.rel (%p524) target = $region128
      $region127: #{lcab_apply.15} parent=5 // pred_region
        %s527 = ssub.s32 %s9, 2
        // Predicated region
        $region129: #{lcab_apply.15} parent=127 // pred_check
          %p528 = pneg %p143
        $region130: #{lcab_apply.15} parent=127 // pred_check_branch
          %530 = sbr.rel (%p528) target = $region132
        $region131: #{lcab_apply.15} parent=127 // pred_region
          %s531 = sand.u32 %s128, 1
          %s532 = sand.u32 %s128, 1
          %s533 = smul.addr %s532, 32
          %s534 = scalar_lea.vmem [#allocation5], %s533
        $region132: #{lcab_apply.15} parent=127 // pred_fallthru
          _
      $region128: #{lcab_apply.15} parent=5 // pred_fallthru
        _
    $region6: #{lcab_apply.15} parent=1 // loop_footer
      %s13 = sadd.s32 1, %s9
    $region7: #{lcab_apply.15} parent=1 // loop_footer_branch
      %8 = sbr.rel target = $region3
    $region8: #{lcab_apply.15} parent=1 // loop_exit
      _

// kernel: lcab_apply.16
$region0: #{lcab_apply.16}
  #allocation0 [shape = 'u32[]', space=smem, size = 0x4, offset = 0x4, fixed_abs, tag = 'smem constant byte address 0x4 - core index']
  #allocation1 [shape = 'u32[144,128]{1,0:T(1,128)}', space=vmem, size = 0x12000, scoped, tag = 'internal scratch']
  #allocation2 [shape = 'f32[16,256]{1,0:T(8,128)}', space=vmem, size = 0x4000, scoped, tag = 'scratch operand']
  %s0 = inlined_call_operand.vmem [shape: bf16[16,64], index: 0, kind: input, shape index: {}]
  %s1 = inlined_call_operand.vmem [shape: bf16[64,512], index: 1, kind: input, shape index: {}]
  %s2 = inlined_call_operand.vmem [shape: f32[16,1], index: 2, kind: input, shape index: {}]
  %s3 = inlined_call_operand.vmem [shape: bf16[16,512], index: 3, kind: output, shape index: {}]
  %s4 = sld [smem:[#allocation0]]
  $region125: #{lcab_apply.16} parent=0
    _
  %s6 = ssub.s32 1, %s4
  %s7 = scalar_select 0, %s6, %s4
  $region1: #{lcab_apply.16} parent=0
    #allocation3 [shape = 'u8[65536]{0}', space=vmem, size = 0x10000, scoped, tag = 'input window, operand 1']
    #allocation4 [shape = 'u8[16384]{0}', space=vmem, size = 0x4000, scoped, tag = 'output window, operand 0']
    loop: start=0, step=1, limit=4
    $region2: #{lcab_apply.16} parent=1 // loop_pre_header
      _
    $region3: #{lcab_apply.16} parent=1 // loop_header
      %s9 = sphi 0, %s13
      %p10 = scmp.ge.s32.totalorder %s9, 4
      %s16 = sphi 0, %s35
      %s17 = sphi 0, %s31
      %s18 = sphi 0, %s27
      %s19 = sphi 0, %s16
      %s20 = sphi 0, %s17
      %s21 = sphi 0, %s18
      %s22 = sphi 0, %s19
      %s23 = sphi 0, %s20
      %s24 = sphi 0, %s21
      %s40 = sphi 0, %s42
      %s43 = sphi 0, %s40
      %s44 = sphi 0, %s43
      %s60 = sphi 0, %s44
      %s68 = sphi 0, %s70
      %s71 = sphi 0, %s68
      %s72 = sphi 0, %s71
      %s88 = sphi 0, %s72
      %s94 = sphi 0, %s96
      %s97 = sphi 0, %s94
      %s98 = sphi 0, %s97
      %s114 = sphi 0, %s98
      %s122 = sphi 0, %s124
      %s125 = sphi 0, %s122
      %s126 = sphi 0, %s125
      %s142 = sphi 0, %s126
    $region4: #{lcab_apply.16} parent=1 // loop_header_branch
      %12 = sbr.rel (%p10) target = $region8
    $region5: #{lcab_apply.16} parent=1 // loop_body
      %s14 = ssub.s32 %s9, 1
      %s15 = ssub.s32 %s9, 2
      %s25 = sadd.s32 1, %s18
      %p26 = scmp.ge.s32.totalorder %s25, 1
      %s27 = scalar_select %p26, 0, %s25
      %s28 = sadd.s32 1, %s17
      %s29 = scalar_select %p26, %s28, %s17
      %p30 = scmp.ge.s32.totalorder %s29, 2
      %s31 = scalar_select %p30, 0, %s29
      %s32 = sadd.s32 1, %s16
      %s33 = scalar_select %p30, %s32, %s16
      %p34 = scmp.ge.s32.totalorder %s33, 1
      %s35 = scalar_select %p34, 0, %s33
      %s36 = ssub.s32 %s16, %s35
      %s37 = ssub.s32 %s18, %s27
      %s38 = sor.u32 %s36, %s37
      %p39 = scmp.eq.s32.totalorder %s38, 0
      %s41 = sadd.s32 %s40, 1
      %s42 = scalar_select %p39, %s40, %s41
      %p45 = pneg %p39
      %p46 = scmp.eq.s32.totalorder %s9, 1
      %p47 = por %p45, %p46
      %p48 = scmp.ne.s32.totalorder %s40, %s43
      %p49 = scmp.eq.s32.totalorder %s9, 0
      %p50 = por %p48, %p49
      %p51 = scmp.ne.s32.totalorder %s40, %s43
      %p52 = scmp.eq.s32.totalorder %s14, 1
      %p53 = por %p51, %p52
      %p54 = scmp.ne.s32.totalorder %s43, %s44
      %p55 = scmp.eq.s32.totalorder %s14, 0
      %p56 = por %p54, %p55
      %p57 = scmp.ne.s32.totalorder %s43, %s44
      %p58 = scmp.eq.s32.totalorder %s15, 1
      %p59 = por %p57, %p58
      %p61 = scmp.ne.s32.totalorder %s44, %s60
      %p62 = scmp.eq.s32.totalorder %s15, 0
      %p63 = por %p61, %p62
      %s64 = ssub.s32 %s18, %s27
      %s65 = ssub.s32 %s17, %s31
      %s66 = sor.u32 %s64, %s65
      %p67 = scmp.eq.s32.totalorder %s66, 0
      %s69 = sadd.s32 %s68, 1
      %s70 = scalar_select %p67, %s68, %s69
      %p73 = pneg %p67
      %p74 = scmp.eq.s32.totalorder %s9, 1
      %p75 = por %p73, %p74
      %p76 = scmp.ne.s32.totalorder %s68, %s71
      %p77 = scmp.eq.s32.totalorder %s9, 0
      %p78 = por %p76, %p77
      %p79 = scmp.ne.s32.totalorder %s68, %s71
      %p80 = scmp.eq.s32.totalorder %s14, 1
      %p81 = por %p79, %p80
      %p82 = scmp.ne.s32.totalorder %s71, %s72
      %p83 = scmp.eq.s32.totalorder %s14, 0
      %p84 = por %p82, %p83
      %p85 = scmp.ne.s32.totalorder %s71, %s72
      %p86 = scmp.eq.s32.totalorder %s15, 1
      %p87 = por %p85, %p86
      %p89 = scmp.ne.s32.totalorder %s72, %s88
      %p90 = scmp.eq.s32.totalorder %s15, 0
      %p91 = por %p89, %p90
      %s92 = ssub.s32 %s16, %s35
      %p93 = scmp.eq.s32.totalorder %s92, 0
      %s95 = sadd.s32 %s94, 1
      %s96 = scalar_select %p93, %s94, %s95
      %p99 = pneg %p93
      %p100 = scmp.eq.s32.totalorder %s9, 1
      %p101 = por %p99, %p100
      %p102 = scmp.ne.s32.totalorder %s94, %s97
      %p103 = scmp.eq.s32.totalorder %s9, 0
      %p104 = por %p102, %p103
      %p105 = scmp.ne.s32.totalorder %s94, %s97
      %p106 = scmp.eq.s32.totalorder %s14, 1
      %p107 = por %p105, %p106
      %p108 = scmp.ne.s32.totalorder %s97, %s98
      %p109 = scmp.eq.s32.totalorder %s14, 0
      %p110 = por %p108, %p109
      %p111 = scmp.ne.s32.totalorder %s97, %s98
      %p112 = scmp.eq.s32.totalorder %s15, 1
      %p113 = por %p111, %p112
      %p115 = scmp.ne.s32.totalorder %s98, %s114
      %p116 = scmp.eq.s32.totalorder %s15, 0
      %p117 = por %p115, %p116
      %s118 = ssub.s32 %s16, %s35
      %s119 = ssub.s32 %s17, %s31
      %s120 = sor.u32 %s118, %s119
      %p121 = scmp.eq.s32.totalorder %s120, 0
      %s123 = sadd.s32 %s122, 1
      %s124 = scalar_select %p121, %s122, %s123
      %p127 = pneg %p121
      %p128 = scmp.eq.s32.totalorder %s9, 1
      %p129 = por %p127, %p128
      %p130 = scmp.ne.s32.totalorder %s122, %s125
      %p131 = scmp.eq.s32.totalorder %s9, 0
      %p132 = por %p130, %p131
      %p133 = scmp.ne.s32.totalorder %s122, %s125
      %p134 = scmp.eq.s32.totalorder %s14, 1
      %p135 = por %p133, %p134
      %p136 = scmp.ne.s32.totalorder %s125, %s126
      %p137 = scmp.eq.s32.totalorder %s14, 0
      %p138 = por %p136, %p137
      %p139 = scmp.ne.s32.totalorder %s125, %s126
      %p140 = scmp.eq.s32.totalorder %s15, 1
      %p141 = por %p139, %p140
      %p143 = scmp.ne.s32.totalorder %s126, %s142
      %p144 = scmp.eq.s32.totalorder %s15, 0
      %p145 = por %p143, %p144
      %p146 = scmp.le.s32.totalorder 1, %s9
      %p147 = scmp.lt.s32.totalorder %s9, 3
      %p148 = pnand %p146, %p147
      %p149 = pneg %p148
      // Predicated region
      $region9: #{lcab_apply.16} parent=5 // pred_check
        _
      $region10: #{lcab_apply.16} parent=5 // pred_check_branch
        %151 = sbr.rel (%p148) target = $region12
      $region11: #{lcab_apply.16} parent=5 // pred_region
        %s152 = ssub.s32 %s9, 1
        // Predicated region
        $region13: #{lcab_apply.16} parent=11 // pred_check
          %p153 = pneg %p56
        $region14: #{lcab_apply.16} parent=11 // pred_check_branch
          %155 = sbr.rel (%p153) target = $region16
        $region15: #{lcab_apply.16} parent=11 // pred_region
          %s156 = smul.u32 2, %s19
          %p157 = scmp.lt.s32.totalorder %s156, 1
          %s158 = scalar_select %p157, %s156, 1
          %p159 = scmp.lt.s32.totalorder %s21, 0
          %s160 = scalar_select %p159, %s21, 0
          %s161 = sadd.s32 %s160, %s158
          %s162 = smul.addr %s161, 4
          %s163 = scalar_lea.vmem %s0, %s162
          %s164 = smul.u32 2, %s19
        $region16: #{lcab_apply.16} parent=11 // pred_fallthru
          _
        // Predicated region
        $region17: #{lcab_apply.16} parent=11 // pred_check
          %p165 = pneg %p110
        $region18: #{lcab_apply.16} parent=11 // pred_check_branch
          %167 = sbr.rel (%p165) target = $region20
        $region19: #{lcab_apply.16} parent=11 // pred_region
          %s168 = smul.u32 2, %s19
          %p169 = scmp.lt.s32.totalorder %s168, 1
          %s170 = scalar_select %p169, %s168, 1
          %s171 = smul.addr %s170, 8
          %s172 = scalar_lea.vmem %s2, %s171
          %s173 = smul.u32 2, %s19
        $region20: #{lcab_apply.16} parent=11 // pred_fallthru
          _
      $region12: #{lcab_apply.16} parent=5 // pred_fallthru
        _
      %p174 = scmp.lt.s32.totalorder %s9, 2
      // Predicated region
      $region21: #{lcab_apply.16} parent=5 // pred_check
        %p175 = pneg %p174
      $region22: #{lcab_apply.16} parent=5 // pred_check_branch
        %177 = sbr.rel (%p175) target = $region24
      $region23: #{lcab_apply.16} parent=5 // pred_region
        // Predicated region
        $region25: #{lcab_apply.16} parent=23 // pred_check
          %p178 = pneg %p78
        $region26: #{lcab_apply.16} parent=23 // pred_check_branch
          %180 = sbr.rel (%p178) target = $region28
        $region27: #{lcab_apply.16} parent=23 // pred_region
          %s181 = sand.u32 %s68, 1
          %s182 = sand.u32 %s68, 1
          %s183 = smul.addr %s182, 64
          %s184 = scalar_lea.vmem [#allocation3], %s183
          %s185 = smul.u32 8, %s18
          %s186 = smul.u32 2, %s17
          %s187 = smul.addr %s185, 4
          %s188 = sadd.s32 %s186, %s187
          %s189 = smul.addr %s188, 4
          %s190 = scalar_lea.vmem %s1, %s189
          // Predicated region
          $region29: #{lcab_apply.16} parent=27 // pred_check
            _
          $region30: #{lcab_apply.16} parent=27 // pred_check_branch
            %192 = sbr.rel (0) target = $region32
          $region31: #{lcab_apply.16} parent=27 // pred_region
            // Predicated region
            $region33: #{lcab_apply.16} parent=31 // pred_check
              _
            $region34: #{lcab_apply.16} parent=31 // pred_check_branch
              %194 = sbr.rel (0) target = $region36
            $region35: #{lcab_apply.16} parent=31 // pred_region
              // Predicated region
              $region48: #{lcab_apply.16} parent=35 // pred_check
                _
              $region49: #{lcab_apply.16} parent=35 // pred_check_branch
                %224 = sbr.rel (0) target = $region51
              $region50: #{lcab_apply.16} parent=35 // pred_region
                loop: start=0, step=1, limit=1
                $region52: #{lcab_apply.16} parent=50 // loop_pre_header
                  _
                $region53: #{lcab_apply.16} parent=50 // loop_header
                  %s226 = sphi 0, %s230
                  %p227 = scmp.ge.s32.totalorder %s226, 1
                  %s231 = sphi %s190, %s190
                  %s232 = sphi %s184, %s184
                $region54: #{lcab_apply.16} parent=50 // loop_header_branch
                  %229 = sbr.rel (%p227) target = $region58
                $region55: #{lcab_apply.16} parent=50 // loop_body
                  %v233 = vld [vmem:[%s231] sm:$0xff]
                  %234 = vst [vmem:[%s232] sm:$0xff] %v233
                  %v235 = vld [vmem:[%s231 + $0x10] sm:$0xff]
                  %236 = vst [vmem:[%s232 + $0x8] sm:$0xff] %v235
                  %v237 = vld [vmem:[%s231 + $0x20] sm:$0xff]
                  %238 = vst [vmem:[%s232 + $0x10] sm:$0xff] %v237
                  %v239 = vld [vmem:[%s231 + $0x30] sm:$0xff]
                  %240 = vst [vmem:[%s232 + $0x18] sm:$0xff] %v239
                  %v241 = vld [vmem:[%s231 + $0x40] sm:$0xff]
                  %242 = vst [vmem:[%s232 + $0x20] sm:$0xff] %v241
                  %v243 = vld [vmem:[%s231 + $0x50] sm:$0xff]
                  %244 = vst [vmem:[%s232 + $0x28] sm:$0xff] %v243
                  %v245 = vld [vmem:[%s231 + $0x60] sm:$0xff]
                  %246 = vst [vmem:[%s232 + $0x30] sm:$0xff] %v245
                  %v247 = vld [vmem:[%s231 + $0x70] sm:$0xff]
                  %248 = vst [vmem:[%s232 + $0x38] sm:$0xff] %v247
                $region56: #{lcab_apply.16} parent=50 // loop_footer
                  %s230 = sadd.s32 1, %s226
                $region57: #{lcab_apply.16} parent=50 // loop_footer_branch
                  %225 = sbr.rel target = $region53
                $region58: #{lcab_apply.16} parent=50 // loop_exit
                  _
              $region51: #{lcab_apply.16} parent=35 // pred_fallthru
                _
              // Predicated region
              $region59: #{lcab_apply.16} parent=35 // pred_check
                _
              $region60: #{lcab_apply.16} parent=35 // pred_check_branch
                %250 = sbr.rel target = $region62
              $region61: #{lcab_apply.16} parent=35 // pred_region
                _
              $region62: #{lcab_apply.16} parent=35 // pred_fallthru
                _
            $region36: #{lcab_apply.16} parent=31 // pred_fallthru
              _
            // Predicated region
            $region37: #{lcab_apply.16} parent=31 // pred_check
              _
            $region38: #{lcab_apply.16} parent=31 // pred_check_branch
              %196 = sbr.rel target = $region40
            $region39: #{lcab_apply.16} parent=31 // pred_region
              %s198 = ssub.s32 256, 1
              loop: start=0, step=1, limit=1
              $region41: #{lcab_apply.16} parent=39 // loop_pre_header
                _
              $region42: #{lcab_apply.16} parent=39 // loop_header
                %s200 = sphi 0, %s204
                %p201 = scmp.ge.s32.totalorder %s200, 1
                %s205 = sphi %s190, %s190
                %s206 = sphi %s184, %s184
              $region43: #{lcab_apply.16} parent=39 // loop_header_branch
                %203 = sbr.rel (%p201) target = $region47
              $region44: #{lcab_apply.16} parent=39 // loop_body
                %v207 = vld [vmem:[%s205] sm:%s198]
                %208 = vst [vmem:[%s206] sm:%s198] %v207
                %v209 = vld [vmem:[%s205 + $0x10] sm:%s198]
                %210 = vst [vmem:[%s206 + $0x8] sm:%s198] %v209
                %v211 = vld [vmem:[%s205 + $0x20] sm:%s198]
                %212 = vst [vmem:[%s206 + $0x10] sm:%s198] %v211
                %v213 = vld [vmem:[%s205 + $0x30] sm:%s198]
                %214 = vst [vmem:[%s206 + $0x18] sm:%s198] %v213
                %v215 = vld [vmem:[%s205 + $0x40] sm:%s198]
                %216 = vst [vmem:[%s206 + $0x20] sm:%s198] %v215
                %v217 = vld [vmem:[%s205 + $0x50] sm:%s198]
                %218 = vst [vmem:[%s206 + $0x28] sm:%s198] %v217
                %v219 = vld [vmem:[%s205 + $0x60] sm:%s198]
                %220 = vst [vmem:[%s206 + $0x30] sm:%s198] %v219
                %v221 = vld [vmem:[%s205 + $0x70] sm:%s198]
                %222 = vst [vmem:[%s206 + $0x38] sm:%s198] %v221
              $region45: #{lcab_apply.16} parent=39 // loop_footer
                %s204 = sadd.s32 1, %s200
              $region46: #{lcab_apply.16} parent=39 // loop_footer_branch
                %199 = sbr.rel target = $region42
              $region47: #{lcab_apply.16} parent=39 // loop_exit
                _
            $region40: #{lcab_apply.16} parent=31 // pred_fallthru
              _
          $region32: #{lcab_apply.16} parent=27 // pred_fallthru
            _
          %251 = vnop
        $region28: #{lcab_apply.16} parent=23 // pred_fallthru
          _
      $region24: #{lcab_apply.16} parent=5 // pred_fallthru
        _
      %p252 = scmp.le.s32.totalorder 1, %s9
      %p253 = scmp.lt.s32.totalorder %s9, 3
      %p254 = pnand %p252, %p253
      %p255 = pneg %p254
      // Predicated region
      $region63: #{lcab_apply.16} parent=5 // pred_check
        _
      $region64: #{lcab_apply.16} parent=5 // pred_check_branch
        %257 = sbr.rel (%p254) target = $region66
      $region65: #{lcab_apply.16} parent=5 // pred_region
        %s258 = ssub.s32 %s9, 1
        %s259 = sand.u32 %s71, 1
        %s260 = sand.u32 %s71, 1
        %s261 = smul.addr %s260, 64
        %s262 = scalar_lea.vmem [#allocation3], %s261
        // Predicated region
        $region67: #{lcab_apply.16} parent=65 // pred_check
          %p263 = pneg %p84
        $region68: #{lcab_apply.16} parent=65 // pred_check_branch
          %265 = sbr.rel (%p263) target = $region70
        $region69: #{lcab_apply.16} parent=65 // pred_region
          _
        $region70: #{lcab_apply.16} parent=65 // pred_fallthru
          _
        %s266 = smul.u32 2, %s19
        %p267 = scmp.lt.s32.totalorder %s266, 1
        %s268 = scalar_select %p267, %s266, 1
        %p269 = scmp.lt.s32.totalorder %s21, 0
        %s270 = scalar_select %p269, %s21, 0
        %s271 = sadd.s32 %s270, %s268
        %s272 = smul.addr %s271, 4
        %s273 = scalar_lea.vmem %s0, %s272
        %p274 = pneg %p56
        %p275 = pneg %p53
        %s276 = sand.u32 %s71, 1
        %s277 = sand.u32 %s71, 1
        %s278 = smul.addr %s277, 64
        %s279 = scalar_lea.vmem [#allocation3], %s278
        %p280 = pneg %p84
        %p281 = pneg %p81
        %s282 = smul.u32 2, %s19
        %p283 = scmp.lt.s32.totalorder %s282, 1
        %s284 = scalar_select %p283, %s282, 1
        %s285 = smul.addr %s284, 8
        %s286 = scalar_lea.vmem %s2, %s285
        %p287 = pneg %p110
        %p288 = pneg %p107
        %p289 = pneg %p138
        %p290 = pneg %p135
        %s291 = sand.u32 %s125, 1
        %s292 = sand.u32 %s125, 1
        %s293 = smul.addr %s292, 16
        %s294 = scalar_lea.vmem [#allocation4], %s293
        %s295 = smul.u32 2, %s19
        %p296 = scmp.lt.s32.totalorder %s295, 1
        %s297 = scalar_select %p296, %s295, 1
        %p298 = scmp.lt.s32.totalorder %s21, 0
        %s299 = scalar_select %p298, %s21, 0
        %s300 = sadd.s32 %s299, %s297
        %s301 = smul.addr %s300, 4
        %s302 = scalar_lea.vmem %s0, %s301
        %s303 = smul.u32 2, %s19
        %s304 = smul.u32 8, %s21
        %s305 = smul.u32 2, %s20
        %s306 = smul.u32 2, %s19
        %p307 = scmp.lt.s32.totalorder %s306, 1
        %s308 = scalar_select %p307, %s306, 1
        %s309 = smul.addr %s308, 8
        %s310 = scalar_lea.vmem %s2, %s309
        %s311 = smul.u32 2, %s19
        %s312 = smul.u32 2, %s19
        %s313 = smul.u32 2, %s20
        %p315 = scmp.eq.s32.totalorder %s21, 0
        // Predicated region
        $region71: #{lcab_apply.16} parent=65 // pred_check
          %p316 = pneg %p315
        $region72: #{lcab_apply.16} parent=65 // pred_check_branch
          %318 = sbr.rel (%p316) target = $region74
        $region73: #{lcab_apply.16} parent=65 // pred_region
          %319 = vst [vmem:[#allocation2] sm:$0xff] 0.0
          %320 = vst [vmem:[#allocation2 + $0x8] sm:$0xff] 0.0
          %321 = vst [vmem:[#allocation2 + $0x10] sm:$0xff] 0.0
          %322 = vst [vmem:[#allocation2 + $0x18] sm:$0xff] 0.0
        $region74: #{lcab_apply.16} parent=65 // pred_fallthru
          _
        %v323 = vld [vmem:[#allocation2] sm:$0xff]
        %v324 = vld [vmem:[#allocation2 + $0x8] sm:$0xff]
        %v325 = vld [vmem:[#allocation2 + $0x10] sm:$0xff]
        %v326 = vld [vmem:[#allocation2 + $0x18] sm:$0xff]
        %v327 = vld [vmem:[%s302] sm:$0xf]
        %v328 = vld [vmem:[%s302 + $0x4] sm:$0xf]
        %v329 = vld [vmem:[%s262] sm:$0xff]
        %v330 = vld [vmem:[%s262 + $0x8] sm:$0xff]
        %v331 = vld [vmem:[%s262 + $0x10] sm:$0xff]
        %v332 = vld [vmem:[%s262 + $0x18] sm:$0xff]
        %v333 = vld [vmem:[%s262 + $0x20] sm:$0xff]
        %v334 = vld [vmem:[%s262 + $0x28] sm:$0xff]
        %v335 = vld [vmem:[%s262 + $0x30] sm:$0xff]
        %v336 = vld [vmem:[%s262 + $0x38] sm:$0xff]
        %v339 = vunpack.c.l.b16 %v327
        %v340 = vunpack.c.l.b16 %v328
        %v341 = vpack.c.b16 %v340, %v339
        %v350 = vunpack.c.l.b16 %v329
        %v351 = vunpack.c.h.b16 %v329
        %v352 = vunpack.c.l.b16 %v330
        %v353 = vunpack.c.h.b16 %v330
        %v354 = vunpack.c.l.b16 %v331
        %v355 = vunpack.c.h.b16 %v331
        %v356 = vunpack.c.l.b16 %v332
        %v357 = vunpack.c.h.b16 %v332
        %v358 = vunpack.c.l.b16 %v333
        %v359 = vunpack.c.h.b16 %v333
        %v360 = vunpack.c.l.b16 %v334
        %v361 = vunpack.c.h.b16 %v334
        %v362 = vunpack.c.l.b16 %v335
        %v363 = vunpack.c.h.b16 %v335
        %v364 = vunpack.c.l.b16 %v336
        %v365 = vunpack.c.h.b16 %v336
        %v366 = vpack.c.b16 %v352, %v350
        %v367 = vpack.c.b16 %v353, %v351
        %v368 = vpack.c.b16 %v356, %v354
        %v369 = vpack.c.b16 %v357, %v355
        %v370 = vpack.c.b16 %v360, %v358
        %v371 = vpack.c.b16 %v361, %v359
        %v372 = vpack.c.b16 %v364, %v362
        %v373 = vpack.c.b16 %v365, %v363
        %vm382 = vcmask 523264
        %v384 = vsel %vm382, %v341, 0
        %386 = vmatprep.subr.bf16.mxu0 0
        %387 = vmatpush1.bf16.msra.mxu0 0
        %388 = vmatprep.subr.bf16.mxu0 0
        %389 = vmatpush1.bf16.msra.mxu0 0
        %390 = vmatprep.subr.bf16.mxu0 0
        %391 = vmatpush1.bf16.msra.mxu0 0
        %392 = vmatprep.subr.bf16.mxu0 0
        %393 = vmatpush1.bf16.msra.mxu0 0
        %394 = vmatprep.subr.bf16.mxu0 %v373
        %395 = vmatpush1.bf16.msra.mxu0 %v372
        %396 = vmatprep.subr.bf16.mxu0 %v371
        %397 = vmatpush1.bf16.msra.mxu0 %v370
        %398 = vmatprep.subr.bf16.mxu0 %v369
        %399 = vmatpush1.bf16.msra.mxu0 %v368
        %400 = vmatprep.subr.bf16.mxu0 %v367
        %401 = vmatpush1.bf16.msra.mxu0 %v366
        %402 = vmatprep.subr.bf16.mxu0 0
        %403 = vmatpush2.bf16.msra.mxu0 0
        %404 = vmatprep.subr.bf16.mxu0 0
        %405 = vmatpush2.bf16.msra.mxu0 0
        %406 = vmatprep.subr.bf16.mxu0 0
        %407 = vmatpush2.bf16.msra.mxu0 0
        %408 = vmatprep.subr.bf16.mxu0 0
        %409 = vmatpush2.bf16.msra.mxu0 0
        %410 = vmatprep.subr.bf16.mxu0 0
        %411 = vmatpush2.bf16.msra.mxu0 0
        %412 = vmatprep.subr.bf16.mxu0 0
        %413 = vmatpush2.bf16.msra.mxu0 0
        %414 = vmatprep.subr.bf16.mxu0 0
        %415 = vmatpush2.bf16.msra.mxu0 0
        %416 = vmatprep.subr.bf16.mxu0 0
        %417 = vmatpush2.bf16.msra.mxu0 0
        %418 = vmatprep.mubr.bf16.mxu0 0
        %419 = vmatmul.mubr.bf16.gmra.mxu0 %v384
        %v420 = vpop.f32.mrf.mxu0
        %v421 = vadd.f32 0.0, %v420
        %v422 = vpop.f32.mrf.mxu0
        %v423 = vadd.f32 0.0, %v422
        %v424 = vpop.f32.mrf.mxu0
        %v425 = vadd.f32 0.0, %v424
        %v426 = vpop.f32.mrf.mxu0
        %v427 = vadd.f32 0.0, %v426
        %428 = vdwg.mxu0
        %v429 = vadd.f32 %v323, %v421
        %v430 = vadd.f32 %v324, %v423
        %v431 = vadd.f32 %v325, %v425
        %v432 = vadd.f32 %v326, %v427
        %433 = vst [vmem:[#allocation2] sm:$0xff] %v429
        %434 = vst [vmem:[#allocation2 + $0x8] sm:$0xff] %v430
        %435 = vst [vmem:[#allocation2 + $0x10] sm:$0xff] %v431
        %436 = vst [vmem:[#allocation2 + $0x18] sm:$0xff] %v432
        // Predicated region
        $region75: #{lcab_apply.16} parent=65 // pred_check
          %p437 = pneg %p315
        $region76: #{lcab_apply.16} parent=65 // pred_check_branch
          %439 = sbr.rel (%p437) target = $region78
        $region77: #{lcab_apply.16} parent=65 // pred_region
          %v440 = vld [vmem:[#allocation2] sm:$0xff]
          %v441 = vld [vmem:[#allocation2 + $0x8] sm:$0xff]
          %v442 = vld [vmem:[#allocation2 + $0x10] sm:$0xff]
          %v443 = vld [vmem:[#allocation2 + $0x18] sm:$0xff]
          %vm444 = vcmp.ge.f32.partialorder %v440, 0.0
          %vm445 = vcmp.ge.f32.partialorder %v441, 0.0
          %vm446 = vcmp.ge.f32.partialorder %v442, 0.0
          %vm447 = vcmp.ge.f32.partialorder %v443, 0.0
          %v448 = vld [vmem:[%s310] sm:$0xff]
          %v449 = vld [vmem:[%s310 + $0x8] sm:$0xff]
          %451 = vset.pattern.permute.xlu0 0
          %452 = vperm.xlu0 %451, %v448
          %v453 = vpop.permute.xlu0 %452
          %456 = vset.pattern.permute.xlu0 0
          %457 = vperm.xlu0 %456, %v449
          %v458 = vpop.permute.xlu0 %457
          %v460 = vmul.f32 %v453, %v440
          %v461 = vmul.f32 %v453, %v441
          %v462 = vmul.f32 %v458, %v442
          %v463 = vmul.f32 %v458, %v443
          %v464 = vsel %vm444, %v440, %v460
          %v465 = vsel %vm445, %v441, %v461
          %v466 = vsel %vm446, %v442, %v462
          %v467 = vsel %vm447, %v443, %v463
          %v468 = vpack.c.bf16 %v466, %v464
          %v469 = vpack.c.bf16 %v467, %v465
          %v472 = vunpack.c.l.b16 %v468
          %v473 = vunpack.c.l.b16 %v469
          %v474 = vunpack.c.h.b16 %v468
          %v475 = vunpack.c.h.b16 %v469
          %v476 = vpack.c.b16 %v473, %v472
          %v477 = vpack.c.b16 %v475, %v474
          %480 = vst [vmem:[%s294] sm:$0xff] %v476
          %481 = vst [vmem:[%s294 + $0x8] sm:$0xff] %v477
        $region78: #{lcab_apply.16} parent=65 // pred_fallthru
          _
        %s482 = sand.u32 %s125, 1
        %s483 = sand.u32 %s125, 1
        %s484 = smul.addr %s483, 16
        %s485 = scalar_lea.vmem [#allocation4], %s484
        // Predicated region
        $region79: #{lcab_apply.16} parent=65 // pred_check
          %p486 = pneg %p135
        $region80: #{lcab_apply.16} parent=65 // pred_check_branch
          %488 = sbr.rel (%p486) target = $region82
        $region81: #{lcab_apply.16} parent=65 // pred_region
          %s489 = smul.u32 2, %s19
          %s490 = smul.u32 2, %s20
          %s491 = smul.addr %s489, 4
          %s492 = sadd.s32 %s490, %s491
          %s493 = smul.addr %s492, 4
          %s494 = scalar_lea.vmem %s3, %s493
          // Predicated region
          $region83: #{lcab_apply.16} parent=81 // pred_check
            _
          $region84: #{lcab_apply.16} parent=81 // pred_check_branch
            %496 = sbr.rel (0) target = $region86
          $region85: #{lcab_apply.16} parent=81 // pred_region
            // Predicated region
            $region87: #{lcab_apply.16} parent=85 // pred_check
              _
            $region88: #{lcab_apply.16} parent=85 // pred_check_branch
              %498 = sbr.rel (0) target = $region90
            $region89: #{lcab_apply.16} parent=85 // pred_region
              // Predicated region
              $region102: #{lcab_apply.16} parent=89 // pred_check
                _
              $region103: #{lcab_apply.16} parent=89 // pred_check_branch
                %516 = sbr.rel (0) target = $region105
              $region104: #{lcab_apply.16} parent=89 // pred_region
                loop: start=0, step=1, limit=1
                $region106: #{lcab_apply.16} parent=104 // loop_pre_header
                  _
                $region107: #{lcab_apply.16} parent=104 // loop_header
                  %s518 = sphi 0, %s522
                  %p519 = scmp.ge.s32.totalorder %s518, 1
                  %s523 = sphi %s485, %s485
                  %s524 = sphi %s494, %s494
                $region108: #{lcab_apply.16} parent=104 // loop_header_branch
                  %521 = sbr.rel (%p519) target = $region112
                $region109: #{lcab_apply.16} parent=104 // loop_body
                  %v525 = vld [vmem:[%s523] sm:$0xff]
                  %526 = vst [vmem:[%s524] sm:$0xff] %v525
                  %v527 = vld [vmem:[%s523 + $0x8] sm:$0xff]
                  %528 = vst [vmem:[%s524 + $0x10] sm:$0xff] %v527
                $region110: #{lcab_apply.16} parent=104 // loop_footer
                  %s522 = sadd.s32 1, %s518
                $region111: #{lcab_apply.16} parent=104 // loop_footer_branch
                  %517 = sbr.rel target = $region107
                $region112: #{lcab_apply.16} parent=104 // loop_exit
                  _
              $region105: #{lcab_apply.16} parent=89 // pred_fallthru
                _
              // Predicated region
              $region113: #{lcab_apply.16} parent=89 // pred_check
                _
              $region114: #{lcab_apply.16} parent=89 // pred_check_branch
                %530 = sbr.rel target = $region116
              $region115: #{lcab_apply.16} parent=89 // pred_region
                _
              $region116: #{lcab_apply.16} parent=89 // pred_fallthru
                _
            $region90: #{lcab_apply.16} parent=85 // pred_fallthru
              _
            // Predicated region
            $region91: #{lcab_apply.16} parent=85 // pred_check
              _
            $region92: #{lcab_apply.16} parent=85 // pred_check_branch
              %500 = sbr.rel target = $region94
            $region93: #{lcab_apply.16} parent=85 // pred_region
              %s502 = ssub.s32 256, 1
              loop: start=0, step=1, limit=1
              $region95: #{lcab_apply.16} parent=93 // loop_pre_header
                _
              $region96: #{lcab_apply.16} parent=93 // loop_header
                %s504 = sphi 0, %s508
                %p505 = scmp.ge.s32.totalorder %s504, 1
                %s509 = sphi %s485, %s485
                %s510 = sphi %s494, %s494
              $region97: #{lcab_apply.16} parent=93 // loop_header_branch
                %507 = sbr.rel (%p505) target = $region101
              $region98: #{lcab_apply.16} parent=93 // loop_body
                %v511 = vld [vmem:[%s509] sm:%s502]
                %512 = vst [vmem:[%s510] sm:%s502] %v511
                %v513 = vld [vmem:[%s509 + $0x8] sm:%s502]
                %514 = vst [vmem:[%s510 + $0x10] sm:%s502] %v513
              $region99: #{lcab_apply.16} parent=93 // loop_footer
                %s508 = sadd.s32 1, %s504
              $region100: #{lcab_apply.16} parent=93 // loop_footer_branch
                %503 = sbr.rel target = $region96
              $region101: #{lcab_apply.16} parent=93 // loop_exit
                _
            $region94: #{lcab_apply.16} parent=85 // pred_fallthru
              _
          $region86: #{lcab_apply.16} parent=81 // pred_fallthru
            _
          %531 = vnop
        $region82: #{lcab_apply.16} parent=65 // pred_fallthru
          _
      $region66: #{lcab_apply.16} parent=5 // pred_fallthru
        _
      %p532 = scmp.le.s32.totalorder 2, %s9
      // Predicated region
      $region117: #{lcab_apply.16} parent=5 // pred_check
        %p533 = pneg %p532
      $region118: #{lcab_apply.16} parent=5 // pred_check_branch
        %535 = sbr.rel (%p533) target = $region120
      $region119: #{lcab_apply.16} parent=5 // pred_region
        %s536 = ssub.s32 %s9, 2
        // Predicated region
        $region121: #{lcab_apply.16} parent=119 // pred_check
          %p537 = pneg %p141
        $region122: #{lcab_apply.16} parent=119 // pred_check_branch
          %539 = sbr.rel (%p537) target = $region124
        $region123: #{lcab_apply.16} parent=119 // pred_region
          %s540 = sand.u32 %s126, 1
          %s541 = sand.u32 %s126, 1
          %s542 = smul.addr %s541, 16
          %s543 = scalar_lea.vmem [#allocation4], %s542
        $region124: #{lcab_apply.16} parent=119 // pred_fallthru
          _
      $region120: #{lcab_apply.16} parent=5 // pred_fallthru
        _
    $region6: #{lcab_apply.16} parent=1 // loop_footer
      %s13 = sadd.s32 1, %s9
    $region7: #{lcab_apply.16} parent=1 // loop_footer_branch
      %8 = sbr.rel target = $region3
    $region8: #{lcab_apply.16} parent=1 // loop_exit
      _

// kernel: lcab_apply.18
$region0: #{lcab_apply.18}
  #allocation0 [shape = 'u32[]', space=smem, size = 0x4, offset = 0x4, fixed_abs, tag = 'smem constant byte address 0x4 - core index']
  #allocation1 [shape = 'u32[144,128]{1,0:T(1,128)}', space=vmem, size = 0x12000, scoped, tag = 'internal scratch']
  %s0 = inlined_call_operand.vmem [shape: bf16[6,512], index: 0, kind: input, shape index: {}]
  %s1 = inlined_call_operand.vmem [shape: bf16[3,512], index: 1, kind: input, shape index: {}]
  %s2 = inlined_call_operand.vmem [shape: bf16[2,512], index: 2, kind: input, shape index: {}]
  %s3 = inlined_call_operand.vmem [shape: f32[2,6,3], index: 3, kind: output, shape index: {0}]
  %s4 = inlined_call_operand.vmem [shape: f32[2,3,2], index: 4, kind: output, shape index: {1}]
  %5 = xla_tuple %s3, %s4
  %s6 = sld [smem:[#allocation0]]
  $region57: #{lcab_apply.18} parent=0
    _
  %s8 = ssub.s32 1, %s6
  %s9 = scalar_select 0, %s8, %s6
  loop: start=0, step=1, limit=4
  $region2: #{lcab_apply.18} parent=0 // loop_pre_header
    _
  $region3: #{lcab_apply.18} parent=0 // loop_header
    %s11 = sphi 0, %s15
    %p12 = scmp.ge.s32.totalorder %s11, 4
    %s18 = sphi 0, %s30
    %s19 = sphi 0, %s26
    %s20 = sphi 0, %s18
    %s21 = sphi 0, %s19
    %s22 = sphi 0, %s20
    %s23 = sphi 0, %s21
    %s35 = sphi 0, %s37
    %s38 = sphi 0, %s35
    %s39 = sphi 0, %s38
    %s55 = sphi 0, %s39
    %s63 = sphi 0, %s65
    %s66 = sphi 0, %s63
    %s67 = sphi 0, %s66
    %s83 = sphi 0, %s67
    %s91 = sphi 0, %s93
    %s94 = sphi 0, %s91
    %s95 = sphi 0, %s94
    %s111 = sphi 0, %s95
    %s117 = sphi 0, %s119
    %s120 = sphi 0, %s117
    %s121 = sphi 0, %s120
    %s137 = sphi 0, %s121
    %s143 = sphi 0, %s145
    %s146 = sphi 0, %s143
    %s147 = sphi 0, %s146
    %s163 = sphi 0, %s147
  $region4: #{lcab_apply.18} parent=0 // loop_header_branch
    %14 = sbr.rel (%p12) target = $region8
  $region5: #{lcab_apply.18} parent=0 // loop_body
    %s16 = ssub.s32 %s11, 1
    %s17 = ssub.s32 %s11, 2
    %s24 = sadd.s32 1, %s19
    %p25 = scmp.ge.s32.totalorder %s24, 1
    %s26 = scalar_select %p25, 0, %s24
    %s27 = sadd.s32 1, %s18
    %s28 = scalar_select %p25, %s27, %s18
    %p29 = scmp.ge.s32.totalorder %s28, 2
    %s30 = scalar_select %p29, 0, %s28
    %s31 = sadd.s32 %s18, %s19
    %s32 = sadd.s32 %s30, %s26
    %s33 = ssub.s32 %s31, %s32
    %p34 = scmp.eq.s32.totalorder %s33, 0
    %s36 = sadd.s32 %s35, 1
    %s37 = scalar_select %p34, %s35, %s36
    %p40 = pneg %p34
    %p41 = scmp.eq.s32.totalorder %s11, 1
    %p42 = por %p40, %p41
    %p43 = scmp.ne.s32.totalorder %s35, %s38
    %p44 = scmp.eq.s32.totalorder %s11, 0
    %p45 = por %p43, %p44
    %p46 = scmp.ne.s32.totalorder %s35, %s38
    %p47 = scmp.eq.s32.totalorder %s16, 1
    %p48 = por %p46, %p47
    %p49 = scmp.ne.s32.totalorder %s38, %s39
    %p50 = scmp.eq.s32.totalorder %s16, 0
    %p51 = por %p49, %p50
    %p52 = scmp.ne.s32.totalorder %s38, %s39
    %p53 = scmp.eq.s32.totalorder %s17, 1
    %p54 = por %p52, %p53
    %p56 = scmp.ne.s32.totalorder %s39, %s55
    %p57 = scmp.eq.s32.totalorder %s17, 0
    %p58 = por %p56, %p57
    %s59 = sadd.s32 %s18, %s19
    %s60 = sadd.s32 %s30, %s26
    %s61 = ssub.s32 %s59, %s60
    %p62 = scmp.eq.s32.totalorder %s61, 0
    %s64 = sadd.s32 %s63, 1
    %s65 = scalar_select %p62, %s63, %s64
    %p68 = pneg %p62
    %p69 = scmp.eq.s32.totalorder %s11, 1
    %p70 = por %p68, %p69
    %p71 = scmp.ne.s32.totalorder %s63, %s66
    %p72 = scmp.eq.s32.totalorder %s11, 0
    %p73 = por %p71, %p72
    %p74 = scmp.ne.s32.totalorder %s63, %s66
    %p75 = scmp.eq.s32.totalorder %s16, 1
    %p76 = por %p74, %p75
    %p77 = scmp.ne.s32.totalorder %s66, %s67
    %p78 = scmp.eq.s32.totalorder %s16, 0
    %p79 = por %p77, %p78
    %p80 = scmp.ne.s32.totalorder %s66, %s67
    %p81 = scmp.eq.s32.totalorder %s17, 1
    %p82 = por %p80, %p81
    %p84 = scmp.ne.s32.totalorder %s67, %s83
    %p85 = scmp.eq.s32.totalorder %s17, 0
    %p86 = por %p84, %p85
    %s87 = sadd.s32 %s18, %s19
    %s88 = sadd.s32 %s30, %s26
    %s89 = ssub.s32 %s87, %s88
    %p90 = scmp.eq.s32.totalorder %s89, 0
    %s92 = sadd.s32 %s91, 1
    %s93 = scalar_select %p90, %s91, %s92
    %p96 = pneg %p90
    %p97 = scmp.eq.s32.totalorder %s11, 1
    %p98 = por %p96, %p97
    %p99 = scmp.ne.s32.totalorder %s91, %s94
    %p100 = scmp.eq.s32.totalorder %s11, 0
    %p101 = por %p99, %p100
    %p102 = scmp.ne.s32.totalorder %s91, %s94
    %p103 = scmp.eq.s32.totalorder %s16, 1
    %p104 = por %p102, %p103
    %p105 = scmp.ne.s32.totalorder %s94, %s95
    %p106 = scmp.eq.s32.totalorder %s16, 0
    %p107 = por %p105, %p106
    %p108 = scmp.ne.s32.totalorder %s94, %s95
    %p109 = scmp.eq.s32.totalorder %s17, 1
    %p110 = por %p108, %p109
    %p112 = scmp.ne.s32.totalorder %s95, %s111
    %p113 = scmp.eq.s32.totalorder %s17, 0
    %p114 = por %p112, %p113
    %s115 = ssub.s32 %s18, %s30
    %p116 = scmp.eq.s32.totalorder %s115, 0
    %s118 = sadd.s32 %s117, 1
    %s119 = scalar_select %p116, %s117, %s118
    %p122 = pneg %p116
    %p123 = scmp.eq.s32.totalorder %s11, 1
    %p124 = por %p122, %p123
    %p125 = scmp.ne.s32.totalorder %s117, %s120
    %p126 = scmp.eq.s32.totalorder %s11, 0
    %p127 = por %p125, %p126
    %p128 = scmp.ne.s32.totalorder %s117, %s120
    %p129 = scmp.eq.s32.totalorder %s16, 1
    %p130 = por %p128, %p129
    %p131 = scmp.ne.s32.totalorder %s120, %s121
    %p132 = scmp.eq.s32.totalorder %s16, 0
    %p133 = por %p131, %p132
    %p134 = scmp.ne.s32.totalorder %s120, %s121
    %p135 = scmp.eq.s32.totalorder %s17, 1
    %p136 = por %p134, %p135
    %p138 = scmp.ne.s32.totalorder %s121, %s137
    %p139 = scmp.eq.s32.totalorder %s17, 0
    %p140 = por %p138, %p139
    %s141 = ssub.s32 %s18, %s30
    %p142 = scmp.eq.s32.totalorder %s141, 0
    %s144 = sadd.s32 %s143, 1
    %s145 = scalar_select %p142, %s143, %s144
    %p148 = pneg %p142
    %p149 = scmp.eq.s32.totalorder %s11, 1
    %p150 = por %p148, %p149
    %p151 = scmp.ne.s32.totalorder %s143, %s146
    %p152 = scmp.eq.s32.totalorder %s11, 0
    %p153 = por %p151, %p152
    %p154 = scmp.ne.s32.totalorder %s143, %s146
    %p155 = scmp.eq.s32.totalorder %s16, 1
    %p156 = por %p154, %p155
    %p157 = scmp.ne.s32.totalorder %s146, %s147
    %p158 = scmp.eq.s32.totalorder %s16, 0
    %p159 = por %p157, %p158
    %p160 = scmp.ne.s32.totalorder %s146, %s147
    %p161 = scmp.eq.s32.totalorder %s17, 1
    %p162 = por %p160, %p161
    %p164 = scmp.ne.s32.totalorder %s147, %s163
    %p165 = scmp.eq.s32.totalorder %s17, 0
    %p166 = por %p164, %p165
    %p167 = scmp.le.s32.totalorder 1, %s11
    %p168 = scmp.lt.s32.totalorder %s11, 3
    %p169 = pnand %p167, %p168
    %p170 = pneg %p169
    // Predicated region
    $region9: #{lcab_apply.18} parent=5 // pred_check
      _
    $region10: #{lcab_apply.18} parent=5 // pred_check_branch
      %172 = sbr.rel (%p169) target = $region12
    $region11: #{lcab_apply.18} parent=5 // pred_region
      %s173 = ssub.s32 %s11, 1
    $region12: #{lcab_apply.18} parent=5 // pred_fallthru
      _
    %p174 = scmp.lt.s32.totalorder %s11, 2
    // Predicated region
    $region13: #{lcab_apply.18} parent=5 // pred_check
      %p175 = pneg %p174
    $region14: #{lcab_apply.18} parent=5 // pred_check_branch
      %177 = sbr.rel (%p175) target = $region16
    $region15: #{lcab_apply.18} parent=5 // pred_region
      // Predicated region
      $region17: #{lcab_apply.18} parent=15 // pred_check
        %p178 = pneg %p45
      $region18: #{lcab_apply.18} parent=15 // pred_check_branch
        %180 = sbr.rel (%p178) target = $region20
      $region19: #{lcab_apply.18} parent=15 // pred_region
        %s181 = sadd.s32 %s18, %s19
        %s182 = smul.u32 2, %s181
        %p183 = scmp.lt.s32.totalorder %s182, 3
        %s184 = scalar_select %p183, %s182, 3
        %s185 = smul.addr %s184, 4
        %s186 = scalar_lea.vmem %s0, %s185
        %s187 = sadd.s32 %s18, %s19
        %s188 = smul.u32 2, %s187
      $region20: #{lcab_apply.18} parent=15 // pred_fallthru
        _
      // Predicated region
      $region21: #{lcab_apply.18} parent=15 // pred_check
        %p189 = pneg %p73
      $region22: #{lcab_apply.18} parent=15 // pred_check_branch
        %191 = sbr.rel (%p189) target = $region24
      $region23: #{lcab_apply.18} parent=15 // pred_region
        %s192 = sadd.s32 %s18, %s19
        %s193 = smul.u32 2, %s192
        %p194 = scmp.lt.s32.totalorder %s193, 3
        %s195 = scalar_select %p194, %s193, 3
        %s196 = smul.addr %s195, 2
        %s197 = scalar_lea.vmem %s1, %s196
        %s198 = sadd.s32 %s18, %s19
        %s199 = smul.u32 2, %s198
      $region24: #{lcab_apply.18} parent=15 // pred_fallthru
        _
      // Predicated region
      $region25: #{lcab_apply.18} parent=15 // pred_check
        %p200 = pneg %p101
      $region26: #{lcab_apply.18} parent=15 // pred_check_branch
        %202 = sbr.rel (%p200) target = $region28
      $region27: #{lcab_apply.18} parent=15 // pred_region
        %s203 = sadd.s32 %s18, %s19
        %s204 = smul.u32 2, %s203
        %p205 = scmp.lt.s32.totalorder %s204, 3
        %s206 = scalar_select %p205, %s204, 3
        %s207 = scalar_lea.vmem %s2, %s206
        %s208 = sadd.s32 %s18, %s19
        %s209 = smul.u32 2, %s208
      $region28: #{lcab_apply.18} parent=15 // pred_fallthru
        _
    $region16: #{lcab_apply.18} parent=5 // pred_fallthru
      _
    %p210 = scmp.le.s32.totalorder 1, %s11
    %p211 = scmp.lt.s32.totalorder %s11, 3
    %p212 = pnand %p210, %p211
    %p213 = pneg %p212
    // Predicated region
    $region29: #{lcab_apply.18} parent=5 // pred_check
      _
    $region30: #{lcab_apply.18} parent=5 // pred_check_branch
      %215 = sbr.rel (%p212) target = $region32
    $region31: #{lcab_apply.18} parent=5 // pred_region
      %s216 = ssub.s32 %s11, 1
      %s217 = sadd.s32 %s20, %s21
      %s218 = smul.u32 2, %s217
      %p219 = scmp.lt.s32.totalorder %s218, 3
      %s220 = scalar_select %p219, %s218, 3
      %s221 = smul.addr %s220, 4
      %s222 = scalar_lea.vmem %s0, %s221
      %p223 = pneg %p51
      %p224 = pneg %p48
      %s225 = sadd.s32 %s20, %s21
      %s226 = smul.u32 2, %s225
      %p227 = scmp.lt.s32.totalorder %s226, 3
      %s228 = scalar_select %p227, %s226, 3
      %s229 = smul.addr %s228, 2
      %s230 = scalar_lea.vmem %s1, %s229
      %p231 = pneg %p79
      %p232 = pneg %p76
      %s233 = sadd.s32 %s20, %s21
      %s234 = smul.u32 2, %s233
      %p235 = scmp.lt.s32.totalorder %s234, 3
      %s236 = scalar_select %p235, %s234, 3
      %s237 = scalar_lea.vmem %s2, %s236
      %p238 = pneg %p107
      %p239 = pneg %p104
      %p240 = pneg %p133
      %p241 = pneg %p130
      %p242 = scmp.lt.s32.totalorder %s20, 1
      %s243 = scalar_select %p242, %s20, 1
      %s244 = smul.addr %s243, 8
      %s245 = scalar_lea.vmem %s3, %s244
      %p246 = pneg %p159
      %p247 = pneg %p156
      %p248 = scmp.lt.s32.totalorder %s20, 1
      %s249 = scalar_select %p248, %s20, 1
      %s250 = smul.addr %s249, 4
      %s251 = scalar_lea.vmem %s4, %s250
      %s252 = sadd.s32 %s20, %s21
      %s253 = smul.u32 2, %s252
      %p254 = scmp.lt.s32.totalorder %s253, 3
      %s255 = scalar_select %p254, %s253, 3
      %s256 = smul.addr %s255, 4
      %s257 = scalar_lea.vmem %s0, %s256
      %s258 = sadd.s32 %s20, %s21
      %s259 = smul.u32 2, %s258
      %s260 = sadd.s32 %s20, %s21
      %s261 = smul.u32 2, %s260
      %p262 = scmp.lt.s32.totalorder %s261, 3
      %s263 = scalar_select %p262, %s261, 3
      %s264 = smul.addr %s263, 2
      %s265 = scalar_lea.vmem %s1, %s264
      %s266 = sadd.s32 %s20, %s21
      %s267 = smul.u32 2, %s266
      %s268 = sadd.s32 %s20, %s21
      %s269 = smul.u32 2, %s268
      %p270 = scmp.lt.s32.totalorder %s269, 3
      %s271 = scalar_select %p270, %s269, 3
      %s272 = scalar_lea.vmem %s2, %s271
      %s273 = sadd.s32 %s20, %s21
      %s274 = smul.u32 2, %s273
      %p275 = scmp.lt.s32.totalorder %s20, 1
      %s276 = scalar_select %p275, %s20, 1
      %s277 = smul.addr %s276, 8
      %s278 = scalar_lea.vmem %s3, %s277
      %p279 = scmp.lt.s32.totalorder %s20, 1
      %s280 = scalar_select %p279, %s20, 1
      %s281 = smul.addr %s280, 4
      %s282 = scalar_lea.vmem %s4, %s281
      %p284 = scmp.eq.s32.totalorder %s21, 0
      // Predicated region
      $region33: #{lcab_apply.18} parent=31 // pred_check
        %p285 = pneg %p284
      $region34: #{lcab_apply.18} parent=31 // pred_check_branch
        %287 = sbr.rel (%p285) target = $region36
      $region35: #{lcab_apply.18} parent=31 // pred_region
        %vm288 = vcmask 21504
        %289 = vst.msk [vmem:[%s278] sm:$0x3f] %vm288, 0.0
        %vm290 = vcmask 10240
        %291 = vst.msk [vmem:[%s282] sm:$0x7] %vm290, 0.0
      $region36: #{lcab_apply.18} parent=31 // pred_fallthru
        _
      %v292 = vld [vmem:[%s257] sm:$0x77]
      %v293 = vld [vmem:[%s265] sm:$0xf]
      %v294 = vld [vmem:[%s272] sm:$0x3]
      %v295 = vld [vmem:[%s278] sm:$0x3f]
      %v297 = vunpack.c.l.b16 %v292
      %v298 = vunpack.c.h.b16 %v292
      %v299 = vpack.c.b16 %v297, %v297
      %v300 = vpack.c.b16 %v298, %v298
      %v305 = vunpack.c.l.s4 1983009808
      %v306 = vunpack.c.0.s8 %v305
      %v307 = vlaneseq
      %v308 = vshrl.u32 %v307, 7
      %v309 = vsub.s32 %v306, %v308
      %v310 = vrot.slane %v293, %v309
      %v311 = vcombine.high %v310, %v310
      %314 = vmatprep.subr.bf16.mxu0 0
      %315 = vmatpush1.bf16.xpose.msra.mxu0 0
      %316 = vmatprep.subr.bf16.mxu0 0
      %317 = vmatpush1.bf16.xpose.msra.mxu0 0
      %318 = vmatprep.subr.bf16.mxu0 0
      %319 = vmatpush1.bf16.xpose.msra.mxu0 0
      %320 = vmatprep.subr.bf16.mxu0 0
      %321 = vmatpush1.bf16.xpose.msra.mxu0 0
      %322 = vmatprep.subr.bf16.mxu0 0
      %323 = vmatpush1.bf16.xpose.msra.mxu0 0
      %324 = vmatprep.subr.bf16.mxu0 0
      %325 = vmatpush1.bf16.xpose.msra.mxu0 0
      %326 = vmatprep.subr.bf16.mxu0 0
      %327 = vmatpush1.bf16.xpose.msra.mxu0 0
      %328 = vmatprep.subr.bf16.mxu0 %v311
      %329 = vmatpush1.bf16.xpose.msra.mxu0 %v310
      %330 = vmatprep.subr.bf16.mxu0 0
      %331 = vmatpush2.bf16.xpose.msra.mxu0 0
      %332 = vmatprep.subr.bf16.mxu0 0
      %333 = vmatpush2.bf16.xpose.msra.mxu0 0
      %334 = vmatprep.subr.bf16.mxu0 0
      %335 = vmatpush2.bf16.xpose.msra.mxu0 0
      %336 = vmatprep.subr.bf16.mxu0 0
      %337 = vmatpush2.bf16.xpose.msra.mxu0 0
      %338 = vmatprep.subr.bf16.mxu0 0
      %339 = vmatpush2.bf16.xpose.msra.mxu0 0
      %340 = vmatprep.subr.bf16.mxu0 0
      %341 = vmatpush2.bf16.xpose.msra.mxu0 0
      %342 = vmatprep.subr.bf16.mxu0 0
      %343 = vmatpush2.bf16.xpose.msra.mxu0 0
      %344 = vmatprep.subr.bf16.mxu0 0
      %345 = vmatpush2.bf16.xpose.msra.mxu0 0
      %346 = vmatprep.mubr.bf16.mxu0 %v300
      %347 = vmatmul.mubr.bf16.gmra.mxu0 %v299
      %v348 = vpop.f32.mrf.mxu0
      %v349 = vadd.f32 0.0, %v348
      %v350 = vpop.f32.mrf.mxu0
      %v351 = vpop.f32.mrf.mxu0
      %v352 = vpop.f32.mrf.mxu0
      %353 = vdwg.mxu0
      %v354 = vadd.f32 %v295, %v349
      %vm355 = vcmask 21504
      %356 = vst.msk [vmem:[%s278] sm:$0x3f] %vm355, %v354
      %v357 = vld [vmem:[%s282] sm:$0x7]
      %v360 = vunpack.c.l.s4 1966171168
      %v361 = vunpack.c.0.s8 %v360
      %v362 = vlaneseq
      %v363 = vshrl.u32 %v362, 7
      %v364 = vsub.s32 %v361, %v363
      %v365 = vrot.slane %v294, %v364
      %v366 = vcombine.high %v365, %v365
      %v368 = vunpack.c.l.s4 1966171168
      %v369 = vunpack.c.0.s8 %v368
      %v370 = vlaneseq
      %v371 = vshrl.u32 %v370, 7
      %v372 = vsub.s32 %v369, %v371
      %v373 = vrot.slane %v365, %v372
      %v375 = vunpack.c.l.s4 1966171168
      %v376 = vunpack.c.0.s8 %v375
      %v377 = vlaneseq
      %v378 = vshrl.u32 %v377, 7
      %v379 = vsub.s32 %v376, %v378
      %v380 = vrot.slane %v366, %v379
      %383 = vmatprep.subr.bf16.mxu0 0
      %384 = vmatpush1.bf16.xpose.msra.mxu0 0
      %385 = vmatprep.subr.bf16.mxu0 0
      %386 = vmatpush1.bf16.xpose.msra.mxu0 0
      %387 = vmatprep.subr.bf16.mxu0 0
      %388 = vmatpush1.bf16.xpose.msra.mxu0 0
      %389 = vmatprep.subr.bf16.mxu0 0
      %390 = vmatpush1.bf16.xpose.msra.mxu0 0
      %391 = vmatprep.subr.bf16.mxu0 0
      %392 = vmatpush1.bf16.xpose.msra.mxu0 0
      %393 = vmatprep.subr.bf16.mxu0 0
      %394 = vmatpush1.bf16.xpose.msra.mxu0 0
      %395 = vmatprep.subr.bf16.mxu0 0
      %396 = vmatpush1.bf16.xpose.msra.mxu0 0
      %397 = vmatprep.subr.bf16.mxu0 %v380
      %398 = vmatpush1.bf16.xpose.msra.mxu0 %v373
      %399 = vmatprep.subr.bf16.mxu0 0
      %400 = vmatpush2.bf16.xpose.msra.mxu0 0
      %401 = vmatprep.subr.bf16.mxu0 0
      %402 = vmatpush2.bf16.xpose.msra.mxu0 0
      %403 = vmatprep.subr.bf16.mxu0 0
      %404 = vmatpush2.bf16.xpose.msra.mxu0 0
      %405 = vmatprep.subr.bf16.mxu0 0
      %406 = vmatpush2.bf16.xpose.msra.mxu0 0
      %407 = vmatprep.subr.bf16.mxu0 0
      %408 = vmatpush2.bf16.xpose.msra.mxu0 0
      %409 = vmatprep.subr.bf16.mxu0 0
      %410 = vmatpush2.bf16.xpose.msra.mxu0 0
      %411 = vmatprep.subr.bf16.mxu0 0
      %412 = vmatpush2.bf16.xpose.msra.mxu0 0
      %413 = vmatprep.subr.bf16.mxu0 0
      %414 = vmatpush2.bf16.xpose.msra.mxu0 0
      %415 = vmatprep.mubr.bf16.mxu0 %v311
      %416 = vmatmul.mubr.bf16.gmra.mxu0 %v310
      %v417 = vpop.f32.mrf.mxu0
      %v418 = vadd.f32 0.0, %v417
      %v419 = vpop.f32.mrf.mxu0
      %v420 = vpop.f32.mrf.mxu0
      %v421 = vpop.f32.mrf.mxu0
      %422 = vdwg.mxu0
      %v423 = vadd.f32 %v357, %v418
      %vm424 = vcmask 10240
      %425 = vst.msk [vmem:[%s282] sm:$0x7] %vm424, %v423
      %p426 = scmp.lt.s32.totalorder %s20, 1
      %s427 = scalar_select %p426, %s20, 1
      %s428 = smul.addr %s427, 8
      %s429 = scalar_lea.vmem %s3, %s428
      %p430 = scmp.lt.s32.totalorder %s20, 1
      %s431 = scalar_select %p430, %s20, 1
      %s432 = smul.addr %s431, 4
      %s433 = scalar_lea.vmem %s4, %s432
      // Predicated region
      $region37: #{lcab_apply.18} parent=31 // pred_check
        %p434 = pneg %p130
      $region38: #{lcab_apply.18} parent=31 // pred_check_branch
        %436 = sbr.rel (%p434) target = $region40
      $region39: #{lcab_apply.18} parent=31 // pred_region
        _
      $region40: #{lcab_apply.18} parent=31 // pred_fallthru
        _
      // Predicated region
      $region41: #{lcab_apply.18} parent=31 // pred_check
        %p437 = pneg %p156
      $region42: #{lcab_apply.18} parent=31 // pred_check_branch
        %439 = sbr.rel (%p437) target = $region44
      $region43: #{lcab_apply.18} parent=31 // pred_region
        _
      $region44: #{lcab_apply.18} parent=31 // pred_fallthru
        _
    $region32: #{lcab_apply.18} parent=5 // pred_fallthru
      _
    %p440 = scmp.le.s32.totalorder 2, %s11
    // Predicated region
    $region45: #{lcab_apply.18} parent=5 // pred_check
      %p441 = pneg %p440
    $region46: #{lcab_apply.18} parent=5 // pred_check_branch
      %443 = sbr.rel (%p441) target = $region48
    $region47: #{lcab_apply.18} parent=5 // pred_region
      %s444 = ssub.s32 %s11, 2
      // Predicated region
      $region49: #{lcab_apply.18} parent=47 // pred_check
        %p445 = pneg %p136
      $region50: #{lcab_apply.18} parent=47 // pred_check_branch
        %447 = sbr.rel (%p445) target = $region52
      $region51: #{lcab_apply.18} parent=47 // pred_region
        %p448 = scmp.lt.s32.totalorder %s22, 1
        %s449 = scalar_select %p448, %s22, 1
        %s450 = smul.addr %s449, 8
        %s451 = scalar_lea.vmem %s3, %s450
      $region52: #{lcab_apply.18} parent=47 // pred_fallthru
        _
      // Predicated region
      $region53: #{lcab_apply.18} parent=47 // pred_check
        %p452 = pneg %p162
      $region54: #{lcab_apply.18} parent=47 // pred_check_branch
        %454 = sbr.rel (%p452) target = $region56
      $region55: #{lcab_apply.18} parent=47 // pred_region
        %p455 = scmp.lt.s32.totalorder %s22, 1
        %s456 = scalar_select %p455, %s22, 1
        %s457 = smul.addr %s456, 4
        %s458 = scalar_lea.vmem %s4, %s457
      $region56: #{lcab_apply.18} parent=47 // pred_fallthru
        _
    $region48: #{lcab_apply.18} parent=5 // pred_fallthru
      _
  $region6: #{lcab_apply.18} parent=0 // loop_footer
    %s15 = sadd.s32 1, %s11
  $region7: #{lcab_apply.18} parent=0 // loop_footer_branch
    %10 = sbr.rel target = $region3
  $region8: #{lcab_apply.18} parent=0 // loop_exit
    _

// kernel: lcab_apply.19
$region0: #{lcab_apply.19}
  #allocation0 [shape = 'u32[]', space=smem, size = 0x4, offset = 0x4, fixed_abs, tag = 'smem constant byte address 0x4 - core index']
  #allocation1 [shape = 'u32[144,128]{1,0:T(1,128)}', space=vmem, size = 0x12000, scoped, tag = 'internal scratch']
  %s0 = inlined_call_operand.vmem [shape: f32[2,6,3], index: 0, kind: input, shape index: {}]
  %s1 = inlined_call_operand.vmem [shape: f32[2,3,2], index: 1, kind: input, shape index: {}]
  %s2 = inlined_call_operand.vmem [shape: bf16[3,512], index: 2, kind: input, shape index: {}]
  %s3 = inlined_call_operand.vmem [shape: bf16[2,512], index: 3, kind: input, shape index: {}]
  %s4 = inlined_call_operand.vmem [shape: f32[6,512], index: 4, kind: output, shape index: {0}]
  %s5 = inlined_call_operand.vmem [shape: f32[3,512], index: 5, kind: output, shape index: {1}]
  %6 = xla_tuple %s4, %s5
  %s7 = sld [smem:[#allocation0]]
  $region57: #{lcab_apply.19} parent=0
    _
  %s9 = ssub.s32 1, %s7
  %s10 = scalar_select 0, %s9, %s7
  loop: start=0, step=1, limit=4
  $region2: #{lcab_apply.19} parent=0 // loop_pre_header
    _
  $region3: #{lcab_apply.19} parent=0 // loop_header
    %s12 = sphi 0, %s16
    %p13 = scmp.ge.s32.totalorder %s12, 4
    %s19 = sphi 0, %s31
    %s20 = sphi 0, %s27
    %s21 = sphi 0, %s19
    %s22 = sphi 0, %s20
    %s23 = sphi 0, %s21
    %s24 = sphi 0, %s22
    %s34 = sphi 0, %s36
    %s37 = sphi 0, %s34
    %s38 = sphi 0, %s37
    %s54 = sphi 0, %s38
    %s60 = sphi 0, %s62
    %s63 = sphi 0, %s60
    %s64 = sphi 0, %s63
    %s80 = sphi 0, %s64
    %s88 = sphi 0, %s90
    %s91 = sphi 0, %s88
    %s92 = sphi 0, %s91
    %s108 = sphi 0, %s92
    %s116 = sphi 0, %s118
    %s119 = sphi 0, %s116
    %s120 = sphi 0, %s119
    %s136 = sphi 0, %s120
    %s144 = sphi 0, %s146
    %s147 = sphi 0, %s144
    %s148 = sphi 0, %s147
    %s164 = sphi 0, %s148
    %s172 = sphi 0, %s174
    %s175 = sphi 0, %s172
    %s176 = sphi 0, %s175
    %s192 = sphi 0, %s176
  $region4: #{lcab_apply.19} parent=0 // loop_header_branch
    %15 = sbr.rel (%p13) target = $region8
  $region5: #{lcab_apply.19} parent=0 // loop_body
    %s17 = ssub.s32 %s12, 1
    %s18 = ssub.s32 %s12, 2
    %s25 = sadd.s32 1, %s20
    %p26 = scmp.ge.s32.totalorder %s25, 1
    %s27 = scalar_select %p26, 0, %s25
    %s28 = sadd.s32 1, %s19
    %s29 = scalar_select %p26, %s28, %s19
    %p30 = scmp.ge.s32.totalorder %s29, 2
    %s31 = scalar_select %p30, 0, %s29
    %s32 = ssub.s32 %s19, %s31
    %p33 = scmp.eq.s32.totalorder %s32, 0
    %s35 = sadd.s32 %s34, 1
    %s36 = scalar_select %p33, %s34, %s35
    %p39 = pneg %p33
    %p40 = scmp.eq.s32.totalorder %s12, 1
    %p41 = por %p39, %p40
    %p42 = scmp.ne.s32.totalorder %s34, %s37
    %p43 = scmp.eq.s32.totalorder %s12, 0
    %p44 = por %p42, %p43
    %p45 = scmp.ne.s32.totalorder %s34, %s37
    %p46 = scmp.eq.s32.totalorder %s17, 1
    %p47 = por %p45, %p46
    %p48 = scmp.ne.s32.totalorder %s37, %s38
    %p49 = scmp.eq.s32.totalorder %s17, 0
    %p50 = por %p48, %p49
    %p51 = scmp.ne.s32.totalorder %s37, %s38
    %p52 = scmp.eq.s32.totalorder %s18, 1
    %p53 = por %p51, %p52
    %p55 = scmp.ne.s32.totalorder %s38, %s54
    %p56 = scmp.eq.s32.totalorder %s18, 0
    %p57 = por %p55, %p56
    %s58 = ssub.s32 %s19, %s31
    %p59 = scmp.eq.s32.totalorder %s58, 0
    %s61 = sadd.s32 %s60, 1
    %s62 = scalar_select %p59, %s60, %s61
    %p65 = pneg %p59
    %p66 = scmp.eq.s32.totalorder %s12, 1
    %p67 = por %p65, %p66
    %p68 = scmp.ne.s32.totalorder %s60, %s63
    %p69 = scmp.eq.s32.totalorder %s12, 0
    %p70 = por %p68, %p69
    %p71 = scmp.ne.s32.totalorder %s60, %s63
    %p72 = scmp.eq.s32.totalorder %s17, 1
    %p73 = por %p71, %p72
    %p74 = scmp.ne.s32.totalorder %s63, %s64
    %p75 = scmp.eq.s32.totalorder %s17, 0
    %p76 = por %p74, %p75
    %p77 = scmp.ne.s32.totalorder %s63, %s64
    %p78 = scmp.eq.s32.totalorder %s18, 1
    %p79 = por %p77, %p78
    %p81 = scmp.ne.s32.totalorder %s64, %s80
    %p82 = scmp.eq.s32.totalorder %s18, 0
    %p83 = por %p81, %p82
    %s84 = sadd.s32 %s19, %s20
    %s85 = sadd.s32 %s31, %s27
    %s86 = ssub.s32 %s84, %s85
    %p87 = scmp.eq.s32.totalorder %s86, 0
    %s89 = sadd.s32 %s88, 1
    %s90 = scalar_select %p87, %s88, %s89
    %p93 = pneg %p87
    %p94 = scmp.eq.s32.totalorder %s12, 1
    %p95 = por %p93, %p94
    %p96 = scmp.ne.s32.totalorder %s88, %s91
    %p97 = scmp.eq.s32.totalorder %s12, 0
    %p98 = por %p96, %p97
    %p99 = scmp.ne.s32.totalorder %s88, %s91
    %p100 = scmp.eq.s32.totalorder %s17, 1
    %p101 = por %p99, %p100
    %p102 = scmp.ne.s32.totalorder %s91, %s92
    %p103 = scmp.eq.s32.totalorder %s17, 0
    %p104 = por %p102, %p103
    %p105 = scmp.ne.s32.totalorder %s91, %s92
    %p106 = scmp.eq.s32.totalorder %s18, 1
    %p107 = por %p105, %p106
    %p109 = scmp.ne.s32.totalorder %s92, %s108
    %p110 = scmp.eq.s32.totalorder %s18, 0
    %p111 = por %p109, %p110
    %s112 = sadd.s32 %s19, %s20
    %s113 = sadd.s32 %s31, %s27
    %s114 = ssub.s32 %s112, %s113
    %p115 = scmp.eq.s32.totalorder %s114, 0
    %s117 = sadd.s32 %s116, 1
    %s118 = scalar_select %p115, %s116, %s117
    %p121 = pneg %p115
    %p122 = scmp.eq.s32.totalorder %s12, 1
    %p123 = por %p121, %p122
    %p124 = scmp.ne.s32.totalorder %s116, %s119
    %p125 = scmp.eq.s32.totalorder %s12, 0
    %p126 = por %p124, %p125
    %p127 = scmp.ne.s32.totalorder %s116, %s119
    %p128 = scmp.eq.s32.totalorder %s17, 1
    %p129 = por %p127, %p128
    %p130 = scmp.ne.s32.totalorder %s119, %s120
    %p131 = scmp.eq.s32.totalorder %s17, 0
    %p132 = por %p130, %p131
    %p133 = scmp.ne.s32.totalorder %s119, %s120
    %p134 = scmp.eq.s32.totalorder %s18, 1
    %p135 = por %p133, %p134
    %p137 = scmp.ne.s32.totalorder %s120, %s136
    %p138 = scmp.eq.s32.totalorder %s18, 0
    %p139 = por %p137, %p138
    %s140 = sadd.s32 %s19, %s20
    %s141 = sadd.s32 %s31, %s27
    %s142 = ssub.s32 %s140, %s141
    %p143 = scmp.eq.s32.totalorder %s142, 0
    %s145 = sadd.s32 %s144, 1
    %s146 = scalar_select %p143, %s144, %s145
    %p149 = pneg %p143
    %p150 = scmp.eq.s32.totalorder %s12, 1
    %p151 = por %p149, %p150
    %p152 = scmp.ne.s32.totalorder %s144, %s147
    %p153 = scmp.eq.s32.totalorder %s12, 0
    %p154 = por %p152, %p153
    %p155 = scmp.ne.s32.totalorder %s144, %s147
    %p156 = scmp.eq.s32.totalorder %s17, 1
    %p157 = por %p155, %p156
    %p158 = scmp.ne.s32.totalorder %s147, %s148
    %p159 = scmp.eq.s32.totalorder %s17, 0
    %p160 = por %p158, %p159
    %p161 = scmp.ne.s32.totalorder %s147, %s148
    %p162 = scmp.eq.s32.totalorder %s18, 1
    %p163 = por %p161, %p162
    %p165 = scmp.ne.s32.totalorder %s148, %s164
    %p166 = scmp.eq.s32.totalorder %s18, 0
    %p167 = por %p165, %p166
    %s168 = sadd.s32 %s19, %s20
    %s169 = sadd.s32 %s31, %s27
    %s170 = ssub.s32 %s168, %s169
    %p171 = scmp.eq.s32.totalorder %s170, 0
    %s173 = sadd.s32 %s172, 1
    %s174 = scalar_select %p171, %s172, %s173
    %p177 = pneg %p171
    %p178 = scmp.eq.s32.totalorder %s12, 1
    %p179 = por %p177, %p178
    %p180 = scmp.ne.s32.totalorder %s172, %s175
    %p181 = scmp.eq.s32.totalorder %s12, 0
    %p182 = por %p180, %p181
    %p183 = scmp.ne.s32.totalorder %s172, %s175
    %p184 = scmp.eq.s32.totalorder %s17, 1
    %p185 = por %p183, %p184
    %p186 = scmp.ne.s32.totalorder %s175, %s176
    %p187 = scmp.eq.s32.totalorder %s17, 0
    %p188 = por %p186, %p187
    %p189 = scmp.ne.s32.totalorder %s175, %s176
    %p190 = scmp.eq.s32.totalorder %s18, 1
    %p191 = por %p189, %p190
    %p193 = scmp.ne.s32.totalorder %s176, %s192
    %p194 = scmp.eq.s32.totalorder %s18, 0
    %p195 = por %p193, %p194
    %p196 = scmp.le.s32.totalorder 1, %s12
    %p197 = scmp.lt.s32.totalorder %s12, 3
    %p198 = pnand %p196, %p197
    %p199 = pneg %p198
    // Predicated region
    $region9: #{lcab_apply.19} parent=5 // pred_check
      _
    $region10: #{lcab_apply.19} parent=5 // pred_check_branch
      %201 = sbr.rel (%p198) target = $region12
    $region11: #{lcab_apply.19} parent=5 // pred_region
      %s202 = ssub.s32 %s12, 1
    $region12: #{lcab_apply.19} parent=5 // pred_fallthru
      _
    %p203 = scmp.lt.s32.totalorder %s12, 2
    // Predicated region
    $region13: #{lcab_apply.19} parent=5 // pred_check
      %p204 = pneg %p203
    $region14: #{lcab_apply.19} parent=5 // pred_check_branch
      %206 = sbr.rel (%p204) target = $region16
    $region15: #{lcab_apply.19} parent=5 // pred_region
      // Predicated region
      $region17: #{lcab_apply.19} parent=15 // pred_check
        %p207 = pneg %p44
      $region18: #{lcab_apply.19} parent=15 // pred_check_branch
        %209 = sbr.rel (%p207) target = $region20
      $region19: #{lcab_apply.19} parent=15 // pred_region
        %p210 = scmp.lt.s32.totalorder %s19, 1
        %s211 = scalar_select %p210, %s19, 1
        %s212 = smul.addr %s211, 8
        %s213 = scalar_lea.vmem %s0, %s212
      $region20: #{lcab_apply.19} parent=15 // pred_fallthru
        _
      // Predicated region
      $region21: #{lcab_apply.19} parent=15 // pred_check
        %p214 = pneg %p70
      $region22: #{lcab_apply.19} parent=15 // pred_check_branch
        %216 = sbr.rel (%p214) target = $region24
      $region23: #{lcab_apply.19} parent=15 // pred_region
        %p217 = scmp.lt.s32.totalorder %s19, 1
        %s218 = scalar_select %p217, %s19, 1
        %s219 = smul.addr %s218, 4
        %s220 = scalar_lea.vmem %s1, %s219
      $region24: #{lcab_apply.19} parent=15 // pred_fallthru
        _
      // Predicated region
      $region25: #{lcab_apply.19} parent=15 // pred_check
        %p221 = pneg %p98
      $region26: #{lcab_apply.19} parent=15 // pred_check_branch
        %223 = sbr.rel (%p221) target = $region28
      $region27: #{lcab_apply.19} parent=15 // pred_region
        %s224 = sadd.s32 %s19, %s20
        %s225 = smul.u32 2, %s224
        %p226 = scmp.lt.s32.totalorder %s225, 3
        %s227 = scalar_select %p226, %s225, 3
        %s228 = smul.addr %s227, 2
        %s229 = scalar_lea.vmem %s2, %s228
        %s230 = sadd.s32 %s19, %s20
        %s231 = smul.u32 2, %s230
      $region28: #{lcab_apply.19} parent=15 // pred_fallthru
        _
      // Predicated region
      $region29: #{lcab_apply.19} parent=15 // pred_check
        %p232 = pneg %p126
      $region30: #{lcab_apply.19} parent=15 // pred_check_branch
        %234 = sbr.rel (%p232) target = $region32
      $region31: #{lcab_apply.19} parent=15 // pred_region
        %s235 = sadd.s32 %s19, %s20
        %s236 = smul.u32 2, %s235
        %p237 = scmp.lt.s32.totalorder %s236, 3
        %s238 = scalar_select %p237, %s236, 3
        %s239 = scalar_lea.vmem %s3, %s238
        %s240 = sadd.s32 %s19, %s20
        %s241 = smul.u32 2, %s240
      $region32: #{lcab_apply.19} parent=15 // pred_fallthru
        _
    $region16: #{lcab_apply.19} parent=5 // pred_fallthru
      _
    %p242 = scmp.le.s32.totalorder 1, %s12
    %p243 = scmp.lt.s32.totalorder %s12, 3
    %p244 = pnand %p242, %p243
    %p245 = pneg %p244
    // Predicated region
    $region33: #{lcab_apply.19} parent=5 // pred_check
      _
    $region34: #{lcab_apply.19} parent=5 // pred_check_branch
      %247 = sbr.rel (%p244) target = $region36
    $region35: #{lcab_apply.19} parent=5 // pred_region
      %s248 = ssub.s32 %s12, 1
      %p249 = scmp.lt.s32.totalorder %s21, 1
      %s250 = scalar_select %p249, %s21, 1
      %s251 = smul.addr %s250, 8
      %s252 = scalar_lea.vmem %s0, %s251
      %p253 = pneg %p50
      %p254 = pneg %p47
      %p255 = scmp.lt.s32.totalorder %s21, 1
      %s256 = scalar_select %p255, %s21, 1
      %s257 = smul.addr %s256, 4
      %s258 = scalar_lea.vmem %s1, %s257
      %p259 = pneg %p76
      %p260 = pneg %p73
      %s261 = sadd.s32 %s21, %s22
      %s262 = smul.u32 2, %s261
      %p263 = scmp.lt.s32.totalorder %s262, 3
      %s264 = scalar_select %p263, %s262, 3
      %s265 = smul.addr %s264, 2
      %s266 = scalar_lea.vmem %s2, %s265
      %p267 = pneg %p104
      %p268 = pneg %p101
      %s269 = sadd.s32 %s21, %s22
      %s270 = smul.u32 2, %s269
      %p271 = scmp.lt.s32.totalorder %s270, 3
      %s272 = scalar_select %p271, %s270, 3
      %s273 = scalar_lea.vmem %s3, %s272
      %p274 = pneg %p132
      %p275 = pneg %p129
      %p276 = pneg %p160
      %p277 = pneg %p157
      %s278 = sadd.s32 %s21, %s22
      %s279 = smul.u32 2, %s278
      %p280 = scmp.lt.s32.totalorder %s279, 3
      %s281 = scalar_select %p280, %s279, 3
      %s282 = smul.addr %s281, 8
      %s283 = scalar_lea.vmem %s4, %s282
      %p284 = pneg %p188
      %p285 = pneg %p185
      %s286 = sadd.s32 %s21, %s22
      %s287 = smul.u32 2, %s286
      %p288 = scmp.lt.s32.totalorder %s287, 3
      %s289 = scalar_select %p288, %s287, 3
      %s290 = smul.addr %s289, 4
      %s291 = scalar_lea.vmem %s5, %s290
      %p292 = scmp.lt.s32.totalorder %s21, 1
      %s293 = scalar_select %p292, %s21, 1
      %s294 = smul.addr %s293, 8
      %s295 = scalar_lea.vmem %s0, %s294
      %p296 = scmp.lt.s32.totalorder %s21, 1
      %s297 = scalar_select %p296, %s21, 1
      %s298 = smul.addr %s297, 4
      %s299 = scalar_lea.vmem %s1, %s298
      %s300 = sadd.s32 %s21, %s22
      %s301 = smul.u32 2, %s300
      %p302 = scmp.lt.s32.totalorder %s301, 3
      %s303 = scalar_select %p302, %s301, 3
      %s304 = smul.addr %s303, 2
      %s305 = scalar_lea.vmem %s2, %s304
      %s306 = sadd.s32 %s21, %s22
      %s307 = smul.u32 2, %s306
      %s308 = sadd.s32 %s21, %s22
      %s309 = smul.u32 2, %s308
      %p310 = scmp.lt.s32.totalorder %s309, 3
      %s311 = scalar_select %p310, %s309, 3
      %s312 = scalar_lea.vmem %s3, %s311
      %s313 = sadd.s32 %s21, %s22
      %s314 = smul.u32 2, %s313
      %s315 = sadd.s32 %s21, %s22
      %s316 = smul.u32 2, %s315
      %p317 = scmp.lt.s32.totalorder %s316, 3
      %s318 = scalar_select %p317, %s316, 3
      %s319 = smul.addr %s318, 8
      %s320 = scalar_lea.vmem %s4, %s319
      %s321 = sadd.s32 %s21, %s22
      %s322 = smul.u32 2, %s321
      %s323 = sadd.s32 %s21, %s22
      %s324 = smul.u32 2, %s323
      %p325 = scmp.lt.s32.totalorder %s324, 3
      %s326 = scalar_select %p325, %s324, 3
      %s327 = smul.addr %s326, 4
      %s328 = scalar_lea.vmem %s5, %s327
      %s329 = sadd.s32 %s21, %s22
      %s330 = smul.u32 2, %s329
      %v332 = vld [vmem:[%s295] sm:$0x3f]
      %v333 = vpack.c.bf16 %v332, %v332
      %v334 = vld [vmem:[%s299] sm:$0x7]
      %v335 = vpack.c.bf16 %v334, %v334
      %v336 = vld [vmem:[%s305] sm:$0xf]
      %v339 = vunpack.c.l.s4 1983009808
      %v340 = vunpack.c.0.s8 %v339
      %v341 = vlaneseq
      %v342 = vshrl.u32 %v341, 7
      %v343 = vsub.s32 %v340, %v342
      %v344 = vrot.slane %v336, %v343
      %v345 = vcombine.high %v344, %v344
      %vm346 = vcmask 23552
      %v348 = vsel %vm346, %v333, 0
      %vm350 = vcmask 1040384
      %vm351 = vcmask 1041408
      %v352 = vsel %vm350, 4294967295, 65535
      %v353 = vsel %vm351, %v352, 0
      %v355 = vand.u32 %v344, %v353
      %v358 = vand.u32 %v345, %v353
      %360 = vmatprep.subr.bf16.mxu0 0
      %361 = vmatpush1.bf16.msra.mxu0 0
      %362 = vmatprep.subr.bf16.mxu0 0
      %363 = vmatpush1.bf16.msra.mxu0 0
      %364 = vmatprep.subr.bf16.mxu0 0
      %365 = vmatpush1.bf16.msra.mxu0 0
      %366 = vmatprep.subr.bf16.mxu0 0
      %367 = vmatpush1.bf16.msra.mxu0 0
      %368 = vmatprep.subr.bf16.mxu0 0
      %369 = vmatpush1.bf16.msra.mxu0 0
      %370 = vmatprep.subr.bf16.mxu0 0
      %371 = vmatpush1.bf16.msra.mxu0 0
      %372 = vmatprep.subr.bf16.mxu0 0
      %373 = vmatpush1.bf16.msra.mxu0 0
      %374 = vmatprep.subr.bf16.mxu0 %v358
      %375 = vmatpush1.bf16.msra.mxu0 %v355
      %376 = vmatprep.subr.bf16.mxu0 0
      %377 = vmatpush2.bf16.msra.mxu0 0
      %378 = vmatprep.subr.bf16.mxu0 0
      %379 = vmatpush2.bf16.msra.mxu0 0
      %380 = vmatprep.subr.bf16.mxu0 0
      %381 = vmatpush2.bf16.msra.mxu0 0
      %382 = vmatprep.subr.bf16.mxu0 0
      %383 = vmatpush2.bf16.msra.mxu0 0
      %384 = vmatprep.subr.bf16.mxu0 0
      %385 = vmatpush2.bf16.msra.mxu0 0
      %386 = vmatprep.subr.bf16.mxu0 0
      %387 = vmatpush2.bf16.msra.mxu0 0
      %388 = vmatprep.subr.bf16.mxu0 0
      %389 = vmatpush2.bf16.msra.mxu0 0
      %390 = vmatprep.subr.bf16.mxu0 0
      %391 = vmatpush2.bf16.msra.mxu0 0
      %392 = vmatprep.mubr.bf16.mxu0 0
      %393 = vmatmul.mubr.bf16.gmra.mxu0 %v348
      %v394 = vpop.f32.mrf.mxu0
      %v395 = vadd.f32 0.0, %v394
      %v396 = vpop.f32.mrf.mxu0
      %v397 = vadd.f32 0.0, %v396
      %v398 = vpop.f32.mrf.mxu0
      %v399 = vpop.f32.mrf.mxu0
      %400 = vdwg.mxu0
      %401 = vst [vmem:[%s320] sm:$0x3f] %v395
      %402 = vst [vmem:[%s320 + $0x8] sm:$0x3f] %v397
      %v403 = vld [vmem:[%s312] sm:$0x3]
      %v406 = vunpack.c.l.s4 1966171168
      %v407 = vunpack.c.0.s8 %v406
      %v408 = vlaneseq
      %v409 = vshrl.u32 %v408, 7
      %v410 = vsub.s32 %v407, %v409
      %v411 = vrot.slane %v403, %v410
      %v412 = vcombine.high %v411, %v411
      %v414 = vunpack.c.l.s4 1966171168
      %v415 = vunpack.c.0.s8 %v414
      %v416 = vlaneseq
      %v417 = vshrl.u32 %v416, 7
      %v418 = vsub.s32 %v415, %v417
      %v419 = vrot.slane %v411, %v418
      %v421 = vunpack.c.l.s4 1966171168
      %v422 = vunpack.c.0.s8 %v421
      %v423 = vlaneseq
      %v424 = vshrl.u32 %v423, 7
      %v425 = vsub.s32 %v422, %v424
      %v426 = vrot.slane %v412, %v425
      %vm427 = vcmask 15360
      %v429 = vsel %vm427, %v335, 0
      %v432 = vsel %vm350, %v419, 0
      %v435 = vsel %vm350, %v426, 0
      %437 = vmatprep.subr.bf16.mxu0 0
      %438 = vmatpush1.bf16.msra.mxu0 0
      %439 = vmatprep.subr.bf16.mxu0 0
      %440 = vmatpush1.bf16.msra.mxu0 0
      %441 = vmatprep.subr.bf16.mxu0 0
      %442 = vmatpush1.bf16.msra.mxu0 0
      %443 = vmatprep.subr.bf16.mxu0 0
      %444 = vmatpush1.bf16.msra.mxu0 0
      %445 = vmatprep.subr.bf16.mxu0 0
      %446 = vmatpush1.bf16.msra.mxu0 0
      %447 = vmatprep.subr.bf16.mxu0 0
      %448 = vmatpush1.bf16.msra.mxu0 0
      %449 = vmatprep.subr.bf16.mxu0 0
      %450 = vmatpush1.bf16.msra.mxu0 0
      %451 = vmatprep.subr.bf16.mxu0 %v435
      %452 = vmatpush1.bf16.msra.mxu0 %v432
      %453 = vmatprep.subr.bf16.mxu0 0
      %454 = vmatpush2.bf16.msra.mxu0 0
      %455 = vmatprep.subr.bf16.mxu0 0
      %456 = vmatpush2.bf16.msra.mxu0 0
      %457 = vmatprep.subr.bf16.mxu0 0
      %458 = vmatpush2.bf16.msra.mxu0 0
      %459 = vmatprep.subr.bf16.mxu0 0
      %460 = vmatpush2.bf16.msra.mxu0 0
      %461 = vmatprep.subr.bf16.mxu0 0
      %462 = vmatpush2.bf16.msra.mxu0 0
      %463 = vmatprep.subr.bf16.mxu0 0
      %464 = vmatpush2.bf16.msra.mxu0 0
      %465 = vmatprep.subr.bf16.mxu0 0
      %466 = vmatpush2.bf16.msra.mxu0 0
      %467 = vmatprep.subr.bf16.mxu0 0
      %468 = vmatpush2.bf16.msra.mxu0 0
      %469 = vmatprep.mubr.bf16.mxu0 0
      %470 = vmatmul.mubr.bf16.gmra.mxu0 %v429
      %v471 = vpop.f32.mrf.mxu0
      %v472 = vadd.f32 0.0, %v471
      %v473 = vpop.f32.mrf.mxu0
      %v474 = vadd.f32 0.0, %v473
      %v475 = vpop.f32.mrf.mxu0
      %v476 = vpop.f32.mrf.mxu0
      %477 = vdwg.mxu0
      %v480 = vcombine.low %v472, %v474
      %482 = vst [vmem:[%s328] sm:$0x77] %v480
      %s483 = sadd.s32 %s21, %s22
      %s484 = smul.u32 2, %s483
      %p485 = scmp.lt.s32.totalorder %s484, 3
      %s486 = scalar_select %p485, %s484, 3
      %s487 = smul.addr %s486, 8
      %s488 = scalar_lea.vmem %s4, %s487
      %s489 = sadd.s32 %s21, %s22
      %s490 = smul.u32 2, %s489
      %p491 = scmp.lt.s32.totalorder %s490, 3
      %s492 = scalar_select %p491, %s490, 3
      %s493 = smul.addr %s492, 4
      %s494 = scalar_lea.vmem %s5, %s493
      // Predicated region
      $region37: #{lcab_apply.19} parent=35 // pred_check
        %p495 = pneg %p157
      $region38: #{lcab_apply.19} parent=35 // pred_check_branch
        %497 = sbr.rel (%p495) target = $region40
      $region39: #{lcab_apply.19} parent=35 // pred_region
        %s498 = sadd.s32 %s21, %s22
        %s499 = smul.u32 2, %s498
      $region40: #{lcab_apply.19} parent=35 // pred_fallthru
        _
      // Predicated region
      $region41: #{lcab_apply.19} parent=35 // pred_check
        %p500 = pneg %p185
      $region42: #{lcab_apply.19} parent=35 // pred_check_branch
        %502 = sbr.rel (%p500) target = $region44
      $region43: #{lcab_apply.19} parent=35 // pred_region
        %s503 = sadd.s32 %s21, %s22
        %s504 = smul.u32 2, %s503
      $region44: #{lcab_apply.19} parent=35 // pred_fallthru
        _
    $region36: #{lcab_apply.19} parent=5 // pred_fallthru
      _
    %p505 = scmp.le.s32.totalorder 2, %s12
    // Predicated region
    $region45: #{lcab_apply.19} parent=5 // pred_check
      %p506 = pneg %p505
    $region46: #{lcab_apply.19} parent=5 // pred_check_branch
      %508 = sbr.rel (%p506) target = $region48
    $region47: #{lcab_apply.19} parent=5 // pred_region
      %s509 = ssub.s32 %s12, 2
      // Predicated region
      $region49: #{lcab_apply.19} parent=47 // pred_check
        %p510 = pneg %p163
      $region50: #{lcab_apply.19} parent=47 // pred_check_branch
        %512 = sbr.rel (%p510) target = $region52
      $region51: #{lcab_apply.19} parent=47 // pred_region
        %s513 = sadd.s32 %s23, %s24
        %s514 = smul.u32 2, %s513
        %p515 = scmp.lt.s32.totalorder %s514, 3
        %s516 = scalar_select %p515, %s514, 3
        %s517 = smul.addr %s516, 8
        %s518 = scalar_lea.vmem %s4, %s517
      $region52: #{lcab_apply.19} parent=47 // pred_fallthru
        _
      // Predicated region
      $region53: #{lcab_apply.19} parent=47 // pred_check
        %p519 = pneg %p191
      $region54: #{lcab_apply.19} parent=47 // pred_check_branch
        %521 = sbr.rel (%p519) target = $region56
      $region55: #{lcab_apply.19} parent=47 // pred_region
        %s522 = sadd.s32 %s23, %s24
        %s523 = smul.u32 2, %s522
        %p524 = scmp.lt.s32.totalorder %s523, 3
        %s525 = scalar_select %p524, %s523, 3
        %s526 = smul.addr %s525, 4
        %s527 = scalar_lea.vmem %s5, %s526
      $region56: #{lcab_apply.19} parent=47 // pred_fallthru
        _
    $region48: #{lcab_apply.19} parent=5 // pred_fallthru
      _
  $region6: #{lcab_apply.19} parent=0 // loop_footer
    %s16 = sadd.s32 1, %s12
  $region7: #{lcab_apply.19} parent=0 // loop_footer_branch
    %11 = sbr.rel target = $region3
  $region8: #{lcab_apply.19} parent=0 // loop_exit
    _

// kernel: lcab_apply.17
$region0: #{lcab_apply.17}
  #allocation0 [shape = 'u32[]', space=smem, size = 0x4, offset = 0x4, fixed_abs, tag = 'smem constant byte address 0x4 - core index']
  #allocation1 [shape = 'u32[144,128]{1,0:T(1,128)}', space=vmem, size = 0x12000, scoped, tag = 'internal scratch']
  #allocation2 [shape = 'f32[16,256]{1,0:T(8,128)}', space=vmem, size = 0x4000, scoped, tag = 'scratch operand']
  %s0 = inlined_call_operand.vmem [shape: bf16[16,112], index: 0, kind: input, shape index: {}]
  %s1 = inlined_call_operand.vmem [shape: bf16[112,512], index: 1, kind: input, shape index: {}]
  %s2 = inlined_call_operand.vmem [shape: bf16[16,512], index: 2, kind: output, shape index: {}]
  %s3 = sld [smem:[#allocation0]]
  $region121: #{lcab_apply.17} parent=0
    _
  %s5 = ssub.s32 1, %s3
  %s6 = scalar_select 0, %s5, %s3
  $region1: #{lcab_apply.17} parent=0
    #allocation3 [shape = 'u8[114688]{0}', space=vmem, size = 0x1c000, scoped, tag = 'input window, operand 1']
    #allocation4 [shape = 'u8[16384]{0}', space=vmem, size = 0x4000, scoped, tag = 'output window, operand 0']
    loop: start=0, step=1, limit=4
    $region2: #{lcab_apply.17} parent=1 // loop_pre_header
      _
    $region3: #{lcab_apply.17} parent=1 // loop_header
      %s8 = sphi 0, %s12
      %p9 = scmp.ge.s32.totalorder %s8, 4
      %s15 = sphi 0, %s34
      %s16 = sphi 0, %s30
      %s17 = sphi 0, %s26
      %s18 = sphi 0, %s15
      %s19 = sphi 0, %s16
      %s20 = sphi 0, %s17
      %s21 = sphi 0, %s18
      %s22 = sphi 0, %s19
      %s23 = sphi 0, %s20
      %s39 = sphi 0, %s41
      %s42 = sphi 0, %s39
      %s43 = sphi 0, %s42
      %s59 = sphi 0, %s43
      %s67 = sphi 0, %s69
      %s70 = sphi 0, %s67
      %s71 = sphi 0, %s70
      %s87 = sphi 0, %s71
      %s95 = sphi 0, %s97
      %s98 = sphi 0, %s95
      %s99 = sphi 0, %s98
      %s115 = sphi 0, %s99
    $region4: #{lcab_apply.17} parent=1 // loop_header_branch
      %11 = sbr.rel (%p9) target = $region8
    $region5: #{lcab_apply.17} parent=1 // loop_body
      %s13 = ssub.s32 %s8, 1
      %s14 = ssub.s32 %s8, 2
      %s24 = sadd.s32 1, %s17
      %p25 = scmp.ge.s32.totalorder %s24, 1
      %s26 = scalar_select %p25, 0, %s24
      %s27 = sadd.s32 1, %s16
      %s28 = scalar_select %p25, %s27, %s16
      %p29 = scmp.ge.s32.totalorder %s28, 2
      %s30 = scalar_select %p29, 0, %s28
      %s31 = sadd.s32 1, %s15
      %s32 = scalar_select %p29, %s31, %s15
      %p33 = scmp.ge.s32.totalorder %s32, 1
      %s34 = scalar_select %p33, 0, %s32
      %s35 = ssub.s32 %s15, %s34
      %s36 = ssub.s32 %s17, %s26
      %s37 = sor.u32 %s35, %s36
      %p38 = scmp.eq.s32.totalorder %s37, 0
      %s40 = sadd.s32 %s39, 1
      %s41 = scalar_select %p38, %s39, %s40
      %p44 = pneg %p38
      %p45 = scmp.eq.s32.totalorder %s8, 1
      %p46 = por %p44, %p45
      %p47 = scmp.ne.s32.totalorder %s39, %s42
      %p48 = scmp.eq.s32.totalorder %s8, 0
      %p49 = por %p47, %p48
      %p50 = scmp.ne.s32.totalorder %s39, %s42
      %p51 = scmp.eq.s32.totalorder %s13, 1
      %p52 = por %p50, %p51
      %p53 = scmp.ne.s32.totalorder %s42, %s43
      %p54 = scmp.eq.s32.totalorder %s13, 0
      %p55 = por %p53, %p54
      %p56 = scmp.ne.s32.totalorder %s42, %s43
      %p57 = scmp.eq.s32.totalorder %s14, 1
      %p58 = por %p56, %p57
      %p60 = scmp.ne.s32.totalorder %s43, %s59
      %p61 = scmp.eq.s32.totalorder %s14, 0
      %p62 = por %p60, %p61
      %s63 = ssub.s32 %s17, %s26
      %s64 = ssub.s32 %s16, %s30
      %s65 = sor.u32 %s63, %s64
      %p66 = scmp.eq.s32.totalorder %s65, 0
      %s68 = sadd.s32 %s67, 1
      %s69 = scalar_select %p66, %s67, %s68
      %p72 = pneg %p66
      %p73 = scmp.eq.s32.totalorder %s8, 1
      %p74 = por %p72, %p73
      %p75 = scmp.ne.s32.totalorder %s67, %s70
      %p76 = scmp.eq.s32.totalorder %s8, 0
      %p77 = por %p75, %p76
      %p78 = scmp.ne.s32.totalorder %s67, %s70
      %p79 = scmp.eq.s32.totalorder %s13, 1
      %p80 = por %p78, %p79
      %p81 = scmp.ne.s32.totalorder %s70, %s71
      %p82 = scmp.eq.s32.totalorder %s13, 0
      %p83 = por %p81, %p82
      %p84 = scmp.ne.s32.totalorder %s70, %s71
      %p85 = scmp.eq.s32.totalorder %s14, 1
      %p86 = por %p84, %p85
      %p88 = scmp.ne.s32.totalorder %s71, %s87
      %p89 = scmp.eq.s32.totalorder %s14, 0
      %p90 = por %p88, %p89
      %s91 = ssub.s32 %s15, %s34
      %s92 = ssub.s32 %s16, %s30
      %s93 = sor.u32 %s91, %s92
      %p94 = scmp.eq.s32.totalorder %s93, 0
      %s96 = sadd.s32 %s95, 1
      %s97 = scalar_select %p94, %s95, %s96
      %p100 = pneg %p94
      %p101 = scmp.eq.s32.totalorder %s8, 1
      %p102 = por %p100, %p101
      %p103 = scmp.ne.s32.totalorder %s95, %s98
      %p104 = scmp.eq.s32.totalorder %s8, 0
      %p105 = por %p103, %p104
      %p106 = scmp.ne.s32.totalorder %s95, %s98
      %p107 = scmp.eq.s32.totalorder %s13, 1
      %p108 = por %p106, %p107
      %p109 = scmp.ne.s32.totalorder %s98, %s99
      %p110 = scmp.eq.s32.totalorder %s13, 0
      %p111 = por %p109, %p110
      %p112 = scmp.ne.s32.totalorder %s98, %s99
      %p113 = scmp.eq.s32.totalorder %s14, 1
      %p114 = por %p112, %p113
      %p116 = scmp.ne.s32.totalorder %s99, %s115
      %p117 = scmp.eq.s32.totalorder %s14, 0
      %p118 = por %p116, %p117
      %p119 = scmp.le.s32.totalorder 1, %s8
      %p120 = scmp.lt.s32.totalorder %s8, 3
      %p121 = pnand %p119, %p120
      %p122 = pneg %p121
      // Predicated region
      $region9: #{lcab_apply.17} parent=5 // pred_check
        _
      $region10: #{lcab_apply.17} parent=5 // pred_check_branch
        %124 = sbr.rel (%p121) target = $region12
      $region11: #{lcab_apply.17} parent=5 // pred_region
        %s125 = ssub.s32 %s8, 1
        // Predicated region
        $region13: #{lcab_apply.17} parent=11 // pred_check
          %p126 = pneg %p55
        $region14: #{lcab_apply.17} parent=11 // pred_check_branch
          %128 = sbr.rel (%p126) target = $region16
        $region15: #{lcab_apply.17} parent=11 // pred_region
          %s129 = smul.u32 2, %s18
          %p130 = scmp.lt.s32.totalorder %s129, 1
          %s131 = scalar_select %p130, %s129, 1
          %p132 = scmp.lt.s32.totalorder %s20, 0
          %s133 = scalar_select %p132, %s20, 0
          %s134 = sadd.s32 %s133, %s131
          %s135 = smul.addr %s134, 4
          %s136 = scalar_lea.vmem %s0, %s135
          %s137 = smul.u32 2, %s18
        $region16: #{lcab_apply.17} parent=11 // pred_fallthru
          _
      $region12: #{lcab_apply.17} parent=5 // pred_fallthru
        _
      %p138 = scmp.lt.s32.totalorder %s8, 2
      // Predicated region
      $region17: #{lcab_apply.17} parent=5 // pred_check
        %p139 = pneg %p138
      $region18: #{lcab_apply.17} parent=5 // pred_check_branch
        %141 = sbr.rel (%p139) target = $region20
      $region19: #{lcab_apply.17} parent=5 // pred_region
        // Predicated region
        $region21: #{lcab_apply.17} parent=19 // pred_check
          %p142 = pneg %p77
        $region22: #{lcab_apply.17} parent=19 // pred_check_branch
          %144 = sbr.rel (%p142) target = $region24
        $region23: #{lcab_apply.17} parent=19 // pred_region
          %s145 = sand.u32 %s67, 1
          %s146 = sand.u32 %s67, 1
          %s147 = smul.addr %s146, 112
          %s148 = scalar_lea.vmem [#allocation3], %s147
          %s149 = smul.u32 14, %s17
          %s150 = smul.u32 2, %s16
          %s151 = smul.addr %s149, 4
          %s152 = sadd.s32 %s150, %s151
          %s153 = smul.addr %s152, 4
          %s154 = scalar_lea.vmem %s1, %s153
          // Predicated region
          $region25: #{lcab_apply.17} parent=23 // pred_check
            _
          $region26: #{lcab_apply.17} parent=23 // pred_check_branch
            %156 = sbr.rel (0) target = $region28
          $region27: #{lcab_apply.17} parent=23 // pred_region
            // Predicated region
            $region29: #{lcab_apply.17} parent=27 // pred_check
              _
            $region30: #{lcab_apply.17} parent=27 // pred_check_branch
              %158 = sbr.rel (0) target = $region32
            $region31: #{lcab_apply.17} parent=27 // pred_region
              // Predicated region
              $region44: #{lcab_apply.17} parent=31 // pred_check
                _
              $region45: #{lcab_apply.17} parent=31 // pred_check_branch
                %200 = sbr.rel (0) target = $region47
              $region46: #{lcab_apply.17} parent=31 // pred_region
                loop: start=0, step=1, limit=1
                $region48: #{lcab_apply.17} parent=46 // loop_pre_header
                  _
                $region49: #{lcab_apply.17} parent=46 // loop_header
                  %s202 = sphi 0, %s206
                  %p203 = scmp.ge.s32.totalorder %s202, 1
                  %s207 = sphi %s154, %s154
                  %s208 = sphi %s148, %s148
                $region50: #{lcab_apply.17} parent=46 // loop_header_branch
                  %205 = sbr.rel (%p203) target = $region54
                $region51: #{lcab_apply.17} parent=46 // loop_body
                  %v209 = vld [vmem:[%s207] sm:$0xff]
                  %210 = vst [vmem:[%s208] sm:$0xff] %v209
                  %v211 = vld [vmem:[%s207 + $0x10] sm:$0xff]
                  %212 = vst [vmem:[%s208 + $0x8] sm:$0xff] %v211
                  %v213 = vld [vmem:[%s207 + $0x20] sm:$0xff]
                  %214 = vst [vmem:[%s208 + $0x10] sm:$0xff] %v213
                  %v215 = vld [vmem:[%s207 + $0x30] sm:$0xff]
                  %216 = vst [vmem:[%s208 + $0x18] sm:$0xff] %v215
                  %v217 = vld [vmem:[%s207 + $0x40] sm:$0xff]
                  %218 = vst [vmem:[%s208 + $0x20] sm:$0xff] %v217
                  %v219 = vld [vmem:[%s207 + $0x50] sm:$0xff]
                  %220 = vst [vmem:[%s208 + $0x28] sm:$0xff] %v219
                  %v221 = vld [vmem:[%s207 + $0x60] sm:$0xff]
                  %222 = vst [vmem:[%s208 + $0x30] sm:$0xff] %v221
                  %v223 = vld [vmem:[%s207 + $0x70] sm:$0xff]
                  %224 = vst [vmem:[%s208 + $0x38] sm:$0xff] %v223
                  %v225 = vld [vmem:[%s207 + $0x80] sm:$0xff]
                  %226 = vst [vmem:[%s208 + $0x40] sm:$0xff] %v225
                  %v227 = vld [vmem:[%s207 + $0x90] sm:$0xff]
                  %228 = vst [vmem:[%s208 + $0x48] sm:$0xff] %v227
                  %v229 = vld [vmem:[%s207 + $0xa0] sm:$0xff]
                  %230 = vst [vmem:[%s208 + $0x50] sm:$0xff] %v229
                  %v231 = vld [vmem:[%s207 + $0xb0] sm:$0xff]
                  %232 = vst [vmem:[%s208 + $0x58] sm:$0xff] %v231
                  %v233 = vld [vmem:[%s207 + $0xc0] sm:$0xff]
                  %234 = vst [vmem:[%s208 + $0x60] sm:$0xff] %v233
                  %v235 = vld [vmem:[%s207 + $0xd0] sm:$0xff]
                  %236 = vst [vmem:[%s208 + $0x68] sm:$0xff] %v235
                $region52: #{lcab_apply.17} parent=46 // loop_footer
                  %s206 = sadd.s32 1, %s202
                $region53: #{lcab_apply.17} parent=46 // loop_footer_branch
                  %201 = sbr.rel target = $region49
                $region54: #{lcab_apply.17} parent=46 // loop_exit
                  _
              $region47: #{lcab_apply.17} parent=31 // pred_fallthru
                _
              // Predicated region
              $region55: #{lcab_apply.17} parent=31 // pred_check
                _
              $region56: #{lcab_apply.17} parent=31 // pred_check_branch
                %238 = sbr.rel target = $region58
              $region57: #{lcab_apply.17} parent=31 // pred_region
                _
              $region58: #{lcab_apply.17} parent=31 // pred_fallthru
                _
            $region32: #{lcab_apply.17} parent=27 // pred_fallthru
              _
            // Predicated region
            $region33: #{lcab_apply.17} parent=27 // pred_check
              _
            $region34: #{lcab_apply.17} parent=27 // pred_check_branch
              %160 = sbr.rel target = $region36
            $region35: #{lcab_apply.17} parent=27 // pred_region
              %s162 = ssub.s32 256, 1
              loop: start=0, step=1, limit=1
              $region37: #{lcab_apply.17} parent=35 // loop_pre_header
                _
              $region38: #{lcab_apply.17} parent=35 // loop_header
                %s164 = sphi 0, %s168
                %p165 = scmp.ge.s32.totalorder %s164, 1
                %s169 = sphi %s154, %s154
                %s170 = sphi %s148, %s148
              $region39: #{lcab_apply.17} parent=35 // loop_header_branch
                %167 = sbr.rel (%p165) target = $region43
              $region40: #{lcab_apply.17} parent=35 // loop_body
                %v171 = vld [vmem:[%s169] sm:%s162]
                %172 = vst [vmem:[%s170] sm:%s162] %v171
                %v173 = vld [vmem:[%s169 + $0x10] sm:%s162]
                %174 = vst [vmem:[%s170 + $0x8] sm:%s162] %v173
                %v175 = vld [vmem:[%s169 + $0x20] sm:%s162]
                %176 = vst [vmem:[%s170 + $0x10] sm:%s162] %v175
                %v177 = vld [vmem:[%s169 + $0x30] sm:%s162]
                %178 = vst [vmem:[%s170 + $0x18] sm:%s162] %v177
                %v179 = vld [vmem:[%s169 + $0x40] sm:%s162]
                %180 = vst [vmem:[%s170 + $0x20] sm:%s162] %v179
                %v181 = vld [vmem:[%s169 + $0x50] sm:%s162]
                %182 = vst [vmem:[%s170 + $0x28] sm:%s162] %v181
                %v183 = vld [vmem:[%s169 + $0x60] sm:%s162]
                %184 = vst [vmem:[%s170 + $0x30] sm:%s162] %v183
                %v185 = vld [vmem:[%s169 + $0x70] sm:%s162]
                %186 = vst [vmem:[%s170 + $0x38] sm:%s162] %v185
                %v187 = vld [vmem:[%s169 + $0x80] sm:%s162]
                %188 = vst [vmem:[%s170 + $0x40] sm:%s162] %v187
                %v189 = vld [vmem:[%s169 + $0x90] sm:%s162]
                %190 = vst [vmem:[%s170 + $0x48] sm:%s162] %v189
                %v191 = vld [vmem:[%s169 + $0xa0] sm:%s162]
                %192 = vst [vmem:[%s170 + $0x50] sm:%s162] %v191
                %v193 = vld [vmem:[%s169 + $0xb0] sm:%s162]
                %194 = vst [vmem:[%s170 + $0x58] sm:%s162] %v193
                %v195 = vld [vmem:[%s169 + $0xc0] sm:%s162]
                %196 = vst [vmem:[%s170 + $0x60] sm:%s162] %v195
                %v197 = vld [vmem:[%s169 + $0xd0] sm:%s162]
                %198 = vst [vmem:[%s170 + $0x68] sm:%s162] %v197
              $region41: #{lcab_apply.17} parent=35 // loop_footer
                %s168 = sadd.s32 1, %s164
              $region42: #{lcab_apply.17} parent=35 // loop_footer_branch
                %163 = sbr.rel target = $region38
              $region43: #{lcab_apply.17} parent=35 // loop_exit
                _
            $region36: #{lcab_apply.17} parent=27 // pred_fallthru
              _
          $region28: #{lcab_apply.17} parent=23 // pred_fallthru
            _
          %239 = vnop
        $region24: #{lcab_apply.17} parent=19 // pred_fallthru
          _
      $region20: #{lcab_apply.17} parent=5 // pred_fallthru
        _
      %p240 = scmp.le.s32.totalorder 1, %s8
      %p241 = scmp.lt.s32.totalorder %s8, 3
      %p242 = pnand %p240, %p241
      %p243 = pneg %p242
      // Predicated region
      $region59: #{lcab_apply.17} parent=5 // pred_check
        _
      $region60: #{lcab_apply.17} parent=5 // pred_check_branch
        %245 = sbr.rel (%p242) target = $region62
      $region61: #{lcab_apply.17} parent=5 // pred_region
        %s246 = ssub.s32 %s8, 1
        %s247 = sand.u32 %s70, 1
        %s248 = sand.u32 %s70, 1
        %s249 = smul.addr %s248, 112
        %s250 = scalar_lea.vmem [#allocation3], %s249
        // Predicated region
        $region63: #{lcab_apply.17} parent=61 // pred_check
          %p251 = pneg %p83
        $region64: #{lcab_apply.17} parent=61 // pred_check_branch
          %253 = sbr.rel (%p251) target = $region66
        $region65: #{lcab_apply.17} parent=61 // pred_region
          _
        $region66: #{lcab_apply.17} parent=61 // pred_fallthru
          _
        %s254 = smul.u32 2, %s18
        %p255 = scmp.lt.s32.totalorder %s254, 1
        %s256 = scalar_select %p255, %s254, 1
        %p257 = scmp.lt.s32.totalorder %s20, 0
        %s258 = scalar_select %p257, %s20, 0
        %s259 = sadd.s32 %s258, %s256
        %s260 = smul.addr %s259, 4
        %s261 = scalar_lea.vmem %s0, %s260
        %p262 = pneg %p55
        %p263 = pneg %p52
        %s264 = sand.u32 %s70, 1
        %s265 = sand.u32 %s70, 1
        %s266 = smul.addr %s265, 112
        %s267 = scalar_lea.vmem [#allocation3], %s266
        %p268 = pneg %p83
        %p269 = pneg %p80
        %p270 = pneg %p111
        %p271 = pneg %p108
        %s272 = sand.u32 %s98, 1
        %s273 = sand.u32 %s98, 1
        %s274 = smul.addr %s273, 16
        %s275 = scalar_lea.vmem [#allocation4], %s274
        %s276 = smul.u32 2, %s18
        %p277 = scmp.lt.s32.totalorder %s276, 1
        %s278 = scalar_select %p277, %s276, 1
        %p279 = scmp.lt.s32.totalorder %s20, 0
        %s280 = scalar_select %p279, %s20, 0
        %s281 = sadd.s32 %s280, %s278
        %s282 = smul.addr %s281, 4
        %s283 = scalar_lea.vmem %s0, %s282
        %s284 = smul.u32 2, %s18
        %s285 = smul.u32 14, %s20
        %s286 = smul.u32 2, %s19
        %s287 = smul.u32 2, %s18
        %s288 = smul.u32 2, %s19
        %p290 = scmp.eq.s32.totalorder %s20, 0
        // Predicated region
        $region67: #{lcab_apply.17} parent=61 // pred_check
          %p291 = pneg %p290
        $region68: #{lcab_apply.17} parent=61 // pred_check_branch
          %293 = sbr.rel (%p291) target = $region70
        $region69: #{lcab_apply.17} parent=61 // pred_region
          %294 = vst [vmem:[#allocation2] sm:$0xff] 0.0
          %295 = vst [vmem:[#allocation2 + $0x8] sm:$0xff] 0.0
          %296 = vst [vmem:[#allocation2 + $0x10] sm:$0xff] 0.0
          %297 = vst [vmem:[#allocation2 + $0x18] sm:$0xff] 0.0
        $region70: #{lcab_apply.17} parent=61 // pred_fallthru
          _
        %v298 = vld [vmem:[#allocation2] sm:$0xff]
        %v299 = vld [vmem:[#allocation2 + $0x8] sm:$0xff]
        %v300 = vld [vmem:[#allocation2 + $0x10] sm:$0xff]
        %v301 = vld [vmem:[#allocation2 + $0x18] sm:$0xff]
        %v302 = vld [vmem:[%s283] sm:$0xf]
        %v303 = vld [vmem:[%s283 + $0x4] sm:$0xf]
        %v304 = vld [vmem:[%s250] sm:$0xff]
        %v305 = vld [vmem:[%s250 + $0x8] sm:$0xff]
        %v306 = vld [vmem:[%s250 + $0x10] sm:$0xff]
        %v307 = vld [vmem:[%s250 + $0x18] sm:$0xff]
        %v308 = vld [vmem:[%s250 + $0x20] sm:$0xff]
        %v309 = vld [vmem:[%s250 + $0x28] sm:$0xff]
        %v310 = vld [vmem:[%s250 + $0x30] sm:$0xff]
        %v311 = vld [vmem:[%s250 + $0x38] sm:$0xff]
        %v312 = vld [vmem:[%s250 + $0x40] sm:$0xff]
        %v313 = vld [vmem:[%s250 + $0x48] sm:$0xff]
        %v314 = vld [vmem:[%s250 + $0x50] sm:$0xff]
        %v315 = vld [vmem:[%s250 + $0x58] sm:$0xff]
        %v316 = vld [vmem:[%s250 + $0x60] sm:$0xff]
        %v317 = vld [vmem:[%s250 + $0x68] sm:$0xff]
        %v320 = vunpack.c.l.b16 %v302
        %v321 = vunpack.c.l.b16 %v303
        %v322 = vpack.c.b16 %v321, %v320
        %v337 = vunpack.c.l.b16 %v304
        %v338 = vunpack.c.h.b16 %v304
        %v339 = vunpack.c.l.b16 %v305
        %v340 = vunpack.c.h.b16 %v305
        %v341 = vunpack.c.l.b16 %v306
        %v342 = vunpack.c.h.b16 %v306
        %v343 = vunpack.c.l.b16 %v307
        %v344 = vunpack.c.h.b16 %v307
        %v345 = vunpack.c.l.b16 %v308
        %v346 = vunpack.c.h.b16 %v308
        %v347 = vunpack.c.l.b16 %v309
        %v348 = vunpack.c.h.b16 %v309
        %v349 = vunpack.c.l.b16 %v310
        %v350 = vunpack.c.h.b16 %v310
        %v351 = vunpack.c.l.b16 %v311
        %v352 = vunpack.c.h.b16 %v311
        %v353 = vunpack.c.l.b16 %v312
        %v354 = vunpack.c.h.b16 %v312
        %v355 = vunpack.c.l.b16 %v313
        %v356 = vunpack.c.h.b16 %v313
        %v357 = vunpack.c.l.b16 %v314
        %v358 = vunpack.c.h.b16 %v314
        %v359 = vunpack.c.l.b16 %v315
        %v360 = vunpack.c.h.b16 %v315
        %v361 = vunpack.c.l.b16 %v316
        %v362 = vunpack.c.h.b16 %v316
        %v363 = vunpack.c.l.b16 %v317
        %v364 = vunpack.c.h.b16 %v317
        %v365 = vpack.c.b16 %v339, %v337
        %v366 = vpack.c.b16 %v340, %v338
        %v367 = vpack.c.b16 %v343, %v341
        %v368 = vpack.c.b16 %v344, %v342
        %v369 = vpack.c.b16 %v347, %v345
        %v370 = vpack.c.b16 %v348, %v346
        %v371 = vpack.c.b16 %v351, %v349
        %v372 = vpack.c.b16 %v352, %v350
        %v373 = vpack.c.b16 %v355, %v353
        %v374 = vpack.c.b16 %v356, %v354
        %v375 = vpack.c.b16 %v359, %v357
        %v376 = vpack.c.b16 %v360, %v358
        %v377 = vpack.c.b16 %v363, %v361
        %v378 = vpack.c.b16 %v364, %v362
        %vm393 = vcmask 916480
        %v395 = vsel %vm393, %v322, 0
        %397 = vmatprep.subr.bf16.mxu0 0
        %398 = vmatpush1.bf16.msra.mxu0 0
        %399 = vmatprep.subr.bf16.mxu0 %v378
        %400 = vmatpush1.bf16.msra.mxu0 %v377
        %401 = vmatprep.subr.bf16.mxu0 %v376
        %402 = vmatpush1.bf16.msra.mxu0 %v375
        %403 = vmatprep.subr.bf16.mxu0 %v374
        %404 = vmatpush1.bf16.msra.mxu0 %v373
        %405 = vmatprep.subr.bf16.mxu0 %v372
        %406 = vmatpush1.bf16.msra.mxu0 %v371
        %407 = vmatprep.subr.bf16.mxu0 %v370
        %408 = vmatpush1.bf16.msra.mxu0 %v369
        %409 = vmatprep.subr.bf16.mxu0 %v368
        %410 = vmatpush1.bf16.msra.mxu0 %v367
        %411 = vmatprep.subr.bf16.mxu0 %v366
        %412 = vmatpush1.bf16.msra.mxu0 %v365
        %413 = vmatprep.subr.bf16.mxu0 0
        %414 = vmatpush2.bf16.msra.mxu0 0
        %415 = vmatprep.subr.bf16.mxu0 0
        %416 = vmatpush2.bf16.msra.mxu0 0
        %417 = vmatprep.subr.bf16.mxu0 0
        %418 = vmatpush2.bf16.msra.mxu0 0
        %419 = vmatprep.subr.bf16.mxu0 0
        %420 = vmatpush2.bf16.msra.mxu0 0
        %421 = vmatprep.subr.bf16.mxu0 0
        %422 = vmatpush2.bf16.msra.mxu0 0
        %423 = vmatprep.subr.bf16.mxu0 0
        %424 = vmatpush2.bf16.msra.mxu0 0
        %425 = vmatprep.subr.bf16.mxu0 0
        %426 = vmatpush2.bf16.msra.mxu0 0
        %427 = vmatprep.subr.bf16.mxu0 0
        %428 = vmatpush2.bf16.msra.mxu0 0
        %429 = vmatprep.mubr.bf16.mxu0 0
        %430 = vmatmul.mubr.bf16.gmra.mxu0 %v395
        %v431 = vpop.f32.mrf.mxu0
        %v432 = vadd.f32 0.0, %v431
        %v433 = vpop.f32.mrf.mxu0
        %v434 = vadd.f32 0.0, %v433
        %v435 = vpop.f32.mrf.mxu0
        %v436 = vadd.f32 0.0, %v435
        %v437 = vpop.f32.mrf.mxu0
        %v438 = vadd.f32 0.0, %v437
        %439 = vdwg.mxu0
        %v440 = vadd.f32 %v298, %v432
        %v441 = vadd.f32 %v299, %v434
        %v442 = vadd.f32 %v300, %v436
        %v443 = vadd.f32 %v301, %v438
        %444 = vst [vmem:[#allocation2] sm:$0xff] %v440
        %445 = vst [vmem:[#allocation2 + $0x8] sm:$0xff] %v441
        %446 = vst [vmem:[#allocation2 + $0x10] sm:$0xff] %v442
        %447 = vst [vmem:[#allocation2 + $0x18] sm:$0xff] %v443
        // Predicated region
        $region71: #{lcab_apply.17} parent=61 // pred_check
          %p448 = pneg %p290
        $region72: #{lcab_apply.17} parent=61 // pred_check_branch
          %450 = sbr.rel (%p448) target = $region74
        $region73: #{lcab_apply.17} parent=61 // pred_region
          %v451 = vld [vmem:[#allocation2] sm:$0xff]
          %v452 = vld [vmem:[#allocation2 + $0x8] sm:$0xff]
          %v453 = vld [vmem:[#allocation2 + $0x10] sm:$0xff]
          %v454 = vld [vmem:[#allocation2 + $0x18] sm:$0xff]
          %v455 = vpack.c.bf16 %v453, %v451
          %v456 = vpack.c.bf16 %v454, %v452
          %v459 = vunpack.c.l.b16 %v455
          %v460 = vunpack.c.l.b16 %v456
          %v461 = vunpack.c.h.b16 %v455
          %v462 = vunpack.c.h.b16 %v456
          %v463 = vpack.c.b16 %v460, %v459
          %v464 = vpack.c.b16 %v462, %v461
          %467 = vst [vmem:[%s275] sm:$0xff] %v463
          %468 = vst [vmem:[%s275 + $0x8] sm:$0xff] %v464
        $region74: #{lcab_apply.17} parent=61 // pred_fallthru
          _
        %s469 = sand.u32 %s98, 1
        %s470 = sand.u32 %s98, 1
        %s471 = smul.addr %s470, 16
        %s472 = scalar_lea.vmem [#allocation4], %s471
        // Predicated region
        $region75: #{lcab_apply.17} parent=61 // pred_check
          %p473 = pneg %p108
        $region76: #{lcab_apply.17} parent=61 // pred_check_branch
          %475 = sbr.rel (%p473) target = $region78
        $region77: #{lcab_apply.17} parent=61 // pred_region
          %s476 = smul.u32 2, %s18
          %s477 = smul.u32 2, %s19
          %s478 = smul.addr %s476, 4
          %s479 = sadd.s32 %s477, %s478
          %s480 = smul.addr %s479, 4
          %s481 = scalar_lea.vmem %s2, %s480
          // Predicated region
          $region79: #{lcab_apply.17} parent=77 // pred_check
            _
          $region80: #{lcab_apply.17} parent=77 // pred_check_branch
            %483 = sbr.rel (0) target = $region82
          $region81: #{lcab_apply.17} parent=77 // pred_region
            // Predicated region
            $region83: #{lcab_apply.17} parent=81 // pred_check
              _
            $region84: #{lcab_apply.17} parent=81 // pred_check_branch
              %485 = sbr.rel (0) target = $region86
            $region85: #{lcab_apply.17} parent=81 // pred_region
              // Predicated region
              $region98: #{lcab_apply.17} parent=85 // pred_check
                _
              $region99: #{lcab_apply.17} parent=85 // pred_check_branch
                %503 = sbr.rel (0) target = $region101
              $region100: #{lcab_apply.17} parent=85 // pred_region
                loop: start=0, step=1, limit=1
                $region102: #{lcab_apply.17} parent=100 // loop_pre_header
                  _
                $region103: #{lcab_apply.17} parent=100 // loop_header
                  %s505 = sphi 0, %s509
                  %p506 = scmp.ge.s32.totalorder %s505, 1
                  %s510 = sphi %s472, %s472
                  %s511 = sphi %s481, %s481
                $region104: #{lcab_apply.17} parent=100 // loop_header_branch
                  %508 = sbr.rel (%p506) target = $region108
                $region105: #{lcab_apply.17} parent=100 // loop_body
                  %v512 = vld [vmem:[%s510] sm:$0xff]
                  %513 = vst [vmem:[%s511] sm:$0xff] %v512
                  %v514 = vld [vmem:[%s510 + $0x8] sm:$0xff]
                  %515 = vst [vmem:[%s511 + $0x10] sm:$0xff] %v514
                $region106: #{lcab_apply.17} parent=100 // loop_footer
                  %s509 = sadd.s32 1, %s505
                $region107: #{lcab_apply.17} parent=100 // loop_footer_branch
                  %504 = sbr.rel target = $region103
                $region108: #{lcab_apply.17} parent=100 // loop_exit
                  _
              $region101: #{lcab_apply.17} parent=85 // pred_fallthru
                _
              // Predicated region
              $region109: #{lcab_apply.17} parent=85 // pred_check
                _
              $region110: #{lcab_apply.17} parent=85 // pred_check_branch
                %517 = sbr.rel target = $region112
              $region111: #{lcab_apply.17} parent=85 // pred_region
                _
              $region112: #{lcab_apply.17} parent=85 // pred_fallthru
                _
            $region86: #{lcab_apply.17} parent=81 // pred_fallthru
              _
            // Predicated region
            $region87: #{lcab_apply.17} parent=81 // pred_check
              _
            $region88: #{lcab_apply.17} parent=81 // pred_check_branch
              %487 = sbr.rel target = $region90
            $region89: #{lcab_apply.17} parent=81 // pred_region
              %s489 = ssub.s32 256, 1
              loop: start=0, step=1, limit=1
              $region91: #{lcab_apply.17} parent=89 // loop_pre_header
                _
              $region92: #{lcab_apply.17} parent=89 // loop_header
                %s491 = sphi 0, %s495
                %p492 = scmp.ge.s32.totalorder %s491, 1
                %s496 = sphi %s472, %s472
                %s497 = sphi %s481, %s481
              $region93: #{lcab_apply.17} parent=89 // loop_header_branch
                %494 = sbr.rel (%p492) target = $region97
              $region94: #{lcab_apply.17} parent=89 // loop_body
                %v498 = vld [vmem:[%s496] sm:%s489]
                %499 = vst [vmem:[%s497] sm:%s489] %v498
                %v500 = vld [vmem:[%s496 + $0x8] sm:%s489]
                %501 = vst [vmem:[%s497 + $0x10] sm:%s489] %v500
              $region95: #{lcab_apply.17} parent=89 // loop_footer
                %s495 = sadd.s32 1, %s491
              $region96: #{lcab_apply.17} parent=89 // loop_footer_branch
                %490 = sbr.rel target = $region92
              $region97: #{lcab_apply.17} parent=89 // loop_exit
                _
            $region90: #{lcab_apply.17} parent=81 // pred_fallthru
              _
          $region82: #{lcab_apply.17} parent=77 // pred_fallthru
            _
          %518 = vnop
        $region78: #{lcab_apply.17} parent=61 // pred_fallthru
          _
      $region62: #{lcab_apply.17} parent=5 // pred_fallthru
        _
      %p519 = scmp.le.s32.totalorder 2, %s8
      // Predicated region
      $region113: #{lcab_apply.17} parent=5 // pred_check
        %p520 = pneg %p519
      $region114: #{lcab_apply.17} parent=5 // pred_check_branch
        %522 = sbr.rel (%p520) target = $region116
      $region115: #{lcab_apply.17} parent=5 // pred_region
        %s523 = ssub.s32 %s8, 2
        // Predicated region
        $region117: #{lcab_apply.17} parent=115 // pred_check
          %p524 = pneg %p114
        $region118: #{lcab_apply.17} parent=115 // pred_check_branch
          %526 = sbr.rel (%p524) target = $region120
        $region119: #{lcab_apply.17} parent=115 // pred_region
          %s527 = sand.u32 %s99, 1
          %s528 = sand.u32 %s99, 1
          %s529 = smul.addr %s528, 16
          %s530 = scalar_lea.vmem [#allocation4], %s529
        $region120: #{lcab_apply.17} parent=115 // pred_fallthru
          _
      $region116: #{lcab_apply.17} parent=5 // pred_fallthru
        _
    $region6: #{lcab_apply.17} parent=1 // loop_footer
      %s12 = sadd.s32 1, %s8
    $region7: #{lcab_apply.17} parent=1 // loop_footer_branch
      %7 = sbr.rel target = $region3
    $region8: #{lcab_apply.17} parent=1 // loop_exit
      _

// kernel: lcab_apply.20
$region0: #{lcab_apply.20}
  #allocation0 [shape = 'u32[]', space=smem, size = 0x4, offset = 0x4, fixed_abs, tag = 'smem constant byte address 0x4 - core index']
  #allocation1 [shape = 'u32[144,128]{1,0:T(1,128)}', space=vmem, size = 0x12000, scoped, tag = 'internal scratch']
  #allocation2 [shape = 'f32[16,256]{1,0:T(8,128)}', space=vmem, size = 0x4000, scoped, tag = 'scratch operand']
  #allocation3 [shape = 'f32[1]{0:T(128)S(6)}', space=smem, size = 0x200, scoped, tag = 'scoped memory for lcab_apply.20']
  %s0 = inlined_call_operand.vmem [shape: bf16[16,96], index: 0, kind: input, shape index: {}]
  %s1 = inlined_call_operand.vmem [shape: bf16[96,512], index: 1, kind: input, shape index: {}]
  %s2 = inlined_call_operand.<no memory space> [shape: f32[1], index: 2, kind: input, shape index: {}]
  %s3 = inlined_call_operand.vmem [shape: bf16[16,512], index: 3, kind: output, shape index: {}]
  %s4 = sld [smem:[#allocation0]]
  $region125: #{lcab_apply.20} parent=0
    _
  %s6 = ssub.s32 1, %s4
  %s7 = scalar_select 0, %s6, %s4
  %8 = sst [smem:[#allocation3]] %s2
  $region1: #{lcab_apply.20} parent=0
    #allocation4 [shape = 'u8[98304]{0}', space=vmem, size = 0x18000, scoped, tag = 'input window, operand 1']
    #allocation5 [shape = 'u8[16384]{0}', space=vmem, size = 0x4000, scoped, tag = 'output window, operand 0']
    loop: start=0, step=1, limit=4
    $region2: #{lcab_apply.20} parent=1 // loop_pre_header
      _
    $region3: #{lcab_apply.20} parent=1 // loop_header
      %s10 = sphi 0, %s14
      %p11 = scmp.ge.s32.totalorder %s10, 4
      %s17 = sphi 0, %s36
      %s18 = sphi 0, %s32
      %s19 = sphi 0, %s28
      %s20 = sphi 0, %s17
      %s21 = sphi 0, %s18
      %s22 = sphi 0, %s19
      %s23 = sphi 0, %s20
      %s24 = sphi 0, %s21
      %s25 = sphi 0, %s22
      %s41 = sphi 0, %s43
      %s44 = sphi 0, %s41
      %s45 = sphi 0, %s44
      %s61 = sphi 0, %s45
      %s69 = sphi 0, %s71
      %s72 = sphi 0, %s69
      %s73 = sphi 0, %s72
      %s89 = sphi 0, %s73
      %s93 = sphi 0, %s93
      %s95 = sphi 0, %s93
      %s96 = sphi 0, %s95
      %s110 = sphi 0, %s96
      %s118 = sphi 0, %s120
      %s121 = sphi 0, %s118
      %s122 = sphi 0, %s121
      %s138 = sphi 0, %s122
    $region4: #{lcab_apply.20} parent=1 // loop_header_branch
      %13 = sbr.rel (%p11) target = $region8
    $region5: #{lcab_apply.20} parent=1 // loop_body
      %s15 = ssub.s32 %s10, 1
      %s16 = ssub.s32 %s10, 2
      %s26 = sadd.s32 1, %s19
      %p27 = scmp.ge.s32.totalorder %s26, 1
      %s28 = scalar_select %p27, 0, %s26
      %s29 = sadd.s32 1, %s18
      %s30 = scalar_select %p27, %s29, %s18
      %p31 = scmp.ge.s32.totalorder %s30, 2
      %s32 = scalar_select %p31, 0, %s30
      %s33 = sadd.s32 1, %s17
      %s34 = scalar_select %p31, %s33, %s17
      %p35 = scmp.ge.s32.totalorder %s34, 1
      %s36 = scalar_select %p35, 0, %s34
      %s37 = ssub.s32 %s17, %s36
      %s38 = ssub.s32 %s19, %s28
      %s39 = sor.u32 %s37, %s38
      %p40 = scmp.eq.s32.totalorder %s39, 0
      %s42 = sadd.s32 %s41, 1
      %s43 = scalar_select %p40, %s41, %s42
      %p46 = pneg %p40
      %p47 = scmp.eq.s32.totalorder %s10, 1
      %p48 = por %p46, %p47
      %p49 = scmp.ne.s32.totalorder %s41, %s44
      %p50 = scmp.eq.s32.totalorder %s10, 0
      %p51 = por %p49, %p50
      %p52 = scmp.ne.s32.totalorder %s41, %s44
      %p53 = scmp.eq.s32.totalorder %s15, 1
      %p54 = por %p52, %p53
      %p55 = scmp.ne.s32.totalorder %s44, %s45
      %p56 = scmp.eq.s32.totalorder %s15, 0
      %p57 = por %p55, %p56
      %p58 = scmp.ne.s32.totalorder %s44, %s45
      %p59 = scmp.eq.s32.totalorder %s16, 1
      %p60 = por %p58, %p59
      %p62 = scmp.ne.s32.totalorder %s45, %s61
      %p63 = scmp.eq.s32.totalorder %s16, 0
      %p64 = por %p62, %p63
      %s65 = ssub.s32 %s19, %s28
      %s66 = ssub.s32 %s18, %s32
      %s67 = sor.u32 %s65, %s66
      %p68 = scmp.eq.s32.totalorder %s67, 0
      %s70 = sadd.s32 %s69, 1
      %s71 = scalar_select %p68, %s69, %s70
      %p74 = pneg %p68
      %p75 = scmp.eq.s32.totalorder %s10, 1
      %p76 = por %p74, %p75
      %p77 = scmp.ne.s32.totalorder %s69, %s72
      %p78 = scmp.eq.s32.totalorder %s10, 0
      %p79 = por %p77, %p78
      %p80 = scmp.ne.s32.totalorder %s69, %s72
      %p81 = scmp.eq.s32.totalorder %s15, 1
      %p82 = por %p80, %p81
      %p83 = scmp.ne.s32.totalorder %s72, %s73
      %p84 = scmp.eq.s32.totalorder %s15, 0
      %p85 = por %p83, %p84
      %p86 = scmp.ne.s32.totalorder %s72, %s73
      %p87 = scmp.eq.s32.totalorder %s16, 1
      %p88 = por %p86, %p87
      %p90 = scmp.ne.s32.totalorder %s73, %s89
      %p91 = scmp.eq.s32.totalorder %s16, 0
      %p92 = por %p90, %p91
      %s94 = sadd.s32 %s93, 1
      %p97 = scmp.eq.s32.totalorder %s10, 1
      %p98 = scmp.ne.s32.totalorder %s93, %s95
      %p99 = scmp.eq.s32.totalorder %s10, 0
      %p100 = por %p98, %p99
      %p101 = scmp.ne.s32.totalorder %s93, %s95
      %p102 = scmp.eq.s32.totalorder %s15, 1
      %p103 = por %p101, %p102
      %p104 = scmp.ne.s32.totalorder %s95, %s96
      %p105 = scmp.eq.s32.totalorder %s15, 0
      %p106 = por %p104, %p105
      %p107 = scmp.ne.s32.totalorder %s95, %s96
      %p108 = scmp.eq.s32.totalorder %s16, 1
      %p109 = por %p107, %p108
      %p111 = scmp.ne.s32.totalorder %s96, %s110
      %p112 = scmp.eq.s32.totalorder %s16, 0
      %p113 = por %p111, %p112
      %s114 = ssub.s32 %s17, %s36
      %s115 = ssub.s32 %s18, %s32
      %s116 = sor.u32 %s114, %s115
      %p117 = scmp.eq.s32.totalorder %s116, 0
      %s119 = sadd.s32 %s118, 1
      %s120 = scalar_select %p117, %s118, %s119
      %p123 = pneg %p117
      %p124 = scmp.eq.s32.totalorder %s10, 1
      %p125 = por %p123, %p124
      %p126 = scmp.ne.s32.totalorder %s118, %s121
      %p127 = scmp.eq.s32.totalorder %s10, 0
      %p128 = por %p126, %p127
      %p129 = scmp.ne.s32.totalorder %s118, %s121
      %p130 = scmp.eq.s32.totalorder %s15, 1
      %p131 = por %p129, %p130
      %p132 = scmp.ne.s32.totalorder %s121, %s122
      %p133 = scmp.eq.s32.totalorder %s15, 0
      %p134 = por %p132, %p133
      %p135 = scmp.ne.s32.totalorder %s121, %s122
      %p136 = scmp.eq.s32.totalorder %s16, 1
      %p137 = por %p135, %p136
      %p139 = scmp.ne.s32.totalorder %s122, %s138
      %p140 = scmp.eq.s32.totalorder %s16, 0
      %p141 = por %p139, %p140
      %p142 = scmp.le.s32.totalorder 1, %s10
      %p143 = scmp.lt.s32.totalorder %s10, 3
      %p144 = pnand %p142, %p143
      %p145 = pneg %p144
      // Predicated region
      $region9: #{lcab_apply.20} parent=5 // pred_check
        _
      $region10: #{lcab_apply.20} parent=5 // pred_check_branch
        %147 = sbr.rel (%p144) target = $region12
      $region11: #{lcab_apply.20} parent=5 // pred_region
        %s148 = ssub.s32 %s10, 1
        // Predicated region
        $region13: #{lcab_apply.20} parent=11 // pred_check
          %p149 = pneg %p57
        $region14: #{lcab_apply.20} parent=11 // pred_check_branch
          %151 = sbr.rel (%p149) target = $region16
        $region15: #{lcab_apply.20} parent=11 // pred_region
          %s152 = smul.u32 2, %s20
          %p153 = scmp.lt.s32.totalorder %s152, 1
          %s154 = scalar_select %p153, %s152, 1
          %p155 = scmp.lt.s32.totalorder %s22, 0
          %s156 = scalar_select %p155, %s22, 0
          %s157 = sadd.s32 %s156, %s154
          %s158 = smul.addr %s157, 4
          %s159 = scalar_lea.vmem %s0, %s158
          %s160 = smul.u32 2, %s20
        $region16: #{lcab_apply.20} parent=11 // pred_fallthru
          _
        // Predicated region
        $region17: #{lcab_apply.20} parent=11 // pred_check
          %p161 = pneg %p106
        $region18: #{lcab_apply.20} parent=11 // pred_check_branch
          %163 = sbr.rel (%p161) target = $region20
        $region19: #{lcab_apply.20} parent=11 // pred_region
          _
        $region20: #{lcab_apply.20} parent=11 // pred_fallthru
          _
      $region12: #{lcab_apply.20} parent=5 // pred_fallthru
        _
      %p164 = scmp.lt.s32.totalorder %s10, 2
      // Predicated region
      $region21: #{lcab_apply.20} parent=5 // pred_check
        %p165 = pneg %p164
      $region22: #{lcab_apply.20} parent=5 // pred_check_branch
        %167 = sbr.rel (%p165) target = $region24
      $region23: #{lcab_apply.20} parent=5 // pred_region
        // Predicated region
        $region25: #{lcab_apply.20} parent=23 // pred_check
          %p168 = pneg %p79
        $region26: #{lcab_apply.20} parent=23 // pred_check_branch
          %170 = sbr.rel (%p168) target = $region28
        $region27: #{lcab_apply.20} parent=23 // pred_region
          %s171 = sand.u32 %s69, 1
          %s172 = sand.u32 %s69, 1
          %s173 = smul.addr %s172, 96
          %s174 = scalar_lea.vmem [#allocation4], %s173
          %s175 = smul.u32 12, %s19
          %s176 = smul.u32 2, %s18
          %s177 = smul.addr %s175, 4
          %s178 = sadd.s32 %s176, %s177
          %s179 = smul.addr %s178, 4
          %s180 = scalar_lea.vmem %s1, %s179
          // Predicated region
          $region29: #{lcab_apply.20} parent=27 // pred_check
            _
          $region30: #{lcab_apply.20} parent=27 // pred_check_branch
            %182 = sbr.rel (0) target = $region32
          $region31: #{lcab_apply.20} parent=27 // pred_region
            // Predicated region
            $region33: #{lcab_apply.20} parent=31 // pred_check
              _
            $region34: #{lcab_apply.20} parent=31 // pred_check_branch
              %184 = sbr.rel (0) target = $region36
            $region35: #{lcab_apply.20} parent=31 // pred_region
              // Predicated region
              $region48: #{lcab_apply.20} parent=35 // pred_check
                _
              $region49: #{lcab_apply.20} parent=35 // pred_check_branch
                %222 = sbr.rel (0) target = $region51
              $region50: #{lcab_apply.20} parent=35 // pred_region
                loop: start=0, step=1, limit=1
                $region52: #{lcab_apply.20} parent=50 // loop_pre_header
                  _
                $region53: #{lcab_apply.20} parent=50 // loop_header
                  %s224 = sphi 0, %s228
                  %p225 = scmp.ge.s32.totalorder %s224, 1
                  %s229 = sphi %s180, %s180
                  %s230 = sphi %s174, %s174
                $region54: #{lcab_apply.20} parent=50 // loop_header_branch
                  %227 = sbr.rel (%p225) target = $region58
                $region55: #{lcab_apply.20} parent=50 // loop_body
                  %v231 = vld [vmem:[%s229] sm:$0xff]
                  %232 = vst [vmem:[%s230] sm:$0xff] %v231
                  %v233 = vld [vmem:[%s229 + $0x10] sm:$0xff]
                  %234 = vst [vmem:[%s230 + $0x8] sm:$0xff] %v233
                  %v235 = vld [vmem:[%s229 + $0x20] sm:$0xff]
                  %236 = vst [vmem:[%s230 + $0x10] sm:$0xff] %v235
                  %v237 = vld [vmem:[%s229 + $0x30] sm:$0xff]
                  %238 = vst [vmem:[%s230 + $0x18] sm:$0xff] %v237
                  %v239 = vld [vmem:[%s229 + $0x40] sm:$0xff]
                  %240 = vst [vmem:[%s230 + $0x20] sm:$0xff] %v239
                  %v241 = vld [vmem:[%s229 + $0x50] sm:$0xff]
                  %242 = vst [vmem:[%s230 + $0x28] sm:$0xff] %v241
                  %v243 = vld [vmem:[%s229 + $0x60] sm:$0xff]
                  %244 = vst [vmem:[%s230 + $0x30] sm:$0xff] %v243
                  %v245 = vld [vmem:[%s229 + $0x70] sm:$0xff]
                  %246 = vst [vmem:[%s230 + $0x38] sm:$0xff] %v245
                  %v247 = vld [vmem:[%s229 + $0x80] sm:$0xff]
                  %248 = vst [vmem:[%s230 + $0x40] sm:$0xff] %v247
                  %v249 = vld [vmem:[%s229 + $0x90] sm:$0xff]
                  %250 = vst [vmem:[%s230 + $0x48] sm:$0xff] %v249
                  %v251 = vld [vmem:[%s229 + $0xa0] sm:$0xff]
                  %252 = vst [vmem:[%s230 + $0x50] sm:$0xff] %v251
                  %v253 = vld [vmem:[%s229 + $0xb0] sm:$0xff]
                  %254 = vst [vmem:[%s230 + $0x58] sm:$0xff] %v253
                $region56: #{lcab_apply.20} parent=50 // loop_footer
                  %s228 = sadd.s32 1, %s224
                $region57: #{lcab_apply.20} parent=50 // loop_footer_branch
                  %223 = sbr.rel target = $region53
                $region58: #{lcab_apply.20} parent=50 // loop_exit
                  _
              $region51: #{lcab_apply.20} parent=35 // pred_fallthru
                _
              // Predicated region
              $region59: #{lcab_apply.20} parent=35 // pred_check
                _
              $region60: #{lcab_apply.20} parent=35 // pred_check_branch
                %256 = sbr.rel target = $region62
              $region61: #{lcab_apply.20} parent=35 // pred_region
                _
              $region62: #{lcab_apply.20} parent=35 // pred_fallthru
                _
            $region36: #{lcab_apply.20} parent=31 // pred_fallthru
              _
            // Predicated region
            $region37: #{lcab_apply.20} parent=31 // pred_check
              _
            $region38: #{lcab_apply.20} parent=31 // pred_check_branch
              %186 = sbr.rel target = $region40
            $region39: #{lcab_apply.20} parent=31 // pred_region
              %s188 = ssub.s32 256, 1
              loop: start=0, step=1, limit=1
              $region41: #{lcab_apply.20} parent=39 // loop_pre_header
                _
              $region42: #{lcab_apply.20} parent=39 // loop_header
                %s190 = sphi 0, %s194
                %p191 = scmp.ge.s32.totalorder %s190, 1
                %s195 = sphi %s180, %s180
                %s196 = sphi %s174, %s174
              $region43: #{lcab_apply.20} parent=39 // loop_header_branch
                %193 = sbr.rel (%p191) target = $region47
              $region44: #{lcab_apply.20} parent=39 // loop_body
                %v197 = vld [vmem:[%s195] sm:%s188]
                %198 = vst [vmem:[%s196] sm:%s188] %v197
                %v199 = vld [vmem:[%s195 + $0x10] sm:%s188]
                %200 = vst [vmem:[%s196 + $0x8] sm:%s188] %v199
                %v201 = vld [vmem:[%s195 + $0x20] sm:%s188]
                %202 = vst [vmem:[%s196 + $0x10] sm:%s188] %v201
                %v203 = vld [vmem:[%s195 + $0x30] sm:%s188]
                %204 = vst [vmem:[%s196 + $0x18] sm:%s188] %v203
                %v205 = vld [vmem:[%s195 + $0x40] sm:%s188]
                %206 = vst [vmem:[%s196 + $0x20] sm:%s188] %v205
                %v207 = vld [vmem:[%s195 + $0x50] sm:%s188]
                %208 = vst [vmem:[%s196 + $0x28] sm:%s188] %v207
                %v209 = vld [vmem:[%s195 + $0x60] sm:%s188]
                %210 = vst [vmem:[%s196 + $0x30] sm:%s188] %v209
                %v211 = vld [vmem:[%s195 + $0x70] sm:%s188]
                %212 = vst [vmem:[%s196 + $0x38] sm:%s188] %v211
                %v213 = vld [vmem:[%s195 + $0x80] sm:%s188]
                %214 = vst [vmem:[%s196 + $0x40] sm:%s188] %v213
                %v215 = vld [vmem:[%s195 + $0x90] sm:%s188]
                %216 = vst [vmem:[%s196 + $0x48] sm:%s188] %v215
                %v217 = vld [vmem:[%s195 + $0xa0] sm:%s188]
                %218 = vst [vmem:[%s196 + $0x50] sm:%s188] %v217
                %v219 = vld [vmem:[%s195 + $0xb0] sm:%s188]
                %220 = vst [vmem:[%s196 + $0x58] sm:%s188] %v219
              $region45: #{lcab_apply.20} parent=39 // loop_footer
                %s194 = sadd.s32 1, %s190
              $region46: #{lcab_apply.20} parent=39 // loop_footer_branch
                %189 = sbr.rel target = $region42
              $region47: #{lcab_apply.20} parent=39 // loop_exit
                _
            $region40: #{lcab_apply.20} parent=31 // pred_fallthru
              _
          $region32: #{lcab_apply.20} parent=27 // pred_fallthru
            _
          %257 = vnop
        $region28: #{lcab_apply.20} parent=23 // pred_fallthru
          _
      $region24: #{lcab_apply.20} parent=5 // pred_fallthru
        _
      %p258 = scmp.le.s32.totalorder 1, %s10
      %p259 = scmp.lt.s32.totalorder %s10, 3
      %p260 = pnand %p258, %p259
      %p261 = pneg %p260
      // Predicated region
      $region63: #{lcab_apply.20} parent=5 // pred_check
        _
      $region64: #{lcab_apply.20} parent=5 // pred_check_branch
        %263 = sbr.rel (%p260) target = $region66
      $region65: #{lcab_apply.20} parent=5 // pred_region
        %s264 = ssub.s32 %s10, 1
        %s265 = sand.u32 %s72, 1
        %s266 = sand.u32 %s72, 1
        %s267 = smul.addr %s266, 96
        %s268 = scalar_lea.vmem [#allocation4], %s267
        // Predicated region
        $region67: #{lcab_apply.20} parent=65 // pred_check
          %p269 = pneg %p85
        $region68: #{lcab_apply.20} parent=65 // pred_check_branch
          %271 = sbr.rel (%p269) target = $region70
        $region69: #{lcab_apply.20} parent=65 // pred_region
          _
        $region70: #{lcab_apply.20} parent=65 // pred_fallthru
          _
        %s272 = smul.u32 2, %s20
        %p273 = scmp.lt.s32.totalorder %s272, 1
        %s274 = scalar_select %p273, %s272, 1
        %p275 = scmp.lt.s32.totalorder %s22, 0
        %s276 = scalar_select %p275, %s22, 0
        %s277 = sadd.s32 %s276, %s274
        %s278 = smul.addr %s277, 4
        %s279 = scalar_lea.vmem %s0, %s278
        %p280 = pneg %p57
        %p281 = pneg %p54
        %s282 = sand.u32 %s72, 1
        %s283 = sand.u32 %s72, 1
        %s284 = smul.addr %s283, 96
        %s285 = scalar_lea.vmem [#allocation4], %s284
        %p286 = pneg %p85
        %p287 = pneg %p82
        %p288 = pneg %p106
        %p289 = pneg %p103
        %p290 = pneg %p134
        %p291 = pneg %p131
        %s292 = sand.u32 %s121, 1
        %s293 = sand.u32 %s121, 1
        %s294 = smul.addr %s293, 16
        %s295 = scalar_lea.vmem [#allocation5], %s294
        %s296 = smul.u32 2, %s20
        %p297 = scmp.lt.s32.totalorder %s296, 1
        %s298 = scalar_select %p297, %s296, 1
        %p299 = scmp.lt.s32.totalorder %s22, 0
        %s300 = scalar_select %p299, %s22, 0
        %s301 = sadd.s32 %s300, %s298
        %s302 = smul.addr %s301, 4
        %s303 = scalar_lea.vmem %s0, %s302
        %s304 = smul.u32 2, %s20
        %s305 = smul.u32 12, %s22
        %s306 = smul.u32 2, %s21
        %s307 = smul.u32 2, %s20
        %s308 = smul.u32 2, %s21
        %p310 = scmp.eq.s32.totalorder %s22, 0
        // Predicated region
        $region71: #{lcab_apply.20} parent=65 // pred_check
          %p311 = pneg %p310
        $region72: #{lcab_apply.20} parent=65 // pred_check_branch
          %313 = sbr.rel (%p311) target = $region74
        $region73: #{lcab_apply.20} parent=65 // pred_region
          %314 = vst [vmem:[#allocation2] sm:$0xff] 0.0
          %315 = vst [vmem:[#allocation2 + $0x8] sm:$0xff] 0.0
          %316 = vst [vmem:[#allocation2 + $0x10] sm:$0xff] 0.0
          %317 = vst [vmem:[#allocation2 + $0x18] sm:$0xff] 0.0
        $region74: #{lcab_apply.20} parent=65 // pred_fallthru
          _
        %v318 = vld [vmem:[#allocation2] sm:$0xff]
        %v319 = vld [vmem:[#allocation2 + $0x8] sm:$0xff]
        %v320 = vld [vmem:[#allocation2 + $0x10] sm:$0xff]
        %v321 = vld [vmem:[#allocation2 + $0x18] sm:$0xff]
        %v322 = vld [vmem:[%s303] sm:$0xf]
        %v323 = vld [vmem:[%s303 + $0x4] sm:$0xf]
        %v324 = vld [vmem:[%s268] sm:$0xff]
        %v325 = vld [vmem:[%s268 + $0x8] sm:$0xff]
        %v326 = vld [vmem:[%s268 + $0x10] sm:$0xff]
        %v327 = vld [vmem:[%s268 + $0x18] sm:$0xff]
        %v328 = vld [vmem:[%s268 + $0x20] sm:$0xff]
        %v329 = vld [vmem:[%s268 + $0x28] sm:$0xff]
        %v330 = vld [vmem:[%s268 + $0x30] sm:$0xff]
        %v331 = vld [vmem:[%s268 + $0x38] sm:$0xff]
        %v332 = vld [vmem:[%s268 + $0x40] sm:$0xff]
        %v333 = vld [vmem:[%s268 + $0x48] sm:$0xff]
        %v334 = vld [vmem:[%s268 + $0x50] sm:$0xff]
        %v335 = vld [vmem:[%s268 + $0x58] sm:$0xff]
        %v338 = vunpack.c.l.b16 %v322
        %v339 = vunpack.c.l.b16 %v323
        %v340 = vpack.c.b16 %v339, %v338
        %v353 = vunpack.c.l.b16 %v324
        %v354 = vunpack.c.h.b16 %v324
        %v355 = vunpack.c.l.b16 %v325
        %v356 = vunpack.c.h.b16 %v325
        %v357 = vunpack.c.l.b16 %v326
        %v358 = vunpack.c.h.b16 %v326
        %v359 = vunpack.c.l.b16 %v327
        %v360 = vunpack.c.h.b16 %v327
        %v361 = vunpack.c.l.b16 %v328
        %v362 = vunpack.c.h.b16 %v328
        %v363 = vunpack.c.l.b16 %v329
        %v364 = vunpack.c.h.b16 %v329
        %v365 = vunpack.c.l.b16 %v330
        %v366 = vunpack.c.h.b16 %v330
        %v367 = vunpack.c.l.b16 %v331
        %v368 = vunpack.c.h.b16 %v331
        %v369 = vunpack.c.l.b16 %v332
        %v370 = vunpack.c.h.b16 %v332
        %v371 = vunpack.c.l.b16 %v333
        %v372 = vunpack.c.h.b16 %v333
        %v373 = vunpack.c.l.b16 %v334
        %v374 = vunpack.c.h.b16 %v334
        %v375 = vunpack.c.l.b16 %v335
        %v376 = vunpack.c.h.b16 %v335
        %v377 = vpack.c.b16 %v355, %v353
        %v378 = vpack.c.b16 %v356, %v354
        %v379 = vpack.c.b16 %v359, %v357
        %v380 = vpack.c.b16 %v360, %v358
        %v381 = vpack.c.b16 %v363, %v361
        %v382 = vpack.c.b16 %v364, %v362
        %v383 = vpack.c.b16 %v367, %v365
        %v384 = vpack.c.b16 %v368, %v366
        %v385 = vpack.c.b16 %v371, %v369
        %v386 = vpack.c.b16 %v372, %v370
        %v387 = vpack.c.b16 %v375, %v373
        %v388 = vpack.c.b16 %v376, %v374
        %vm401 = vcmask 785408
        %v403 = vsel %vm401, %v340, 0
        %405 = vmatprep.subr.bf16.mxu0 0
        %406 = vmatpush1.bf16.msra.mxu0 0
        %407 = vmatprep.subr.bf16.mxu0 0
        %408 = vmatpush1.bf16.msra.mxu0 0
        %409 = vmatprep.subr.bf16.mxu0 %v388
        %410 = vmatpush1.bf16.msra.mxu0 %v387
        %411 = vmatprep.subr.bf16.mxu0 %v386
        %412 = vmatpush1.bf16.msra.mxu0 %v385
        %413 = vmatprep.subr.bf16.mxu0 %v384
        %414 = vmatpush1.bf16.msra.mxu0 %v383
        %415 = vmatprep.subr.bf16.mxu0 %v382
        %416 = vmatpush1.bf16.msra.mxu0 %v381
        %417 = vmatprep.subr.bf16.mxu0 %v380
        %418 = vmatpush1.bf16.msra.mxu0 %v379
        %419 = vmatprep.subr.bf16.mxu0 %v378
        %420 = vmatpush1.bf16.msra.mxu0 %v377
        %421 = vmatprep.subr.bf16.mxu0 0
        %422 = vmatpush2.bf16.msra.mxu0 0
        %423 = vmatprep.subr.bf16.mxu0 0
        %424 = vmatpush2.bf16.msra.mxu0 0
        %425 = vmatprep.subr.bf16.mxu0 0
        %426 = vmatpush2.bf16.msra.mxu0 0
        %427 = vmatprep.subr.bf16.mxu0 0
        %428 = vmatpush2.bf16.msra.mxu0 0
        %429 = vmatprep.subr.bf16.mxu0 0
        %430 = vmatpush2.bf16.msra.mxu0 0
        %431 = vmatprep.subr.bf16.mxu0 0
        %432 = vmatpush2.bf16.msra.mxu0 0
        %433 = vmatprep.subr.bf16.mxu0 0
        %434 = vmatpush2.bf16.msra.mxu0 0
        %435 = vmatprep.subr.bf16.mxu0 0
        %436 = vmatpush2.bf16.msra.mxu0 0
        %437 = vmatprep.mubr.bf16.mxu0 0
        %438 = vmatmul.mubr.bf16.gmra.mxu0 %v403
        %v439 = vpop.f32.mrf.mxu0
        %v440 = vadd.f32 0.0, %v439
        %v441 = vpop.f32.mrf.mxu0
        %v442 = vadd.f32 0.0, %v441
        %v443 = vpop.f32.mrf.mxu0
        %v444 = vadd.f32 0.0, %v443
        %v445 = vpop.f32.mrf.mxu0
        %v446 = vadd.f32 0.0, %v445
        %447 = vdwg.mxu0
        %v448 = vadd.f32 %v318, %v440
        %v449 = vadd.f32 %v319, %v442
        %v450 = vadd.f32 %v320, %v444
        %v451 = vadd.f32 %v321, %v446
        %452 = vst [vmem:[#allocation2] sm:$0xff] %v448
        %453 = vst [vmem:[#allocation2 + $0x8] sm:$0xff] %v449
        %454 = vst [vmem:[#allocation2 + $0x10] sm:$0xff] %v450
        %455 = vst [vmem:[#allocation2 + $0x18] sm:$0xff] %v451
        // Predicated region
        $region75: #{lcab_apply.20} parent=65 // pred_check
          %p456 = pneg %p310
        $region76: #{lcab_apply.20} parent=65 // pred_check_branch
          %458 = sbr.rel (%p456) target = $region78
        $region77: #{lcab_apply.20} parent=65 // pred_region
          %v459 = vld [vmem:[#allocation2] sm:$0xff]
          %v460 = vld [vmem:[#allocation2 + $0x8] sm:$0xff]
          %v461 = vld [vmem:[#allocation2 + $0x10] sm:$0xff]
          %v462 = vld [vmem:[#allocation2 + $0x18] sm:$0xff]
          %s463 = sld [smem:[#allocation3]]
          %vm464 = vcmp.ge.f32.partialorder %v459, 0.0
          %vm465 = vcmp.ge.f32.partialorder %v460, 0.0
          %vm466 = vcmp.ge.f32.partialorder %v461, 0.0
          %vm467 = vcmp.ge.f32.partialorder %v462, 0.0
          %v468 = vstv %s463
          %v469 = vmul.f32 %v468, %v459
          %v470 = vmul.f32 %v468, %v460
          %v471 = vmul.f32 %v468, %v461
          %v472 = vmul.f32 %v468, %v462
          %v473 = vsel %vm464, %v459, %v469
          %v474 = vsel %vm465, %v460, %v470
          %v475 = vsel %vm466, %v461, %v471
          %v476 = vsel %vm467, %v462, %v472
          %v477 = vpack.c.bf16 %v475, %v473
          %v478 = vpack.c.bf16 %v476, %v474
          %v481 = vunpack.c.l.b16 %v477
          %v482 = vunpack.c.l.b16 %v478
          %v483 = vunpack.c.h.b16 %v477
          %v484 = vunpack.c.h.b16 %v478
          %v485 = vpack.c.b16 %v482, %v481
          %v486 = vpack.c.b16 %v484, %v483
          %489 = vst [vmem:[%s295] sm:$0xff] %v485
          %490 = vst [vmem:[%s295 + $0x8] sm:$0xff] %v486
        $region78: #{lcab_apply.20} parent=65 // pred_fallthru
          _
        %s491 = sand.u32 %s121, 1
        %s492 = sand.u32 %s121, 1
        %s493 = smul.addr %s492, 16
        %s494 = scalar_lea.vmem [#allocation5], %s493
        // Predicated region
        $region79: #{lcab_apply.20} parent=65 // pred_check
          %p495 = pneg %p131
        $region80: #{lcab_apply.20} parent=65 // pred_check_branch
          %497 = sbr.rel (%p495) target = $region82
        $region81: #{lcab_apply.20} parent=65 // pred_region
          %s498 = smul.u32 2, %s20
          %s499 = smul.u32 2, %s21
          %s500 = smul.addr %s498, 4
          %s501 = sadd.s32 %s499, %s500
          %s502 = smul.addr %s501, 4
          %s503 = scalar_lea.vmem %s3, %s502
          // Predicated region
          $region83: #{lcab_apply.20} parent=81 // pred_check
            _
          $region84: #{lcab_apply.20} parent=81 // pred_check_branch
            %505 = sbr.rel (0) target = $region86
          $region85: #{lcab_apply.20} parent=81 // pred_region
            // Predicated region
            $region87: #{lcab_apply.20} parent=85 // pred_check
              _
            $region88: #{lcab_apply.20} parent=85 // pred_check_branch
              %507 = sbr.rel (0) target = $region90
            $region89: #{lcab_apply.20} parent=85 // pred_region
              // Predicated region
              $region102: #{lcab_apply.20} parent=89 // pred_check
                _
              $region103: #{lcab_apply.20} parent=89 // pred_check_branch
                %525 = sbr.rel (0) target = $region105
              $region104: #{lcab_apply.20} parent=89 // pred_region
                loop: start=0, step=1, limit=1
                $region106: #{lcab_apply.20} parent=104 // loop_pre_header
                  _
                $region107: #{lcab_apply.20} parent=104 // loop_header
                  %s527 = sphi 0, %s531
                  %p528 = scmp.ge.s32.totalorder %s527, 1
                  %s532 = sphi %s494, %s494
                  %s533 = sphi %s503, %s503
                $region108: #{lcab_apply.20} parent=104 // loop_header_branch
                  %530 = sbr.rel (%p528) target = $region112
                $region109: #{lcab_apply.20} parent=104 // loop_body
                  %v534 = vld [vmem:[%s532] sm:$0xff]
                  %535 = vst [vmem:[%s533] sm:$0xff] %v534
                  %v536 = vld [vmem:[%s532 + $0x8] sm:$0xff]
                  %537 = vst [vmem:[%s533 + $0x10] sm:$0xff] %v536
                $region110: #{lcab_apply.20} parent=104 // loop_footer
                  %s531 = sadd.s32 1, %s527
                $region111: #{lcab_apply.20} parent=104 // loop_footer_branch
                  %526 = sbr.rel target = $region107
                $region112: #{lcab_apply.20} parent=104 // loop_exit
                  _
              $region105: #{lcab_apply.20} parent=89 // pred_fallthru
                _
              // Predicated region
              $region113: #{lcab_apply.20} parent=89 // pred_check
                _
              $region114: #{lcab_apply.20} parent=89 // pred_check_branch
                %539 = sbr.rel target = $region116
              $region115: #{lcab_apply.20} parent=89 // pred_region
                _
              $region116: #{lcab_apply.20} parent=89 // pred_fallthru
                _
            $region90: #{lcab_apply.20} parent=85 // pred_fallthru
              _
            // Predicated region
            $region91: #{lcab_apply.20} parent=85 // pred_check
              _
            $region92: #{lcab_apply.20} parent=85 // pred_check_branch
              %509 = sbr.rel target = $region94
            $region93: #{lcab_apply.20} parent=85 // pred_region
              %s511 = ssub.s32 256, 1
              loop: start=0, step=1, limit=1
              $region95: #{lcab_apply.20} parent=93 // loop_pre_header
                _
              $region96: #{lcab_apply.20} parent=93 // loop_header
                %s513 = sphi 0, %s517
                %p514 = scmp.ge.s32.totalorder %s513, 1
                %s518 = sphi %s494, %s494
                %s519 = sphi %s503, %s503
              $region97: #{lcab_apply.20} parent=93 // loop_header_branch
                %516 = sbr.rel (%p514) target = $region101
              $region98: #{lcab_apply.20} parent=93 // loop_body
                %v520 = vld [vmem:[%s518] sm:%s511]
                %521 = vst [vmem:[%s519] sm:%s511] %v520
                %v522 = vld [vmem:[%s518 + $0x8] sm:%s511]
                %523 = vst [vmem:[%s519 + $0x10] sm:%s511] %v522
              $region99: #{lcab_apply.20} parent=93 // loop_footer
                %s517 = sadd.s32 1, %s513
              $region100: #{lcab_apply.20} parent=93 // loop_footer_branch
                %512 = sbr.rel target = $region96
              $region101: #{lcab_apply.20} parent=93 // loop_exit
                _
            $region94: #{lcab_apply.20} parent=85 // pred_fallthru
              _
          $region86: #{lcab_apply.20} parent=81 // pred_fallthru
            _
          %540 = vnop
        $region82: #{lcab_apply.20} parent=65 // pred_fallthru
          _
      $region66: #{lcab_apply.20} parent=5 // pred_fallthru
        _
      %p541 = scmp.le.s32.totalorder 2, %s10
      // Predicated region
      $region117: #{lcab_apply.20} parent=5 // pred_check
        %p542 = pneg %p541
      $region118: #{lcab_apply.20} parent=5 // pred_check_branch
        %544 = sbr.rel (%p542) target = $region120
      $region119: #{lcab_apply.20} parent=5 // pred_region
        %s545 = ssub.s32 %s10, 2
        // Predicated region
        $region121: #{lcab_apply.20} parent=119 // pred_check
          %p546 = pneg %p137
        $region122: #{lcab_apply.20} parent=119 // pred_check_branch
          %548 = sbr.rel (%p546) target = $region124
        $region123: #{lcab_apply.20} parent=119 // pred_region
          %s549 = sand.u32 %s122, 1
          %s550 = sand.u32 %s122, 1
          %s551 = smul.addr %s550, 16
          %s552 = scalar_lea.vmem [#allocation5], %s551
        $region124: #{lcab_apply.20} parent=119 // pred_fallthru
          _
      $region120: #{lcab_apply.20} parent=5 // pred_fallthru
        _
    $region6: #{lcab_apply.20} parent=1 // loop_footer
      %s14 = sadd.s32 1, %s10
    $region7: #{lcab_apply.20} parent=1 // loop_footer_branch
      %9 = sbr.rel target = $region3
    $region8: #{lcab_apply.20} parent=1 // loop_exit
      _

</llo_original>
